<compile_context>
chip_gen: v7x
topology: tpu7x:2x2x1
jax: 0.10.0
libtpu: 0.0.40
codegen_flags: <defaults>
</compile_context>

<pallas_src>
import jax
import jax.numpy as jnp
from jax.experimental import pallas as pl
from jax.experimental.pallas import tpu as pltpu

X_DIM, H1, H2, LS = 28 * 28, 512, 256, 2


def _round_up(x, m):
    return (x + m - 1) // m * m


def autoencoder_kernel(x_ref,
                       w1_ref, b1_ref, w2_ref, b2_ref, w34_ref, b34_ref,
                       w5_ref, b5_ref, w6_ref, b6_ref,
                       out_ref):
    # bf16 operands on the MXU, f32 accumulation; bias + ReLU on the f32
    # accumulator, immediately downcast to bf16 for the next matmul.
    x = x_ref[...]                                                   # (TB, 784) bf16

    h = jnp.dot(x, w1_ref[...], preferred_element_type=jnp.float32)
    h = jnp.maximum(h + b1_ref[...], 0.0).astype(jnp.bfloat16)       # fc1 + ReLU

    h = jnp.dot(h, w2_ref[...], preferred_element_type=jnp.float32)
    h = jnp.maximum(h + b2_ref[...], 0.0).astype(jnp.bfloat16)       # fc2 + ReLU

    # Fused fc3+fc4 (no nonlinearity between them): h @ (w3@w4) + (b3@w4 + b4)
    d = jnp.dot(h, w34_ref[...], preferred_element_type=jnp.float32)
    d = jnp.maximum(d + b34_ref[...], 0.0).astype(jnp.bfloat16)      # fc3/4 + ReLU

    d = jnp.dot(d, w5_ref[...], preferred_element_type=jnp.float32)
    d = jnp.maximum(d + b5_ref[...], 0.0).astype(jnp.bfloat16)       # fc5 + ReLU

    d = jnp.dot(d, w6_ref[...], preferred_element_type=jnp.float32)
    d = d + b6_ref[...]                                              # fc6
    out_ref[...] = jax.nn.sigmoid(d).astype(out_ref.dtype)           # Sigmoid (bf16 store)


def prepare_params(params):
    """Fuse fc3/fc4 and cast weights to bf16 (biases stay f32)."""
    (w1, b1, w2, b2, w3, b3, w4, b4, w5, b5, w6, b6) = params
    w34 = jnp.dot(w3, w4, preferred_element_type=jnp.float32)        # (256, 256)
    b34 = jnp.dot(b3, w4, preferred_element_type=jnp.float32) + b4   # (1, 256)
    bf = lambda w: w.astype(jnp.bfloat16)
    return (bf(w1), b1, bf(w2), b2, bf(w34), b34, bf(w5), b5, bf(w6), b6)


def _choose_tb(B, tile_batch):
    """Pick the batch tile: big for MXU fill / step amortization, but with
    >=2 grid steps for large batches so v7x's two TensorCores both work."""
    Br = _round_up(B, 8)
    if Br <= 256:
        return Br                                  # tiny batch: single tile
    cap = _round_up(pl.cdiv(Br, 2), 256)           # keep grid length >= 2
    return max(256, min(tile_batch, cap))


def autoencoder_mlp(x_nchw, prepared, *, tile_batch=512, out_dtype=jnp.bfloat16):
    """x_nchw: (B, 1, 28, 28).  Returns (B, 784) in `out_dtype` (default bf16).

    Note: the kernel streams bf16 activations in/out of HBM (the cast fuses
    with the wrapper reshape/pad); sigmoid outputs in [0,1] lose < ~4e-3 in
    bf16.  Pass out_dtype=jnp.float32 if a strict f32 contract is required.
    """
    B = x_nchw.shape[0]
    # x.view(-1, 784), cast to bf16 as part of the same XLA reshape op.
    x = x_nchw.reshape(B, X_DIM).astype(jnp.bfloat16)

    TB = _choose_tb(B, tile_batch)
    Bp = _round_up(B, TB)
    if Bp != B:
        x = jnp.pad(x, ((0, Bp - B), (0, 0)))
    grid = (Bp // TB,)

    (w1, b1, w2, b2, w34, b34, w5, b5, w6, b6) = prepared

    def resident(arr):
        # Whole-array block with a constant index_map: DMA'd once, then
        # VMEM-resident across all batch tiles.
        return pl.BlockSpec(arr.shape, lambda i: (0, 0))

    x_spec = pl.BlockSpec((TB, X_DIM), lambda i: (i, 0))
    out_spec = pl.BlockSpec((TB, X_DIM), lambda i: (i, 0))

    weight_bytes = sum(int(a.size) * a.dtype.itemsize
                       for a in (w1, b1, w2, b2, w34, b34, w5, b5, w6, b6))
    act_bytes = Bp * X_DIM * (2 + jnp.dtype(out_dtype).itemsize)      # bf16 in + out
    cost = pl.CostEstimate(
        flops=2 * Bp * (X_DIM * H1 + H1 * H2 + H2 * H2 + H2 * H1 + H1 * X_DIM),
        transcendentals=Bp * X_DIM,
        bytes_accessed=weight_bytes + act_bytes,
    )

    out = pl.pallas_call(
        autoencoder_kernel,
        out_shape=jax.ShapeDtypeStruct((Bp, X_DIM), out_dtype),
        grid=grid,
        in_specs=[x_spec,
                  resident(w1), resident(b1),
                  resident(w2), resident(b2),
                  resident(w34), resident(b34),
                  resident(w5), resident(b5),
                  resident(w6), resident(b6)],
        out_specs=out_spec,
        compiler_params=pltpu.CompilerParams(
            dimension_semantics=("parallel",),
            # ~12-16 MB actually used at TB=512 (bf16 I/O windows x2 buffers,
            # resident weights, f32 layer temporaries); 48 MB leaves headroom
            # while staying inside v7x's 64 MiB physical VMEM.
            vmem_limit_bytes=48 * 1024 * 1024),
        cost_estimate=cost,
    )(x, w1, b1, w2, b2, w34, b34, w5, b5, w6, b6)

    return out[:B]


def init_params(key, x_dim=X_DIM, h_dim1=H1, h_dim2=H2, ls_dim=LS):
    """PyTorch-Linear-like init: U(-1/sqrt(fan_in), 1/sqrt(fan_in)).
    Weights stored (in_features, out_features) so the kernel computes
    x @ W + b  ==  PyTorch's  x @ W.T + b."""
    dims = [(x_dim, h_dim1), (h_dim1, h_dim2), (h_dim2, ls_dim),
            (ls_dim, h_dim2), (h_dim2, h_dim1), (h_dim1, x_dim)]
    params = []
    keys = jax.random.split(key, 2 * len(dims))
    for i, (fin, fout) in enumerate(dims):
        bound = 1.0 / (fin ** 0.5)
        w = jax.random.uniform(keys[2 * i], (fin, fout), jnp.float32,
                               minval=-bound, maxval=bound)
        b = jax.random.uniform(keys[2 * i + 1], (1, fout), jnp.float32,
                               minval=-bound, maxval=bound)
        params.extend([w, b])
    return tuple(params)


def reference_forward(x_nchw, params):
    """Pure-JAX f32 reference of the PyTorch forward (unfused, unquantized)."""
    (w1, b1, w2, b2, w3, b3, w4, b4, w5, b5, w6, b6) = params
    x = x_nchw.reshape(-1, X_DIM)
    h = jnp.maximum(x @ w1 + b1, 0.0)
    h = jnp.maximum(h @ w2 + b2, 0.0)
    z = h @ w3 + b3
    d = jnp.maximum(z @ w4 + b4, 0.0)
    d = jnp.maximum(d @ w5 + b5, 0.0)
    return jax.nn.sigmoid(d @ w6 + b6)


if __name__ == "__main__":
    key = jax.random.PRNGKey(0)
    k_x, k_p = jax.random.split(key)

    B = 8
    x = jax.random.uniform(k_x, (B, 1, 28, 28), jnp.float32)  # MNIST-like NCHW
    params = init_params(k_p)
    prepared = prepare_params(params)

    out = autoencoder_mlp(x, prepared)
    out = jax.block_until_ready(out)

    assert out.shape == (B, X_DIM)
    assert out.dtype == jnp.bfloat16
    outf = out.astype(jnp.float32)
    # sigmoid output range sanity check
    assert bool(jnp.all(outf >= 0.0)) and bool(jnp.all(outf <= 1.0))

    # bf16-weight / bf16-I/O / f32-accumulate kernel vs full-f32 reference
    ref = reference_forward(x, params)
    max_err = float(jnp.max(jnp.abs(outf - ref)))
    assert max_err < 5e-2, f"max abs err vs f32 reference: {max_err}"

    print("KERNEL_OK")
</pallas_src>

<mosaic_0001>
module attributes {stable_mosaic.version = 11 : i64} {
  func.func @autoencoder_kernel(%arg0: i32, %arg1: memref<8x784xbf16, #tpu.memory_space<vmem>>, %arg2: memref<784x512xbf16, #tpu.memory_space<vmem>>, %arg3: memref<1x512xf32, #tpu.memory_space<vmem>>, %arg4: memref<512x256xbf16, #tpu.memory_space<vmem>>, %arg5: memref<1x256xf32, #tpu.memory_space<vmem>>, %arg6: memref<256x256xbf16, #tpu.memory_space<vmem>>, %arg7: memref<1x256xf32, #tpu.memory_space<vmem>>, %arg8: memref<256x512xbf16, #tpu.memory_space<vmem>>, %arg9: memref<1x512xf32, #tpu.memory_space<vmem>>, %arg10: memref<512x784xbf16, #tpu.memory_space<vmem>>, %arg11: memref<1x784xf32, #tpu.memory_space<vmem>>, %arg12: memref<8x784xbf16, #tpu.memory_space<vmem>>) attributes {dimension_semantics = [#tpu.dimension_semantics<parallel>], iteration_bounds = array<i64: 1>, scalar_prefetch = 0 : i64, scratch_operands = 0 : i64, tpu.core_type = #tpu.core_type<tc>, window_params = [{transform_indices = @transform_0, window_bounds = array<i64: 8, 784>}, {pipeline_mode = #tpu.pipeline_mode<synchronous>, transform_indices = @transform_1, window_bounds = array<i64: 784, 512>}, {pipeline_mode = #tpu.pipeline_mode<synchronous>, transform_indices = @transform_2, window_bounds = array<i64: 1, 512>}, {pipeline_mode = #tpu.pipeline_mode<synchronous>, transform_indices = @transform_3, window_bounds = array<i64: 512, 256>}, {pipeline_mode = #tpu.pipeline_mode<synchronous>, transform_indices = @transform_4, window_bounds = array<i64: 1, 256>}, {pipeline_mode = #tpu.pipeline_mode<synchronous>, transform_indices = @transform_5, window_bounds = array<i64: 256, 256>}, {pipeline_mode = #tpu.pipeline_mode<synchronous>, transform_indices = @transform_6, window_bounds = array<i64: 1, 256>}, {pipeline_mode = #tpu.pipeline_mode<synchronous>, transform_indices = @transform_7, window_bounds = array<i64: 256, 512>}, {pipeline_mode = #tpu.pipeline_mode<synchronous>, transform_indices = @transform_8, window_bounds = array<i64: 1, 512>}, {pipeline_mode = #tpu.pipeline_mode<synchronous>, transform_indices = @transform_9, window_bounds = array<i64: 512, 784>}, {pipeline_mode = #tpu.pipeline_mode<synchronous>, transform_indices = @transform_10, window_bounds = array<i64: 1, 784>}, {transform_indices = @transform_11, window_bounds = array<i64: 8, 784>}]} {
    %c0 = arith.constant 0 : index
    %c0_0 = arith.constant 0 : index
    %0 = vector.load %arg1[%c0, %c0_0] : memref<8x784xbf16, #tpu.memory_space<vmem>>, vector<8x784xbf16>
    %c0_1 = arith.constant 0 : index
    %c0_2 = arith.constant 0 : index
    %1 = vector.load %arg2[%c0_1, %c0_2] : memref<784x512xbf16, #tpu.memory_space<vmem>>, vector<784x512xbf16>
    %cst = arith.constant dense<0.000000e+00> : vector<8x512xf32>
    %2 = tpu.matmul %0, %1, %cst {dimension_numbers = #tpu.dot_dimension_numbers<[1], [0], [0], [1], [0, 0, 1, 1], [], []>} : vector<8x784xbf16>, vector<784x512xbf16>, vector<8x512xf32> -> vector<8x512xf32>
    %c0_3 = arith.constant 0 : index
    %c0_4 = arith.constant 0 : index
    %3 = vector.load %arg3[%c0_3, %c0_4] : memref<1x512xf32, #tpu.memory_space<vmem>>, vector<1x512xf32>
    %4 = vector.broadcast %3 : vector<1x512xf32> to vector<8x512xf32>
    %5 = arith.addf %2, %4 : vector<8x512xf32>
    %cst_5 = arith.constant 0.000000e+00 : f32
    %6 = vector.broadcast %cst_5 : f32 to vector<8x512xf32>
    %7 = arith.maximumf %5, %6 : vector<8x512xf32>
    %8 = arith.truncf %7 : vector<8x512xf32> to vector<8x512xbf16>
    %c0_6 = arith.constant 0 : index
    %c0_7 = arith.constant 0 : index
    %9 = vector.load %arg4[%c0_6, %c0_7] : memref<512x256xbf16, #tpu.memory_space<vmem>>, vector<512x256xbf16>
    %cst_8 = arith.constant dense<0.000000e+00> : vector<8x256xf32>
    %10 = tpu.matmul %8, %9, %cst_8 {dimension_numbers = #tpu.dot_dimension_numbers<[1], [0], [0], [1], [0, 0, 1, 1], [], []>} : vector<8x512xbf16>, vector<512x256xbf16>, vector<8x256xf32> -> vector<8x256xf32>
    %c0_9 = arith.constant 0 : index
    %c0_10 = arith.constant 0 : index
    %11 = vector.load %arg5[%c0_9, %c0_10] : memref<1x256xf32, #tpu.memory_space<vmem>>, vector<1x256xf32>
    %12 = vector.broadcast %11 : vector<1x256xf32> to vector<8x256xf32>
    %13 = arith.addf %10, %12 : vector<8x256xf32>
    %cst_11 = arith.constant 0.000000e+00 : f32
    %14 = vector.broadcast %cst_11 : f32 to vector<8x256xf32>
    %15 = arith.maximumf %13, %14 : vector<8x256xf32>
    %16 = arith.truncf %15 : vector<8x256xf32> to vector<8x256xbf16>
    %c0_12 = arith.constant 0 : index
    %c0_13 = arith.constant 0 : index
    %17 = vector.load %arg6[%c0_12, %c0_13] : memref<256x256xbf16, #tpu.memory_space<vmem>>, vector<256x256xbf16>
    %cst_14 = arith.constant dense<0.000000e+00> : vector<8x256xf32>
    %18 = tpu.matmul %16, %17, %cst_14 {dimension_numbers = #tpu.dot_dimension_numbers<[1], [0], [0], [1], [0, 0, 1, 1], [], []>} : vector<8x256xbf16>, vector<256x256xbf16>, vector<8x256xf32> -> vector<8x256xf32>
    %c0_15 = arith.constant 0 : index
    %c0_16 = arith.constant 0 : index
    %19 = vector.load %arg7[%c0_15, %c0_16] : memref<1x256xf32, #tpu.memory_space<vmem>>, vector<1x256xf32>
    %20 = vector.broadcast %19 : vector<1x256xf32> to vector<8x256xf32>
    %21 = arith.addf %18, %20 : vector<8x256xf32>
    %cst_17 = arith.constant 0.000000e+00 : f32
    %22 = vector.broadcast %cst_17 : f32 to vector<8x256xf32>
    %23 = arith.maximumf %21, %22 : vector<8x256xf32>
    %24 = arith.truncf %23 : vector<8x256xf32> to vector<8x256xbf16>
    %c0_18 = arith.constant 0 : index
    %c0_19 = arith.constant 0 : index
    %25 = vector.load %arg8[%c0_18, %c0_19] : memref<256x512xbf16, #tpu.memory_space<vmem>>, vector<256x512xbf16>
    %cst_20 = arith.constant dense<0.000000e+00> : vector<8x512xf32>
    %26 = tpu.matmul %24, %25, %cst_20 {dimension_numbers = #tpu.dot_dimension_numbers<[1], [0], [0], [1], [0, 0, 1, 1], [], []>} : vector<8x256xbf16>, vector<256x512xbf16>, vector<8x512xf32> -> vector<8x512xf32>
    %c0_21 = arith.constant 0 : index
    %c0_22 = arith.constant 0 : index
    %27 = vector.load %arg9[%c0_21, %c0_22] : memref<1x512xf32, #tpu.memory_space<vmem>>, vector<1x512xf32>
    %28 = vector.broadcast %27 : vector<1x512xf32> to vector<8x512xf32>
    %29 = arith.addf %26, %28 : vector<8x512xf32>
    %cst_23 = arith.constant 0.000000e+00 : f32
    %30 = vector.broadcast %cst_23 : f32 to vector<8x512xf32>
    %31 = arith.maximumf %29, %30 : vector<8x512xf32>
    %32 = arith.truncf %31 : vector<8x512xf32> to vector<8x512xbf16>
    %c0_24 = arith.constant 0 : index
    %c0_25 = arith.constant 0 : index
    %33 = vector.load %arg10[%c0_24, %c0_25] : memref<512x784xbf16, #tpu.memory_space<vmem>>, vector<512x784xbf16>
    %cst_26 = arith.constant dense<0.000000e+00> : vector<8x784xf32>
    %34 = tpu.matmul %32, %33, %cst_26 {dimension_numbers = #tpu.dot_dimension_numbers<[1], [0], [0], [1], [0, 0, 1, 1], [], []>} : vector<8x512xbf16>, vector<512x784xbf16>, vector<8x784xf32> -> vector<8x784xf32>
    %c0_27 = arith.constant 0 : index
    %c0_28 = arith.constant 0 : index
    %35 = vector.load %arg11[%c0_27, %c0_28] : memref<1x784xf32, #tpu.memory_space<vmem>>, vector<1x784xf32>
    %36 = vector.broadcast %35 : vector<1x784xf32> to vector<8x784xf32>
    %37 = arith.addf %34, %36 : vector<8x784xf32>
    %38 = arith.negf %37 : vector<8x784xf32>
    %39 = math.exp %38 : vector<8x784xf32>
    %cst_29 = arith.constant 1.000000e+00 : f32
    %40 = vector.broadcast %cst_29 : f32 to vector<8x784xf32>
    %41 = arith.addf %40, %39 : vector<8x784xf32>
    %42 = arith.divf %40, %41 : vector<8x784xf32>
    %43 = arith.truncf %42 : vector<8x784xf32> to vector<8x784xbf16>
    %c0_30 = arith.constant 0 : index
    %c0_31 = arith.constant 0 : index
    %44 = vector.load %arg12[%c0_30, %c0_31] : memref<8x784xbf16, #tpu.memory_space<vmem>>, vector<8x784xbf16>
    tpu.vector_store %arg12[%c0_30, %c0_31], %43 {strides = array<i32>} : memref<8x784xbf16, #tpu.memory_space<vmem>>, vector<8x784xbf16>,
    return
  }
  func.func @transform_0(%arg0: i32) -> (i32, i32) {
    %c0_i32 = arith.constant 0 : i32
    %c0_i32_0 = arith.constant 0 : i32
    return %arg0, %c0_i32 : i32, i32
  }
  func.func @transform_1(%arg0: i32) -> (i32, i32) {
    %c0_i32 = arith.constant 0 : i32
    %c0_i32_0 = arith.constant 0 : i32
    %c0_i32_1 = arith.constant 0 : i32
    return %c0_i32, %c0_i32_0 : i32, i32
  }
  func.func @transform_2(%arg0: i32) -> (i32, i32) {
    %c0_i32 = arith.constant 0 : i32
    %c0_i32_0 = arith.constant 0 : i32
    %c0_i32_1 = arith.constant 0 : i32
    return %c0_i32, %c0_i32_0 : i32, i32
  }
  func.func @transform_3(%arg0: i32) -> (i32, i32) {
    %c0_i32 = arith.constant 0 : i32
    %c0_i32_0 = arith.constant 0 : i32
    %c0_i32_1 = arith.constant 0 : i32
    return %c0_i32, %c0_i32_0 : i32, i32
  }
  func.func @transform_4(%arg0: i32) -> (i32, i32) {
    %c0_i32 = arith.constant 0 : i32
    %c0_i32_0 = arith.constant 0 : i32
    %c0_i32_1 = arith.constant 0 : i32
    return %c0_i32, %c0_i32_0 : i32, i32
  }
  func.func @transform_5(%arg0: i32) -> (i32, i32) {
    %c0_i32 = arith.constant 0 : i32
    %c0_i32_0 = arith.constant 0 : i32
    %c0_i32_1 = arith.constant 0 : i32
    return %c0_i32, %c0_i32_0 : i32, i32
  }
  func.func @transform_6(%arg0: i32) -> (i32, i32) {
    %c0_i32 = arith.constant 0 : i32
    %c0_i32_0 = arith.constant 0 : i32
    %c0_i32_1 = arith.constant 0 : i32
    return %c0_i32, %c0_i32_0 : i32, i32
  }
  func.func @transform_7(%arg0: i32) -> (i32, i32) {
    %c0_i32 = arith.constant 0 : i32
    %c0_i32_0 = arith.constant 0 : i32
    %c0_i32_1 = arith.constant 0 : i32
    return %c0_i32, %c0_i32_0 : i32, i32
  }
  func.func @transform_8(%arg0: i32) -> (i32, i32) {
    %c0_i32 = arith.constant 0 : i32
    %c0_i32_0 = arith.constant 0 : i32
    %c0_i32_1 = arith.constant 0 : i32
    return %c0_i32, %c0_i32_0 : i32, i32
  }
  func.func @transform_9(%arg0: i32) -> (i32, i32) {
    %c0_i32 = arith.constant 0 : i32
    %c0_i32_0 = arith.constant 0 : i32
    %c0_i32_1 = arith.constant 0 : i32
    return %c0_i32, %c0_i32_0 : i32, i32
  }
  func.func @transform_10(%arg0: i32) -> (i32, i32) {
    %c0_i32 = arith.constant 0 : i32
    %c0_i32_0 = arith.constant 0 : i32
    %c0_i32_1 = arith.constant 0 : i32
    return %c0_i32, %c0_i32_0 : i32, i32
  }
  func.func @transform_11(%arg0: i32) -> (i32, i32) {
    %c0_i32 = arith.constant 0 : i32
    %c0_i32_0 = arith.constant 0 : i32
    return %arg0, %c0_i32 : i32, i32
  }
}

</mosaic_0001>

<llo_original>
// kernel: tpu_custom_call.1
$region0: #{tpu_custom_call.1}
  #allocation0 [shape = 'u32[]', space=smem, size = 0x4, offset = 0x4, fixed_abs, tag = 'smem constant byte address 0x4 - core index']
  #allocation1 [shape = 'u32[144,128]{1,0:T(1,128)}', space=vmem, size = 0x12000, scoped, tag = 'internal scratch']
  %s0 = inlined_call_operand.vmem [shape: bf16[8,784], index: 0, kind: input, shape index: {}]
  %s1 = inlined_call_operand.vmem [shape: bf16[784,512], index: 1, kind: input, shape index: {}]
  %s2 = inlined_call_operand.vmem [shape: f32[1,512], index: 2, kind: input, shape index: {}]
  %s3 = inlined_call_operand.vmem [shape: bf16[512,256], index: 3, kind: input, shape index: {}]
  %s4 = inlined_call_operand.vmem [shape: f32[1,256], index: 4, kind: input, shape index: {}]
  %s5 = inlined_call_operand.vmem [shape: bf16[256,256], index: 5, kind: input, shape index: {}]
  %s6 = inlined_call_operand.vmem [shape: f32[1,256], index: 6, kind: input, shape index: {}]
  %s7 = inlined_call_operand.vmem [shape: bf16[256,512], index: 7, kind: input, shape index: {}]
  %s8 = inlined_call_operand.vmem [shape: f32[1,512], index: 8, kind: input, shape index: {}]
  %s9 = inlined_call_operand.vmem [shape: bf16[512,784], index: 9, kind: input, shape index: {}]
  %s10 = inlined_call_operand.vmem [shape: f32[1,784], index: 10, kind: input, shape index: {}]
  %s11 = inlined_call_operand.hbm [shape: bf16[8,784], index: 11, kind: output, shape index: {}]
  %s12 = sld [smem:[#allocation0]]
  $region54: #{tpu_custom_call.1} parent=0
    _
  %s14 = ssub.s32 1, %s12
  %s15 = scalar_select 0, %s14, %s12
  $region1: #{tpu_custom_call.1} parent=0
    #allocation2 [shape = 'u8[14336]{0}', space=vmem, size = 0x3800, scoped, tag = 'output window, operand 0, single buffered']
    #allocation3 [shape = 's32[1]{0}', space=sflag, size = 0x4, scoped, tag = 'scoped memory for tpu_custom_call.1']
    %16 = vsyncpa [#allocation3], 0
    // Predicated region
    $region2: #{tpu_custom_call.1} parent=1 // pred_check
      _
    $region3: #{tpu_custom_call.1} parent=1 // pred_check_branch
      %18 = sbr.rel (0) target = $region5
    $region4: #{tpu_custom_call.1} parent=1 // pred_region
      _
    $region5: #{tpu_custom_call.1} parent=1 // pred_fallthru
      _
    // Predicated region
    $region6: #{tpu_custom_call.1} parent=1 // pred_check
      _
    $region7: #{tpu_custom_call.1} parent=1 // pred_check_branch
      %20 = sbr.rel (0) target = $region9
    $region8: #{tpu_custom_call.1} parent=1 // pred_region
      _
    $region9: #{tpu_custom_call.1} parent=1 // pred_fallthru
      _
    // Predicated region
    $region10: #{tpu_custom_call.1} parent=1 // pred_check
      _
    $region11: #{tpu_custom_call.1} parent=1 // pred_check_branch
      %22 = sbr.rel (0) target = $region13
    $region12: #{tpu_custom_call.1} parent=1 // pred_region
      _
    $region13: #{tpu_custom_call.1} parent=1 // pred_fallthru
      _
    // Predicated region
    $region14: #{tpu_custom_call.1} parent=1 // pred_check
      _
    $region15: #{tpu_custom_call.1} parent=1 // pred_check_branch
      %24 = sbr.rel (0) target = $region17
    $region16: #{tpu_custom_call.1} parent=1 // pred_region
      _
    $region17: #{tpu_custom_call.1} parent=1 // pred_fallthru
      _
    // Predicated region
    $region18: #{tpu_custom_call.1} parent=1 // pred_check
      _
    $region19: #{tpu_custom_call.1} parent=1 // pred_check_branch
      %26 = sbr.rel (0) target = $region21
    $region20: #{tpu_custom_call.1} parent=1 // pred_region
      _
    $region21: #{tpu_custom_call.1} parent=1 // pred_fallthru
      _
    // Predicated region
    $region22: #{tpu_custom_call.1} parent=1 // pred_check
      _
    $region23: #{tpu_custom_call.1} parent=1 // pred_check_branch
      %28 = sbr.rel (0) target = $region25
    $region24: #{tpu_custom_call.1} parent=1 // pred_region
      _
    $region25: #{tpu_custom_call.1} parent=1 // pred_fallthru
      _
    // Predicated region
    $region26: #{tpu_custom_call.1} parent=1 // pred_check
      _
    $region27: #{tpu_custom_call.1} parent=1 // pred_check_branch
      %30 = sbr.rel (0) target = $region29
    $region28: #{tpu_custom_call.1} parent=1 // pred_region
      _
    $region29: #{tpu_custom_call.1} parent=1 // pred_fallthru
      _
    // Predicated region
    $region30: #{tpu_custom_call.1} parent=1 // pred_check
      _
    $region31: #{tpu_custom_call.1} parent=1 // pred_check_branch
      %32 = sbr.rel (0) target = $region33
    $region32: #{tpu_custom_call.1} parent=1 // pred_region
      _
    $region33: #{tpu_custom_call.1} parent=1 // pred_fallthru
      _
    // Predicated region
    $region34: #{tpu_custom_call.1} parent=1 // pred_check
      _
    $region35: #{tpu_custom_call.1} parent=1 // pred_check_branch
      %34 = sbr.rel (0) target = $region37
    $region36: #{tpu_custom_call.1} parent=1 // pred_region
      _
    $region37: #{tpu_custom_call.1} parent=1 // pred_fallthru
      _
    // Predicated region
    $region38: #{tpu_custom_call.1} parent=1 // pred_check
      _
    $region39: #{tpu_custom_call.1} parent=1 // pred_check_branch
      %36 = sbr.rel (0) target = $region41
    $region40: #{tpu_custom_call.1} parent=1 // pred_region
      _
    $region41: #{tpu_custom_call.1} parent=1 // pred_fallthru
      _
    // Predicated region
    $region42: #{tpu_custom_call.1} parent=1 // pred_check
      _
    $region43: #{tpu_custom_call.1} parent=1 // pred_check_branch
      %38 = sbr.rel (0) target = $region45
    $region44: #{tpu_custom_call.1} parent=1 // pred_region
      _
    $region45: #{tpu_custom_call.1} parent=1 // pred_fallthru
      _
    %v40 = vld [vmem:[%s0] sm:$0xff]
    %v41 = vld [vmem:[%s0 + $0x8] sm:$0xff]
    %v42 = vld [vmem:[%s0 + $0x10] sm:$0xff]
    %v43 = vld [vmem:[%s0 + $0x18] sm:$0xf]
    %v44 = vld [vmem:[%s1] sm:$0xff]
    %v45 = vld [vmem:[%s1 + $0x8] sm:$0xff]
    %v46 = vld [vmem:[%s1 + $0x10] sm:$0xff]
    %v47 = vld [vmem:[%s1 + $0x18] sm:$0xff]
    %v48 = vld [vmem:[%s1 + $0x20] sm:$0xff]
    %v49 = vld [vmem:[%s1 + $0x28] sm:$0xff]
    %v50 = vld [vmem:[%s1 + $0x30] sm:$0xff]
    %v51 = vld [vmem:[%s1 + $0x38] sm:$0xff]
    %v52 = vld [vmem:[%s1 + $0x40] sm:$0xff]
    %v53 = vld [vmem:[%s1 + $0x48] sm:$0xff]
    %v54 = vld [vmem:[%s1 + $0x50] sm:$0xff]
    %v55 = vld [vmem:[%s1 + $0x58] sm:$0xff]
    %v56 = vld [vmem:[%s1 + $0x60] sm:$0xff]
    %v57 = vld [vmem:[%s1 + $0x68] sm:$0xff]
    %v58 = vld [vmem:[%s1 + $0x70] sm:$0xff]
    %v59 = vld [vmem:[%s1 + $0x78] sm:$0xff]
    %v60 = vld [vmem:[%s1 + $0x80] sm:$0xff]
    %v61 = vld [vmem:[%s1 + $0x88] sm:$0xff]
    %v62 = vld [vmem:[%s1 + $0x90] sm:$0xff]
    %v63 = vld [vmem:[%s1 + $0x98] sm:$0xff]
    %v64 = vld [vmem:[%s1 + $0xa0] sm:$0xff]
    %v65 = vld [vmem:[%s1 + $0xa8] sm:$0xff]
    %v66 = vld [vmem:[%s1 + $0xb0] sm:$0xff]
    %v67 = vld [vmem:[%s1 + $0xb8] sm:$0xff]
    %v68 = vld [vmem:[%s1 + $0xc0] sm:$0xff]
    %v69 = vld [vmem:[%s1 + $0xc8] sm:$0xff]
    %v70 = vld [vmem:[%s1 + $0xd0] sm:$0xff]
    %v71 = vld [vmem:[%s1 + $0xd8] sm:$0xff]
    %v72 = vld [vmem:[%s1 + $0xe0] sm:$0xff]
    %v73 = vld [vmem:[%s1 + $0xe8] sm:$0xff]
    %v74 = vld [vmem:[%s1 + $0xf0] sm:$0xff]
    %v75 = vld [vmem:[%s1 + $0xf8] sm:$0xff]
    %v76 = vld [vmem:[%s1 + $0x100] sm:$0xff]
    %v77 = vld [vmem:[%s1 + $0x108] sm:$0xff]
    %v78 = vld [vmem:[%s1 + $0x110] sm:$0xff]
    %v79 = vld [vmem:[%s1 + $0x118] sm:$0xff]
    %v80 = vld [vmem:[%s1 + $0x120] sm:$0xff]
    %v81 = vld [vmem:[%s1 + $0x128] sm:$0xff]
    %v82 = vld [vmem:[%s1 + $0x130] sm:$0xff]
    %v83 = vld [vmem:[%s1 + $0x138] sm:$0xff]
    %v84 = vld [vmem:[%s1 + $0x140] sm:$0xff]
    %v85 = vld [vmem:[%s1 + $0x148] sm:$0xff]
    %v86 = vld [vmem:[%s1 + $0x150] sm:$0xff]
    %v87 = vld [vmem:[%s1 + $0x158] sm:$0xff]
    %v88 = vld [vmem:[%s1 + $0x160] sm:$0xff]
    %v89 = vld [vmem:[%s1 + $0x168] sm:$0xff]
    %v90 = vld [vmem:[%s1 + $0x170] sm:$0xff]
    %v91 = vld [vmem:[%s1 + $0x178] sm:$0xff]
    %v92 = vld [vmem:[%s1 + $0x180] sm:$0xff]
    %v93 = vld [vmem:[%s1 + $0x188] sm:$0xff]
    %v94 = vld [vmem:[%s1 + $0x190] sm:$0xff]
    %v95 = vld [vmem:[%s1 + $0x198] sm:$0xff]
    %v96 = vld [vmem:[%s1 + $0x1a0] sm:$0xff]
    %v97 = vld [vmem:[%s1 + $0x1a8] sm:$0xff]
    %v98 = vld [vmem:[%s1 + $0x1b0] sm:$0xff]
    %v99 = vld [vmem:[%s1 + $0x1b8] sm:$0xff]
    %v100 = vld [vmem:[%s1 + $0x1c0] sm:$0xff]
    %v101 = vld [vmem:[%s1 + $0x1c8] sm:$0xff]
    %v102 = vld [vmem:[%s1 + $0x1d0] sm:$0xff]
    %v103 = vld [vmem:[%s1 + $0x1d8] sm:$0xff]
    %v104 = vld [vmem:[%s1 + $0x1e0] sm:$0xff]
    %v105 = vld [vmem:[%s1 + $0x1e8] sm:$0xff]
    %v106 = vld [vmem:[%s1 + $0x1f0] sm:$0xff]
    %v107 = vld [vmem:[%s1 + $0x1f8] sm:$0xff]
    %v108 = vld [vmem:[%s1 + $0x200] sm:$0xff]
    %v109 = vld [vmem:[%s1 + $0x208] sm:$0xff]
    %v110 = vld [vmem:[%s1 + $0x210] sm:$0xff]
    %v111 = vld [vmem:[%s1 + $0x218] sm:$0xff]
    %v112 = vld [vmem:[%s1 + $0x220] sm:$0xff]
    %v113 = vld [vmem:[%s1 + $0x228] sm:$0xff]
    %v114 = vld [vmem:[%s1 + $0x230] sm:$0xff]
    %v115 = vld [vmem:[%s1 + $0x238] sm:$0xff]
    %v116 = vld [vmem:[%s1 + $0x240] sm:$0xff]
    %v117 = vld [vmem:[%s1 + $0x248] sm:$0xff]
    %v118 = vld [vmem:[%s1 + $0x250] sm:$0xff]
    %v119 = vld [vmem:[%s1 + $0x258] sm:$0xff]
    %v120 = vld [vmem:[%s1 + $0x260] sm:$0xff]
    %v121 = vld [vmem:[%s1 + $0x268] sm:$0xff]
    %v122 = vld [vmem:[%s1 + $0x270] sm:$0xff]
    %v123 = vld [vmem:[%s1 + $0x278] sm:$0xff]
    %v124 = vld [vmem:[%s1 + $0x280] sm:$0xff]
    %v125 = vld [vmem:[%s1 + $0x288] sm:$0xff]
    %v126 = vld [vmem:[%s1 + $0x290] sm:$0xff]
    %v127 = vld [vmem:[%s1 + $0x298] sm:$0xff]
    %v128 = vld [vmem:[%s1 + $0x2a0] sm:$0xff]
    %v129 = vld [vmem:[%s1 + $0x2a8] sm:$0xff]
    %v130 = vld [vmem:[%s1 + $0x2b0] sm:$0xff]
    %v131 = vld [vmem:[%s1 + $0x2b8] sm:$0xff]
    %v132 = vld [vmem:[%s1 + $0x2c0] sm:$0xff]
    %v133 = vld [vmem:[%s1 + $0x2c8] sm:$0xff]
    %v134 = vld [vmem:[%s1 + $0x2d0] sm:$0xff]
    %v135 = vld [vmem:[%s1 + $0x2d8] sm:$0xff]
    %v136 = vld [vmem:[%s1 + $0x2e0] sm:$0xff]
    %v137 = vld [vmem:[%s1 + $0x2e8] sm:$0xff]
    %v138 = vld [vmem:[%s1 + $0x2f0] sm:$0xff]
    %v139 = vld [vmem:[%s1 + $0x2f8] sm:$0xff]
    %v140 = vld [vmem:[%s1 + $0x300] sm:$0xff]
    %v141 = vld [vmem:[%s1 + $0x308] sm:$0xff]
    %v142 = vld [vmem:[%s1 + $0x310] sm:$0xff]
    %v143 = vld [vmem:[%s1 + $0x318] sm:$0xff]
    %v144 = vld [vmem:[%s1 + $0x320] sm:$0xff]
    %v145 = vld [vmem:[%s1 + $0x328] sm:$0xff]
    %v146 = vld [vmem:[%s1 + $0x330] sm:$0xff]
    %v147 = vld [vmem:[%s1 + $0x338] sm:$0xff]
    %v148 = vld [vmem:[%s1 + $0x340] sm:$0xff]
    %v149 = vld [vmem:[%s1 + $0x348] sm:$0xff]
    %v150 = vld [vmem:[%s1 + $0x350] sm:$0xff]
    %v151 = vld [vmem:[%s1 + $0x358] sm:$0xff]
    %v152 = vld [vmem:[%s1 + $0x360] sm:$0xff]
    %v153 = vld [vmem:[%s1 + $0x368] sm:$0xff]
    %v154 = vld [vmem:[%s1 + $0x370] sm:$0xff]
    %v155 = vld [vmem:[%s1 + $0x378] sm:$0xff]
    %v156 = vld [vmem:[%s1 + $0x380] sm:$0xff]
    %v157 = vld [vmem:[%s1 + $0x388] sm:$0xff]
    %v158 = vld [vmem:[%s1 + $0x390] sm:$0xff]
    %v159 = vld [vmem:[%s1 + $0x398] sm:$0xff]
    %v160 = vld [vmem:[%s1 + $0x3a0] sm:$0xff]
    %v161 = vld [vmem:[%s1 + $0x3a8] sm:$0xff]
    %v162 = vld [vmem:[%s1 + $0x3b0] sm:$0xff]
    %v163 = vld [vmem:[%s1 + $0x3b8] sm:$0xff]
    %v164 = vld [vmem:[%s1 + $0x3c0] sm:$0xff]
    %v165 = vld [vmem:[%s1 + $0x3c8] sm:$0xff]
    %v166 = vld [vmem:[%s1 + $0x3d0] sm:$0xff]
    %v167 = vld [vmem:[%s1 + $0x3d8] sm:$0xff]
    %v168 = vld [vmem:[%s1 + $0x3e0] sm:$0xff]
    %v169 = vld [vmem:[%s1 + $0x3e8] sm:$0xff]
    %v170 = vld [vmem:[%s1 + $0x3f0] sm:$0xff]
    %v171 = vld [vmem:[%s1 + $0x3f8] sm:$0xff]
    %v172 = vld [vmem:[%s1 + $0x400] sm:$0xff]
    %v173 = vld [vmem:[%s1 + $0x408] sm:$0xff]
    %v174 = vld [vmem:[%s1 + $0x410] sm:$0xff]
    %v175 = vld [vmem:[%s1 + $0x418] sm:$0xff]
    %v176 = vld [vmem:[%s1 + $0x420] sm:$0xff]
    %v177 = vld [vmem:[%s1 + $0x428] sm:$0xff]
    %v178 = vld [vmem:[%s1 + $0x430] sm:$0xff]
    %v179 = vld [vmem:[%s1 + $0x438] sm:$0xff]
    %v180 = vld [vmem:[%s1 + $0x440] sm:$0xff]
    %v181 = vld [vmem:[%s1 + $0x448] sm:$0xff]
    %v182 = vld [vmem:[%s1 + $0x450] sm:$0xff]
    %v183 = vld [vmem:[%s1 + $0x458] sm:$0xff]
    %v184 = vld [vmem:[%s1 + $0x460] sm:$0xff]
    %v185 = vld [vmem:[%s1 + $0x468] sm:$0xff]
    %v186 = vld [vmem:[%s1 + $0x470] sm:$0xff]
    %v187 = vld [vmem:[%s1 + $0x478] sm:$0xff]
    %v188 = vld [vmem:[%s1 + $0x480] sm:$0xff]
    %v189 = vld [vmem:[%s1 + $0x488] sm:$0xff]
    %v190 = vld [vmem:[%s1 + $0x490] sm:$0xff]
    %v191 = vld [vmem:[%s1 + $0x498] sm:$0xff]
    %v192 = vld [vmem:[%s1 + $0x4a0] sm:$0xff]
    %v193 = vld [vmem:[%s1 + $0x4a8] sm:$0xff]
    %v194 = vld [vmem:[%s1 + $0x4b0] sm:$0xff]
    %v195 = vld [vmem:[%s1 + $0x4b8] sm:$0xff]
    %v196 = vld [vmem:[%s1 + $0x4c0] sm:$0xff]
    %v197 = vld [vmem:[%s1 + $0x4c8] sm:$0xff]
    %v198 = vld [vmem:[%s1 + $0x4d0] sm:$0xff]
    %v199 = vld [vmem:[%s1 + $0x4d8] sm:$0xff]
    %v200 = vld [vmem:[%s1 + $0x4e0] sm:$0xff]
    %v201 = vld [vmem:[%s1 + $0x4e8] sm:$0xff]
    %v202 = vld [vmem:[%s1 + $0x4f0] sm:$0xff]
    %v203 = vld [vmem:[%s1 + $0x4f8] sm:$0xff]
    %v204 = vld [vmem:[%s1 + $0x500] sm:$0xff]
    %v205 = vld [vmem:[%s1 + $0x508] sm:$0xff]
    %v206 = vld [vmem:[%s1 + $0x510] sm:$0xff]
    %v207 = vld [vmem:[%s1 + $0x518] sm:$0xff]
    %v208 = vld [vmem:[%s1 + $0x520] sm:$0xff]
    %v209 = vld [vmem:[%s1 + $0x528] sm:$0xff]
    %v210 = vld [vmem:[%s1 + $0x530] sm:$0xff]
    %v211 = vld [vmem:[%s1 + $0x538] sm:$0xff]
    %v212 = vld [vmem:[%s1 + $0x540] sm:$0xff]
    %v213 = vld [vmem:[%s1 + $0x548] sm:$0xff]
    %v214 = vld [vmem:[%s1 + $0x550] sm:$0xff]
    %v215 = vld [vmem:[%s1 + $0x558] sm:$0xff]
    %v216 = vld [vmem:[%s1 + $0x560] sm:$0xff]
    %v217 = vld [vmem:[%s1 + $0x568] sm:$0xff]
    %v218 = vld [vmem:[%s1 + $0x570] sm:$0xff]
    %v219 = vld [vmem:[%s1 + $0x578] sm:$0xff]
    %v220 = vld [vmem:[%s1 + $0x580] sm:$0xff]
    %v221 = vld [vmem:[%s1 + $0x588] sm:$0xff]
    %v222 = vld [vmem:[%s1 + $0x590] sm:$0xff]
    %v223 = vld [vmem:[%s1 + $0x598] sm:$0xff]
    %v224 = vld [vmem:[%s1 + $0x5a0] sm:$0xff]
    %v225 = vld [vmem:[%s1 + $0x5a8] sm:$0xff]
    %v226 = vld [vmem:[%s1 + $0x5b0] sm:$0xff]
    %v227 = vld [vmem:[%s1 + $0x5b8] sm:$0xff]
    %v228 = vld [vmem:[%s1 + $0x5c0] sm:$0xff]
    %v229 = vld [vmem:[%s1 + $0x5c8] sm:$0xff]
    %v230 = vld [vmem:[%s1 + $0x5d0] sm:$0xff]
    %v231 = vld [vmem:[%s1 + $0x5d8] sm:$0xff]
    %v232 = vld [vmem:[%s1 + $0x5e0] sm:$0xff]
    %v233 = vld [vmem:[%s1 + $0x5e8] sm:$0xff]
    %v234 = vld [vmem:[%s1 + $0x5f0] sm:$0xff]
    %v235 = vld [vmem:[%s1 + $0x5f8] sm:$0xff]
    %v236 = vld [vmem:[%s1 + $0x600] sm:$0xff]
    %v237 = vld [vmem:[%s1 + $0x608] sm:$0xff]
    %v238 = vld [vmem:[%s1 + $0x610] sm:$0xff]
    %v239 = vld [vmem:[%s1 + $0x618] sm:$0xff]
    %v240 = vld [vmem:[%s2] sm:$0xf]
    %v242 = vlaneseq
    %v243 = vshrl.u32 %v242, 7
    %v244 = vsub.s32 0, %v243
    %v245 = vrot.slane %v240, %v244
    %v246 = vlaneseq
    %v247 = vshrl.u32 %v246, 7
    %v248 = vsub.s32 1, %v247
    %v249 = vrot.slane %v240, %v248
    %v250 = vlaneseq
    %v251 = vshrl.u32 %v250, 7
    %v252 = vsub.s32 2, %v251
    %v253 = vrot.slane %v240, %v252
    %v254 = vlaneseq
    %v255 = vshrl.u32 %v254, 7
    %v256 = vsub.s32 3, %v255
    %v257 = vrot.slane %v240, %v256
    %v266 = vunpack.c.l.b16 %v40
    %v267 = vunpack.c.h.b16 %v40
    %v268 = vunpack.c.l.b16 %v41
    %v269 = vunpack.c.h.b16 %v41
    %v270 = vunpack.c.l.b16 %v42
    %v271 = vunpack.c.h.b16 %v42
    %v272 = vunpack.c.l.b16 %v43
    %v273 = vpack.c.b16 %v266, %v266
    %v274 = vpack.c.b16 %v267, %v267
    %v275 = vpack.c.b16 %v268, %v268
    %v276 = vpack.c.b16 %v269, %v269
    %v277 = vpack.c.b16 %v270, %v270
    %v278 = vpack.c.b16 %v271, %v271
    %v279 = vpack.c.b16 %v272, %v272
    %v482 = vunpack.c.l.b16 %v44
    %v483 = vunpack.c.h.b16 %v44
    %v484 = vunpack.c.l.b16 %v45
    %v485 = vunpack.c.h.b16 %v45
    %v486 = vunpack.c.l.b16 %v46
    %v487 = vunpack.c.h.b16 %v46
    %v488 = vunpack.c.l.b16 %v47
    %v489 = vunpack.c.h.b16 %v47
    %v490 = vunpack.c.l.b16 %v48
    %v491 = vunpack.c.h.b16 %v48
    %v492 = vunpack.c.l.b16 %v49
    %v493 = vunpack.c.h.b16 %v49
    %v494 = vunpack.c.l.b16 %v50
    %v495 = vunpack.c.h.b16 %v50
    %v496 = vunpack.c.l.b16 %v51
    %v497 = vunpack.c.h.b16 %v51
    %v498 = vunpack.c.l.b16 %v52
    %v499 = vunpack.c.h.b16 %v52
    %v500 = vunpack.c.l.b16 %v53
    %v501 = vunpack.c.h.b16 %v53
    %v502 = vunpack.c.l.b16 %v54
    %v503 = vunpack.c.h.b16 %v54
    %v504 = vunpack.c.l.b16 %v55
    %v505 = vunpack.c.h.b16 %v55
    %v506 = vunpack.c.l.b16 %v56
    %v507 = vunpack.c.h.b16 %v56
    %v508 = vunpack.c.l.b16 %v57
    %v509 = vunpack.c.h.b16 %v57
    %v510 = vunpack.c.l.b16 %v58
    %v511 = vunpack.c.h.b16 %v58
    %v512 = vunpack.c.l.b16 %v59
    %v513 = vunpack.c.h.b16 %v59
    %v514 = vunpack.c.l.b16 %v60
    %v515 = vunpack.c.h.b16 %v60
    %v516 = vunpack.c.l.b16 %v61
    %v517 = vunpack.c.h.b16 %v61
    %v518 = vunpack.c.l.b16 %v62
    %v519 = vunpack.c.h.b16 %v62
    %v520 = vunpack.c.l.b16 %v63
    %v521 = vunpack.c.h.b16 %v63
    %v522 = vunpack.c.l.b16 %v64
    %v523 = vunpack.c.h.b16 %v64
    %v524 = vunpack.c.l.b16 %v65
    %v525 = vunpack.c.h.b16 %v65
    %v526 = vunpack.c.l.b16 %v66
    %v527 = vunpack.c.h.b16 %v66
    %v528 = vunpack.c.l.b16 %v67
    %v529 = vunpack.c.h.b16 %v67
    %v530 = vunpack.c.l.b16 %v68
    %v531 = vunpack.c.h.b16 %v68
    %v532 = vunpack.c.l.b16 %v69
    %v533 = vunpack.c.h.b16 %v69
    %v534 = vunpack.c.l.b16 %v70
    %v535 = vunpack.c.h.b16 %v70
    %v536 = vunpack.c.l.b16 %v71
    %v537 = vunpack.c.h.b16 %v71
    %v538 = vunpack.c.l.b16 %v72
    %v539 = vunpack.c.h.b16 %v72
    %v540 = vunpack.c.l.b16 %v73
    %v541 = vunpack.c.h.b16 %v73
    %v542 = vunpack.c.l.b16 %v74
    %v543 = vunpack.c.h.b16 %v74
    %v544 = vunpack.c.l.b16 %v75
    %v545 = vunpack.c.h.b16 %v75
    %v546 = vunpack.c.l.b16 %v76
    %v547 = vunpack.c.h.b16 %v76
    %v548 = vunpack.c.l.b16 %v77
    %v549 = vunpack.c.h.b16 %v77
    %v550 = vunpack.c.l.b16 %v78
    %v551 = vunpack.c.h.b16 %v78
    %v552 = vunpack.c.l.b16 %v79
    %v553 = vunpack.c.h.b16 %v79
    %v554 = vunpack.c.l.b16 %v80
    %v555 = vunpack.c.h.b16 %v80
    %v556 = vunpack.c.l.b16 %v81
    %v557 = vunpack.c.h.b16 %v81
    %v558 = vunpack.c.l.b16 %v82
    %v559 = vunpack.c.h.b16 %v82
    %v560 = vunpack.c.l.b16 %v83
    %v561 = vunpack.c.h.b16 %v83
    %v562 = vunpack.c.l.b16 %v84
    %v563 = vunpack.c.h.b16 %v84
    %v564 = vunpack.c.l.b16 %v85
    %v565 = vunpack.c.h.b16 %v85
    %v566 = vunpack.c.l.b16 %v86
    %v567 = vunpack.c.h.b16 %v86
    %v568 = vunpack.c.l.b16 %v87
    %v569 = vunpack.c.h.b16 %v87
    %v570 = vunpack.c.l.b16 %v88
    %v571 = vunpack.c.h.b16 %v88
    %v572 = vunpack.c.l.b16 %v89
    %v573 = vunpack.c.h.b16 %v89
    %v574 = vunpack.c.l.b16 %v90
    %v575 = vunpack.c.h.b16 %v90
    %v576 = vunpack.c.l.b16 %v91
    %v577 = vunpack.c.h.b16 %v91
    %v578 = vunpack.c.l.b16 %v92
    %v579 = vunpack.c.h.b16 %v92
    %v580 = vunpack.c.l.b16 %v93
    %v581 = vunpack.c.h.b16 %v93
    %v582 = vunpack.c.l.b16 %v94
    %v583 = vunpack.c.h.b16 %v94
    %v584 = vunpack.c.l.b16 %v95
    %v585 = vunpack.c.h.b16 %v95
    %v586 = vunpack.c.l.b16 %v96
    %v587 = vunpack.c.h.b16 %v96
    %v588 = vunpack.c.l.b16 %v97
    %v589 = vunpack.c.h.b16 %v97
    %v590 = vunpack.c.l.b16 %v98
    %v591 = vunpack.c.h.b16 %v98
    %v592 = vunpack.c.l.b16 %v99
    %v593 = vunpack.c.h.b16 %v99
    %v594 = vunpack.c.l.b16 %v100
    %v595 = vunpack.c.h.b16 %v100
    %v596 = vunpack.c.l.b16 %v101
    %v597 = vunpack.c.h.b16 %v101
    %v598 = vunpack.c.l.b16 %v102
    %v599 = vunpack.c.h.b16 %v102
    %v600 = vunpack.c.l.b16 %v103
    %v601 = vunpack.c.h.b16 %v103
    %v602 = vunpack.c.l.b16 %v104
    %v603 = vunpack.c.h.b16 %v104
    %v604 = vunpack.c.l.b16 %v105
    %v605 = vunpack.c.h.b16 %v105
    %v606 = vunpack.c.l.b16 %v106
    %v607 = vunpack.c.h.b16 %v106
    %v608 = vunpack.c.l.b16 %v107
    %v609 = vunpack.c.h.b16 %v107
    %v610 = vunpack.c.l.b16 %v108
    %v611 = vunpack.c.h.b16 %v108
    %v612 = vunpack.c.l.b16 %v109
    %v613 = vunpack.c.h.b16 %v109
    %v614 = vunpack.c.l.b16 %v110
    %v615 = vunpack.c.h.b16 %v110
    %v616 = vunpack.c.l.b16 %v111
    %v617 = vunpack.c.h.b16 %v111
    %v618 = vunpack.c.l.b16 %v112
    %v619 = vunpack.c.h.b16 %v112
    %v620 = vunpack.c.l.b16 %v113
    %v621 = vunpack.c.h.b16 %v113
    %v622 = vunpack.c.l.b16 %v114
    %v623 = vunpack.c.h.b16 %v114
    %v624 = vunpack.c.l.b16 %v115
    %v625 = vunpack.c.h.b16 %v115
    %v626 = vunpack.c.l.b16 %v116
    %v627 = vunpack.c.h.b16 %v116
    %v628 = vunpack.c.l.b16 %v117
    %v629 = vunpack.c.h.b16 %v117
    %v630 = vunpack.c.l.b16 %v118
    %v631 = vunpack.c.h.b16 %v118
    %v632 = vunpack.c.l.b16 %v119
    %v633 = vunpack.c.h.b16 %v119
    %v634 = vunpack.c.l.b16 %v120
    %v635 = vunpack.c.h.b16 %v120
    %v636 = vunpack.c.l.b16 %v121
    %v637 = vunpack.c.h.b16 %v121
    %v638 = vunpack.c.l.b16 %v122
    %v639 = vunpack.c.h.b16 %v122
    %v640 = vunpack.c.l.b16 %v123
    %v641 = vunpack.c.h.b16 %v123
    %v642 = vunpack.c.l.b16 %v124
    %v643 = vunpack.c.h.b16 %v124
    %v644 = vunpack.c.l.b16 %v125
    %v645 = vunpack.c.h.b16 %v125
    %v646 = vunpack.c.l.b16 %v126
    %v647 = vunpack.c.h.b16 %v126
    %v648 = vunpack.c.l.b16 %v127
    %v649 = vunpack.c.h.b16 %v127
    %v650 = vunpack.c.l.b16 %v128
    %v651 = vunpack.c.h.b16 %v128
    %v652 = vunpack.c.l.b16 %v129
    %v653 = vunpack.c.h.b16 %v129
    %v654 = vunpack.c.l.b16 %v130
    %v655 = vunpack.c.h.b16 %v130
    %v656 = vunpack.c.l.b16 %v131
    %v657 = vunpack.c.h.b16 %v131
    %v658 = vunpack.c.l.b16 %v132
    %v659 = vunpack.c.h.b16 %v132
    %v660 = vunpack.c.l.b16 %v133
    %v661 = vunpack.c.h.b16 %v133
    %v662 = vunpack.c.l.b16 %v134
    %v663 = vunpack.c.h.b16 %v134
    %v664 = vunpack.c.l.b16 %v135
    %v665 = vunpack.c.h.b16 %v135
    %v666 = vunpack.c.l.b16 %v136
    %v667 = vunpack.c.h.b16 %v136
    %v668 = vunpack.c.l.b16 %v137
    %v669 = vunpack.c.h.b16 %v137
    %v670 = vunpack.c.l.b16 %v138
    %v671 = vunpack.c.h.b16 %v138
    %v672 = vunpack.c.l.b16 %v139
    %v673 = vunpack.c.h.b16 %v139
    %v674 = vunpack.c.l.b16 %v140
    %v675 = vunpack.c.h.b16 %v140
    %v676 = vunpack.c.l.b16 %v141
    %v677 = vunpack.c.h.b16 %v141
    %v678 = vunpack.c.l.b16 %v142
    %v679 = vunpack.c.h.b16 %v142
    %v680 = vunpack.c.l.b16 %v143
    %v681 = vunpack.c.h.b16 %v143
    %v682 = vunpack.c.l.b16 %v144
    %v683 = vunpack.c.h.b16 %v144
    %v684 = vunpack.c.l.b16 %v145
    %v685 = vunpack.c.h.b16 %v145
    %v686 = vunpack.c.l.b16 %v146
    %v687 = vunpack.c.h.b16 %v146
    %v688 = vunpack.c.l.b16 %v147
    %v689 = vunpack.c.h.b16 %v147
    %v690 = vunpack.c.l.b16 %v148
    %v691 = vunpack.c.h.b16 %v148
    %v692 = vunpack.c.l.b16 %v149
    %v693 = vunpack.c.h.b16 %v149
    %v694 = vunpack.c.l.b16 %v150
    %v695 = vunpack.c.h.b16 %v150
    %v696 = vunpack.c.l.b16 %v151
    %v697 = vunpack.c.h.b16 %v151
    %v698 = vunpack.c.l.b16 %v152
    %v699 = vunpack.c.h.b16 %v152
    %v700 = vunpack.c.l.b16 %v153
    %v701 = vunpack.c.h.b16 %v153
    %v702 = vunpack.c.l.b16 %v154
    %v703 = vunpack.c.h.b16 %v154
    %v704 = vunpack.c.l.b16 %v155
    %v705 = vunpack.c.h.b16 %v155
    %v706 = vunpack.c.l.b16 %v156
    %v707 = vunpack.c.h.b16 %v156
    %v708 = vunpack.c.l.b16 %v157
    %v709 = vunpack.c.h.b16 %v157
    %v710 = vunpack.c.l.b16 %v158
    %v711 = vunpack.c.h.b16 %v158
    %v712 = vunpack.c.l.b16 %v159
    %v713 = vunpack.c.h.b16 %v159
    %v714 = vunpack.c.l.b16 %v160
    %v715 = vunpack.c.h.b16 %v160
    %v716 = vunpack.c.l.b16 %v161
    %v717 = vunpack.c.h.b16 %v161
    %v718 = vunpack.c.l.b16 %v162
    %v719 = vunpack.c.h.b16 %v162
    %v720 = vunpack.c.l.b16 %v163
    %v721 = vunpack.c.h.b16 %v163
    %v722 = vunpack.c.l.b16 %v164
    %v723 = vunpack.c.h.b16 %v164
    %v724 = vunpack.c.l.b16 %v165
    %v725 = vunpack.c.h.b16 %v165
    %v726 = vunpack.c.l.b16 %v166
    %v727 = vunpack.c.h.b16 %v166
    %v728 = vunpack.c.l.b16 %v167
    %v729 = vunpack.c.h.b16 %v167
    %v730 = vunpack.c.l.b16 %v168
    %v731 = vunpack.c.h.b16 %v168
    %v732 = vunpack.c.l.b16 %v169
    %v733 = vunpack.c.h.b16 %v169
    %v734 = vunpack.c.l.b16 %v170
    %v735 = vunpack.c.h.b16 %v170
    %v736 = vunpack.c.l.b16 %v171
    %v737 = vunpack.c.h.b16 %v171
    %v738 = vunpack.c.l.b16 %v172
    %v739 = vunpack.c.h.b16 %v172
    %v740 = vunpack.c.l.b16 %v173
    %v741 = vunpack.c.h.b16 %v173
    %v742 = vunpack.c.l.b16 %v174
    %v743 = vunpack.c.h.b16 %v174
    %v744 = vunpack.c.l.b16 %v175
    %v745 = vunpack.c.h.b16 %v175
    %v746 = vunpack.c.l.b16 %v176
    %v747 = vunpack.c.h.b16 %v176
    %v748 = vunpack.c.l.b16 %v177
    %v749 = vunpack.c.h.b16 %v177
    %v750 = vunpack.c.l.b16 %v178
    %v751 = vunpack.c.h.b16 %v178
    %v752 = vunpack.c.l.b16 %v179
    %v753 = vunpack.c.h.b16 %v179
    %v754 = vunpack.c.l.b16 %v180
    %v755 = vunpack.c.h.b16 %v180
    %v756 = vunpack.c.l.b16 %v181
    %v757 = vunpack.c.h.b16 %v181
    %v758 = vunpack.c.l.b16 %v182
    %v759 = vunpack.c.h.b16 %v182
    %v760 = vunpack.c.l.b16 %v183
    %v761 = vunpack.c.h.b16 %v183
    %v762 = vunpack.c.l.b16 %v184
    %v763 = vunpack.c.h.b16 %v184
    %v764 = vunpack.c.l.b16 %v185
    %v765 = vunpack.c.h.b16 %v185
    %v766 = vunpack.c.l.b16 %v186
    %v767 = vunpack.c.h.b16 %v186
    %v768 = vunpack.c.l.b16 %v187
    %v769 = vunpack.c.h.b16 %v187
    %v770 = vunpack.c.l.b16 %v188
    %v771 = vunpack.c.h.b16 %v188
    %v772 = vunpack.c.l.b16 %v189
    %v773 = vunpack.c.h.b16 %v189
    %v774 = vunpack.c.l.b16 %v190
    %v775 = vunpack.c.h.b16 %v190
    %v776 = vunpack.c.l.b16 %v191
    %v777 = vunpack.c.h.b16 %v191
    %v778 = vunpack.c.l.b16 %v192
    %v779 = vunpack.c.h.b16 %v192
    %v780 = vunpack.c.l.b16 %v193
    %v781 = vunpack.c.h.b16 %v193
    %v782 = vunpack.c.l.b16 %v194
    %v783 = vunpack.c.h.b16 %v194
    %v784 = vunpack.c.l.b16 %v195
    %v785 = vunpack.c.h.b16 %v195
    %v786 = vunpack.c.l.b16 %v196
    %v787 = vunpack.c.h.b16 %v196
    %v788 = vunpack.c.l.b16 %v197
    %v789 = vunpack.c.h.b16 %v197
    %v790 = vunpack.c.l.b16 %v198
    %v791 = vunpack.c.h.b16 %v198
    %v792 = vunpack.c.l.b16 %v199
    %v793 = vunpack.c.h.b16 %v199
    %v794 = vunpack.c.l.b16 %v200
    %v795 = vunpack.c.h.b16 %v200
    %v796 = vunpack.c.l.b16 %v201
    %v797 = vunpack.c.h.b16 %v201
    %v798 = vunpack.c.l.b16 %v202
    %v799 = vunpack.c.h.b16 %v202
    %v800 = vunpack.c.l.b16 %v203
    %v801 = vunpack.c.h.b16 %v203
    %v802 = vunpack.c.l.b16 %v204
    %v803 = vunpack.c.h.b16 %v204
    %v804 = vunpack.c.l.b16 %v205
    %v805 = vunpack.c.h.b16 %v205
    %v806 = vunpack.c.l.b16 %v206
    %v807 = vunpack.c.h.b16 %v206
    %v808 = vunpack.c.l.b16 %v207
    %v809 = vunpack.c.h.b16 %v207
    %v810 = vunpack.c.l.b16 %v208
    %v811 = vunpack.c.h.b16 %v208
    %v812 = vunpack.c.l.b16 %v209
    %v813 = vunpack.c.h.b16 %v209
    %v814 = vunpack.c.l.b16 %v210
    %v815 = vunpack.c.h.b16 %v210
    %v816 = vunpack.c.l.b16 %v211
    %v817 = vunpack.c.h.b16 %v211
    %v818 = vunpack.c.l.b16 %v212
    %v819 = vunpack.c.h.b16 %v212
    %v820 = vunpack.c.l.b16 %v213
    %v821 = vunpack.c.h.b16 %v213
    %v822 = vunpack.c.l.b16 %v214
    %v823 = vunpack.c.h.b16 %v214
    %v824 = vunpack.c.l.b16 %v215
    %v825 = vunpack.c.h.b16 %v215
    %v826 = vunpack.c.l.b16 %v216
    %v827 = vunpack.c.h.b16 %v216
    %v828 = vunpack.c.l.b16 %v217
    %v829 = vunpack.c.h.b16 %v217
    %v830 = vunpack.c.l.b16 %v218
    %v831 = vunpack.c.h.b16 %v218
    %v832 = vunpack.c.l.b16 %v219
    %v833 = vunpack.c.h.b16 %v219
    %v834 = vunpack.c.l.b16 %v220
    %v835 = vunpack.c.h.b16 %v220
    %v836 = vunpack.c.l.b16 %v221
    %v837 = vunpack.c.h.b16 %v221
    %v838 = vunpack.c.l.b16 %v222
    %v839 = vunpack.c.h.b16 %v222
    %v840 = vunpack.c.l.b16 %v223
    %v841 = vunpack.c.h.b16 %v223
    %v842 = vunpack.c.l.b16 %v224
    %v843 = vunpack.c.h.b16 %v224
    %v844 = vunpack.c.l.b16 %v225
    %v845 = vunpack.c.h.b16 %v225
    %v846 = vunpack.c.l.b16 %v226
    %v847 = vunpack.c.h.b16 %v226
    %v848 = vunpack.c.l.b16 %v227
    %v849 = vunpack.c.h.b16 %v227
    %v850 = vunpack.c.l.b16 %v228
    %v851 = vunpack.c.h.b16 %v228
    %v852 = vunpack.c.l.b16 %v229
    %v853 = vunpack.c.h.b16 %v229
    %v854 = vunpack.c.l.b16 %v230
    %v855 = vunpack.c.h.b16 %v230
    %v856 = vunpack.c.l.b16 %v231
    %v857 = vunpack.c.h.b16 %v231
    %v858 = vunpack.c.l.b16 %v232
    %v859 = vunpack.c.h.b16 %v232
    %v860 = vunpack.c.l.b16 %v233
    %v861 = vunpack.c.h.b16 %v233
    %v862 = vunpack.c.l.b16 %v234
    %v863 = vunpack.c.h.b16 %v234
    %v864 = vunpack.c.l.b16 %v235
    %v865 = vunpack.c.h.b16 %v235
    %v866 = vunpack.c.l.b16 %v236
    %v867 = vunpack.c.h.b16 %v236
    %v868 = vunpack.c.l.b16 %v237
    %v869 = vunpack.c.h.b16 %v237
    %v870 = vunpack.c.l.b16 %v238
    %v871 = vunpack.c.h.b16 %v238
    %v872 = vunpack.c.l.b16 %v239
    %v873 = vunpack.c.h.b16 %v239
    %v874 = vpack.c.b16 %v486, %v482
    %v875 = vpack.c.b16 %v487, %v483
    %v876 = vpack.c.b16 %v488, %v484
    %v877 = vpack.c.b16 %v489, %v485
    %v878 = vpack.c.b16 %v494, %v490
    %v879 = vpack.c.b16 %v495, %v491
    %v880 = vpack.c.b16 %v496, %v492
    %v881 = vpack.c.b16 %v497, %v493
    %v882 = vpack.c.b16 %v502, %v498
    %v883 = vpack.c.b16 %v503, %v499
    %v884 = vpack.c.b16 %v504, %v500
    %v885 = vpack.c.b16 %v505, %v501
    %v886 = vpack.c.b16 %v510, %v506
    %v887 = vpack.c.b16 %v511, %v507
    %v888 = vpack.c.b16 %v512, %v508
    %v889 = vpack.c.b16 %v513, %v509
    %v890 = vpack.c.b16 %v518, %v514
    %v891 = vpack.c.b16 %v519, %v515
    %v892 = vpack.c.b16 %v520, %v516
    %v893 = vpack.c.b16 %v521, %v517
    %v894 = vpack.c.b16 %v526, %v522
    %v895 = vpack.c.b16 %v527, %v523
    %v896 = vpack.c.b16 %v528, %v524
    %v897 = vpack.c.b16 %v529, %v525
    %v898 = vpack.c.b16 %v534, %v530
    %v899 = vpack.c.b16 %v535, %v531
    %v900 = vpack.c.b16 %v536, %v532
    %v901 = vpack.c.b16 %v537, %v533
    %v902 = vpack.c.b16 %v542, %v538
    %v903 = vpack.c.b16 %v543, %v539
    %v904 = vpack.c.b16 %v544, %v540
    %v905 = vpack.c.b16 %v545, %v541
    %v906 = vpack.c.b16 %v550, %v546
    %v907 = vpack.c.b16 %v551, %v547
    %v908 = vpack.c.b16 %v552, %v548
    %v909 = vpack.c.b16 %v553, %v549
    %v910 = vpack.c.b16 %v558, %v554
    %v911 = vpack.c.b16 %v559, %v555
    %v912 = vpack.c.b16 %v560, %v556
    %v913 = vpack.c.b16 %v561, %v557
    %v914 = vpack.c.b16 %v566, %v562
    %v915 = vpack.c.b16 %v567, %v563
    %v916 = vpack.c.b16 %v568, %v564
    %v917 = vpack.c.b16 %v569, %v565
    %v918 = vpack.c.b16 %v574, %v570
    %v919 = vpack.c.b16 %v575, %v571
    %v920 = vpack.c.b16 %v576, %v572
    %v921 = vpack.c.b16 %v577, %v573
    %v922 = vpack.c.b16 %v582, %v578
    %v923 = vpack.c.b16 %v583, %v579
    %v924 = vpack.c.b16 %v584, %v580
    %v925 = vpack.c.b16 %v585, %v581
    %v926 = vpack.c.b16 %v590, %v586
    %v927 = vpack.c.b16 %v591, %v587
    %v928 = vpack.c.b16 %v592, %v588
    %v929 = vpack.c.b16 %v593, %v589
    %v930 = vpack.c.b16 %v598, %v594
    %v931 = vpack.c.b16 %v599, %v595
    %v932 = vpack.c.b16 %v600, %v596
    %v933 = vpack.c.b16 %v601, %v597
    %v934 = vpack.c.b16 %v606, %v602
    %v935 = vpack.c.b16 %v607, %v603
    %v936 = vpack.c.b16 %v608, %v604
    %v937 = vpack.c.b16 %v609, %v605
    %v938 = vpack.c.b16 %v614, %v610
    %v939 = vpack.c.b16 %v615, %v611
    %v940 = vpack.c.b16 %v616, %v612
    %v941 = vpack.c.b16 %v617, %v613
    %v942 = vpack.c.b16 %v622, %v618
    %v943 = vpack.c.b16 %v623, %v619
    %v944 = vpack.c.b16 %v624, %v620
    %v945 = vpack.c.b16 %v625, %v621
    %v946 = vpack.c.b16 %v630, %v626
    %v947 = vpack.c.b16 %v631, %v627
    %v948 = vpack.c.b16 %v632, %v628
    %v949 = vpack.c.b16 %v633, %v629
    %v950 = vpack.c.b16 %v638, %v634
    %v951 = vpack.c.b16 %v639, %v635
    %v952 = vpack.c.b16 %v640, %v636
    %v953 = vpack.c.b16 %v641, %v637
    %v954 = vpack.c.b16 %v646, %v642
    %v955 = vpack.c.b16 %v647, %v643
    %v956 = vpack.c.b16 %v648, %v644
    %v957 = vpack.c.b16 %v649, %v645
    %v958 = vpack.c.b16 %v654, %v650
    %v959 = vpack.c.b16 %v655, %v651
    %v960 = vpack.c.b16 %v656, %v652
    %v961 = vpack.c.b16 %v657, %v653
    %v962 = vpack.c.b16 %v662, %v658
    %v963 = vpack.c.b16 %v663, %v659
    %v964 = vpack.c.b16 %v664, %v660
    %v965 = vpack.c.b16 %v665, %v661
    %v966 = vpack.c.b16 %v670, %v666
    %v967 = vpack.c.b16 %v671, %v667
    %v968 = vpack.c.b16 %v672, %v668
    %v969 = vpack.c.b16 %v673, %v669
    %v970 = vpack.c.b16 %v678, %v674
    %v971 = vpack.c.b16 %v679, %v675
    %v972 = vpack.c.b16 %v680, %v676
    %v973 = vpack.c.b16 %v681, %v677
    %v974 = vpack.c.b16 %v686, %v682
    %v975 = vpack.c.b16 %v687, %v683
    %v976 = vpack.c.b16 %v688, %v684
    %v977 = vpack.c.b16 %v689, %v685
    %v978 = vpack.c.b16 %v694, %v690
    %v979 = vpack.c.b16 %v695, %v691
    %v980 = vpack.c.b16 %v696, %v692
    %v981 = vpack.c.b16 %v697, %v693
    %v982 = vpack.c.b16 %v702, %v698
    %v983 = vpack.c.b16 %v703, %v699
    %v984 = vpack.c.b16 %v704, %v700
    %v985 = vpack.c.b16 %v705, %v701
    %v986 = vpack.c.b16 %v710, %v706
    %v987 = vpack.c.b16 %v711, %v707
    %v988 = vpack.c.b16 %v712, %v708
    %v989 = vpack.c.b16 %v713, %v709
    %v990 = vpack.c.b16 %v718, %v714
    %v991 = vpack.c.b16 %v719, %v715
    %v992 = vpack.c.b16 %v720, %v716
    %v993 = vpack.c.b16 %v721, %v717
    %v994 = vpack.c.b16 %v726, %v722
    %v995 = vpack.c.b16 %v727, %v723
    %v996 = vpack.c.b16 %v728, %v724
    %v997 = vpack.c.b16 %v729, %v725
    %v998 = vpack.c.b16 %v734, %v730
    %v999 = vpack.c.b16 %v735, %v731
    %v1000 = vpack.c.b16 %v736, %v732
    %v1001 = vpack.c.b16 %v737, %v733
    %v1002 = vpack.c.b16 %v742, %v738
    %v1003 = vpack.c.b16 %v743, %v739
    %v1004 = vpack.c.b16 %v744, %v740
    %v1005 = vpack.c.b16 %v745, %v741
    %v1006 = vpack.c.b16 %v750, %v746
    %v1007 = vpack.c.b16 %v751, %v747
    %v1008 = vpack.c.b16 %v752, %v748
    %v1009 = vpack.c.b16 %v753, %v749
    %v1010 = vpack.c.b16 %v758, %v754
    %v1011 = vpack.c.b16 %v759, %v755
    %v1012 = vpack.c.b16 %v760, %v756
    %v1013 = vpack.c.b16 %v761, %v757
    %v1014 = vpack.c.b16 %v766, %v762
    %v1015 = vpack.c.b16 %v767, %v763
    %v1016 = vpack.c.b16 %v768, %v764
    %v1017 = vpack.c.b16 %v769, %v765
    %v1018 = vpack.c.b16 %v774, %v770
    %v1019 = vpack.c.b16 %v775, %v771
    %v1020 = vpack.c.b16 %v776, %v772
    %v1021 = vpack.c.b16 %v777, %v773
    %v1022 = vpack.c.b16 %v782, %v778
    %v1023 = vpack.c.b16 %v783, %v779
    %v1024 = vpack.c.b16 %v784, %v780
    %v1025 = vpack.c.b16 %v785, %v781
    %v1026 = vpack.c.b16 %v790, %v786
    %v1027 = vpack.c.b16 %v791, %v787
    %v1028 = vpack.c.b16 %v792, %v788
    %v1029 = vpack.c.b16 %v793, %v789
    %v1030 = vpack.c.b16 %v798, %v794
    %v1031 = vpack.c.b16 %v799, %v795
    %v1032 = vpack.c.b16 %v800, %v796
    %v1033 = vpack.c.b16 %v801, %v797
    %v1034 = vpack.c.b16 %v806, %v802
    %v1035 = vpack.c.b16 %v807, %v803
    %v1036 = vpack.c.b16 %v808, %v804
    %v1037 = vpack.c.b16 %v809, %v805
    %v1038 = vpack.c.b16 %v814, %v810
    %v1039 = vpack.c.b16 %v815, %v811
    %v1040 = vpack.c.b16 %v816, %v812
    %v1041 = vpack.c.b16 %v817, %v813
    %v1042 = vpack.c.b16 %v822, %v818
    %v1043 = vpack.c.b16 %v823, %v819
    %v1044 = vpack.c.b16 %v824, %v820
    %v1045 = vpack.c.b16 %v825, %v821
    %v1046 = vpack.c.b16 %v830, %v826
    %v1047 = vpack.c.b16 %v831, %v827
    %v1048 = vpack.c.b16 %v832, %v828
    %v1049 = vpack.c.b16 %v833, %v829
    %v1050 = vpack.c.b16 %v838, %v834
    %v1051 = vpack.c.b16 %v839, %v835
    %v1052 = vpack.c.b16 %v840, %v836
    %v1053 = vpack.c.b16 %v841, %v837
    %v1054 = vpack.c.b16 %v846, %v842
    %v1055 = vpack.c.b16 %v847, %v843
    %v1056 = vpack.c.b16 %v848, %v844
    %v1057 = vpack.c.b16 %v849, %v845
    %v1058 = vpack.c.b16 %v854, %v850
    %v1059 = vpack.c.b16 %v855, %v851
    %v1060 = vpack.c.b16 %v856, %v852
    %v1061 = vpack.c.b16 %v857, %v853
    %v1062 = vpack.c.b16 %v862, %v858
    %v1063 = vpack.c.b16 %v863, %v859
    %v1064 = vpack.c.b16 %v864, %v860
    %v1065 = vpack.c.b16 %v865, %v861
    %v1066 = vpack.c.b16 %v870, %v866
    %v1067 = vpack.c.b16 %v871, %v867
    %v1068 = vpack.c.b16 %v872, %v868
    %v1069 = vpack.c.b16 %v873, %v869
    %vm1266 = vcmask 130048
    %v1268 = vsel %vm1266, %v279, 0
    %1270 = vmatprep.subr.bf16.mxu0 %v875
    %1271 = vmatpush1.bf16.msra.mxu0 %v874
    %1272 = vmatprep.subr.bf16.mxu0 %v879
    %1273 = vmatpush1.bf16.msra.mxu0 %v878
    %1274 = vmatprep.subr.bf16.mxu0 %v883
    %1275 = vmatpush1.bf16.msra.mxu0 %v882
    %1276 = vmatprep.subr.bf16.mxu0 %v887
    %1277 = vmatpush1.bf16.msra.mxu0 %v886
    %1278 = vmatprep.subr.bf16.mxu0 %v891
    %1279 = vmatpush1.bf16.msra.mxu0 %v890
    %1280 = vmatprep.subr.bf16.mxu0 %v895
    %1281 = vmatpush1.bf16.msra.mxu0 %v894
    %1282 = vmatprep.subr.bf16.mxu0 %v899
    %1283 = vmatpush1.bf16.msra.mxu0 %v898
    %1284 = vmatprep.subr.bf16.mxu0 %v903
    %1285 = vmatpush1.bf16.msra.mxu0 %v902
    %1286 = vmatprep.subr.bf16.mxu0 %v907
    %1287 = vmatpush1.bf16.msra.mxu0 %v906
    %1288 = vmatprep.subr.bf16.mxu0 %v911
    %1289 = vmatpush1.bf16.msra.mxu0 %v910
    %1290 = vmatprep.subr.bf16.mxu0 %v915
    %1291 = vmatpush1.bf16.msra.mxu0 %v914
    %1292 = vmatprep.subr.bf16.mxu0 %v919
    %1293 = vmatpush1.bf16.msra.mxu0 %v918
    %1294 = vmatprep.subr.bf16.mxu0 %v923
    %1295 = vmatpush1.bf16.msra.mxu0 %v922
    %1296 = vmatprep.subr.bf16.mxu0 %v927
    %1297 = vmatpush1.bf16.msra.mxu0 %v926
    %1298 = vmatprep.subr.bf16.mxu0 %v931
    %1299 = vmatpush1.bf16.msra.mxu0 %v930
    %1300 = vmatprep.subr.bf16.mxu0 %v935
    %1301 = vmatpush1.bf16.msra.mxu0 %v934
    %1302 = vmatprep.mubr.bf16.mxu0 %v274
    %1303 = vmatmul.mubr.bf16.gmra.mrb[0].mxu0 %v273
    %v1304 = vpop.f32.mrb[0].mxu0
    %v1305 = vadd.f32 %v245, %v1304
    %v1306 = vpop.f32.mrb[0].mxu0
    %v1307 = vadd.f32 %v249, %v1306
    %v1308 = vpop.f32.mrb[0].mxu0
    %v1309 = vpop.f32.mrb[0].mxu0
    %1310 = vdwg.mxu0
    %1311 = vmatprep.subr.bf16.mxu0 %v939
    %1312 = vmatpush1.bf16.msra.mxu0 %v938
    %1313 = vmatprep.subr.bf16.mxu0 %v943
    %1314 = vmatpush1.bf16.msra.mxu0 %v942
    %1315 = vmatprep.subr.bf16.mxu0 %v947
    %1316 = vmatpush1.bf16.msra.mxu0 %v946
    %1317 = vmatprep.subr.bf16.mxu0 %v951
    %1318 = vmatpush1.bf16.msra.mxu0 %v950
    %1319 = vmatprep.subr.bf16.mxu0 %v955
    %1320 = vmatpush1.bf16.msra.mxu0 %v954
    %1321 = vmatprep.subr.bf16.mxu0 %v959
    %1322 = vmatpush1.bf16.msra.mxu0 %v958
    %1323 = vmatprep.subr.bf16.mxu0 %v963
    %1324 = vmatpush1.bf16.msra.mxu0 %v962
    %1325 = vmatprep.subr.bf16.mxu0 %v967
    %1326 = vmatpush1.bf16.msra.mxu0 %v966
    %1327 = vmatprep.subr.bf16.mxu0 %v971
    %1328 = vmatpush1.bf16.msra.mxu0 %v970
    %1329 = vmatprep.subr.bf16.mxu0 %v975
    %1330 = vmatpush1.bf16.msra.mxu0 %v974
    %1331 = vmatprep.subr.bf16.mxu0 %v979
    %1332 = vmatpush1.bf16.msra.mxu0 %v978
    %1333 = vmatprep.subr.bf16.mxu0 %v983
    %1334 = vmatpush1.bf16.msra.mxu0 %v982
    %1335 = vmatprep.subr.bf16.mxu0 %v987
    %1336 = vmatpush1.bf16.msra.mxu0 %v986
    %1337 = vmatprep.subr.bf16.mxu0 %v991
    %1338 = vmatpush1.bf16.msra.mxu0 %v990
    %1339 = vmatprep.subr.bf16.mxu0 %v995
    %1340 = vmatpush1.bf16.msra.mxu0 %v994
    %1341 = vmatprep.subr.bf16.mxu0 %v999
    %1342 = vmatpush1.bf16.msra.mxu0 %v998
    %1343 = vmatprep.mubr.bf16.mxu0 %v276
    %1344 = vmatmul.mubr.bf16.gmra.mrb[0].mxu0 %v275
    %v1345 = vpop.f32.mrb[0].mxu0
    %v1346 = vadd.f32 %v1305, %v1345
    %v1347 = vpop.f32.mrb[0].mxu0
    %v1348 = vadd.f32 %v1307, %v1347
    %v1349 = vpop.f32.mrb[0].mxu0
    %v1350 = vpop.f32.mrb[0].mxu0
    %1351 = vdwg.mxu0
    %1352 = vmatprep.subr.bf16.mxu0 %v1003
    %1353 = vmatpush1.bf16.msra.mxu0 %v1002
    %1354 = vmatprep.subr.bf16.mxu0 %v1007
    %1355 = vmatpush1.bf16.msra.mxu0 %v1006
    %1356 = vmatprep.subr.bf16.mxu0 %v1011
    %1357 = vmatpush1.bf16.msra.mxu0 %v1010
    %1358 = vmatprep.subr.bf16.mxu0 %v1015
    %1359 = vmatpush1.bf16.msra.mxu0 %v1014
    %1360 = vmatprep.subr.bf16.mxu0 %v1019
    %1361 = vmatpush1.bf16.msra.mxu0 %v1018
    %1362 = vmatprep.subr.bf16.mxu0 %v1023
    %1363 = vmatpush1.bf16.msra.mxu0 %v1022
    %1364 = vmatprep.subr.bf16.mxu0 %v1027
    %1365 = vmatpush1.bf16.msra.mxu0 %v1026
    %1366 = vmatprep.subr.bf16.mxu0 %v1031
    %1367 = vmatpush1.bf16.msra.mxu0 %v1030
    %1368 = vmatprep.subr.bf16.mxu0 %v1035
    %1369 = vmatpush1.bf16.msra.mxu0 %v1034
    %1370 = vmatprep.subr.bf16.mxu0 %v1039
    %1371 = vmatpush1.bf16.msra.mxu0 %v1038
    %1372 = vmatprep.subr.bf16.mxu0 %v1043
    %1373 = vmatpush1.bf16.msra.mxu0 %v1042
    %1374 = vmatprep.subr.bf16.mxu0 %v1047
    %1375 = vmatpush1.bf16.msra.mxu0 %v1046
    %1376 = vmatprep.subr.bf16.mxu0 %v1051
    %1377 = vmatpush1.bf16.msra.mxu0 %v1050
    %1378 = vmatprep.subr.bf16.mxu0 %v1055
    %1379 = vmatpush1.bf16.msra.mxu0 %v1054
    %1380 = vmatprep.subr.bf16.mxu0 %v1059
    %1381 = vmatpush1.bf16.msra.mxu0 %v1058
    %1382 = vmatprep.subr.bf16.mxu0 %v1063
    %1383 = vmatpush1.bf16.msra.mxu0 %v1062
    %1384 = vmatprep.mubr.bf16.mxu0 %v278
    %1385 = vmatmul.mubr.bf16.gmra.mrb[0].mxu0 %v277
    %v1386 = vpop.f32.mrb[0].mxu0
    %v1387 = vadd.f32 %v1346, %v1386
    %v1388 = vpop.f32.mrb[0].mxu0
    %v1389 = vadd.f32 %v1348, %v1388
    %v1390 = vpop.f32.mrb[0].mxu0
    %v1391 = vpop.f32.mrb[0].mxu0
    %1392 = vdwg.mxu0
    %1393 = vmatprep.subr.bf16.mxu0 %v1067
    %1394 = vmatpush1.bf16.msra.mxu0 %v1066
    %1395 = vmatprep.subr.bf16.mxu0 0
    %1396 = vmatpush1.bf16.msra.mxu0 0
    %1397 = vmatprep.subr.bf16.mxu0 0
    %1398 = vmatpush1.bf16.msra.mxu0 0
    %1399 = vmatprep.subr.bf16.mxu0 0
    %1400 = vmatpush1.bf16.msra.mxu0 0
    %1401 = vmatprep.subr.bf16.mxu0 0
    %1402 = vmatpush1.bf16.msra.mxu0 0
    %1403 = vmatprep.subr.bf16.mxu0 0
    %1404 = vmatpush1.bf16.msra.mxu0 0
    %1405 = vmatprep.subr.bf16.mxu0 0
    %1406 = vmatpush1.bf16.msra.mxu0 0
    %1407 = vmatprep.subr.bf16.mxu0 0
    %1408 = vmatpush1.bf16.msra.mxu0 0
    %1409 = vmatprep.subr.bf16.mxu0 0
    %1410 = vmatpush1.bf16.msra.mxu0 0
    %1411 = vmatprep.subr.bf16.mxu0 0
    %1412 = vmatpush1.bf16.msra.mxu0 0
    %1413 = vmatprep.subr.bf16.mxu0 0
    %1414 = vmatpush1.bf16.msra.mxu0 0
    %1415 = vmatprep.subr.bf16.mxu0 0
    %1416 = vmatpush1.bf16.msra.mxu0 0
    %1417 = vmatprep.subr.bf16.mxu0 0
    %1418 = vmatpush1.bf16.msra.mxu0 0
    %1419 = vmatprep.subr.bf16.mxu0 0
    %1420 = vmatpush1.bf16.msra.mxu0 0
    %1421 = vmatprep.subr.bf16.mxu0 0
    %1422 = vmatpush1.bf16.msra.mxu0 0
    %1423 = vmatprep.subr.bf16.mxu0 0
    %1424 = vmatpush1.bf16.msra.mxu0 0
    %1425 = vmatprep.mubr.bf16.mxu0 0
    %1426 = vmatmul.mubr.bf16.gmra.mrb[0].mxu0 %v1268
    %v1427 = vpop.f32.mrb[0].mxu0
    %v1428 = vadd.f32 %v1387, %v1427
    %v1429 = vpop.f32.mrb[0].mxu0
    %v1430 = vadd.f32 %v1389, %v1429
    %v1431 = vpop.f32.mrb[0].mxu0
    %v1432 = vpop.f32.mrb[0].mxu0
    %1433 = vdwg.mxu0
    %1434 = vmatprep.subr.bf16.mxu0 %v877
    %1435 = vmatpush1.bf16.msra.mxu0 %v876
    %1436 = vmatprep.subr.bf16.mxu0 %v881
    %1437 = vmatpush1.bf16.msra.mxu0 %v880
    %1438 = vmatprep.subr.bf16.mxu0 %v885
    %1439 = vmatpush1.bf16.msra.mxu0 %v884
    %1440 = vmatprep.subr.bf16.mxu0 %v889
    %1441 = vmatpush1.bf16.msra.mxu0 %v888
    %1442 = vmatprep.subr.bf16.mxu0 %v893
    %1443 = vmatpush1.bf16.msra.mxu0 %v892
    %1444 = vmatprep.subr.bf16.mxu0 %v897
    %1445 = vmatpush1.bf16.msra.mxu0 %v896
    %1446 = vmatprep.subr.bf16.mxu0 %v901
    %1447 = vmatpush1.bf16.msra.mxu0 %v900
    %1448 = vmatprep.subr.bf16.mxu0 %v905
    %1449 = vmatpush1.bf16.msra.mxu0 %v904
    %1450 = vmatprep.subr.bf16.mxu0 %v909
    %1451 = vmatpush1.bf16.msra.mxu0 %v908
    %1452 = vmatprep.subr.bf16.mxu0 %v913
    %1453 = vmatpush1.bf16.msra.mxu0 %v912
    %1454 = vmatprep.subr.bf16.mxu0 %v917
    %1455 = vmatpush1.bf16.msra.mxu0 %v916
    %1456 = vmatprep.subr.bf16.mxu0 %v921
    %1457 = vmatpush1.bf16.msra.mxu0 %v920
    %1458 = vmatprep.subr.bf16.mxu0 %v925
    %1459 = vmatpush1.bf16.msra.mxu0 %v924
    %1460 = vmatprep.subr.bf16.mxu0 %v929
    %1461 = vmatpush1.bf16.msra.mxu0 %v928
    %1462 = vmatprep.subr.bf16.mxu0 %v933
    %1463 = vmatpush1.bf16.msra.mxu0 %v932
    %1464 = vmatprep.subr.bf16.mxu0 %v937
    %1465 = vmatpush1.bf16.msra.mxu0 %v936
    %1466 = vmatprep.mubr.bf16.mxu0 %v274
    %1467 = vmatmul.mubr.bf16.gmra.mrb[0].mxu0 %v273
    %v1468 = vpop.f32.mrb[0].mxu0
    %v1469 = vadd.f32 %v253, %v1468
    %v1470 = vpop.f32.mrb[0].mxu0
    %v1471 = vadd.f32 %v257, %v1470
    %v1472 = vpop.f32.mrb[0].mxu0
    %v1473 = vpop.f32.mrb[0].mxu0
    %1474 = vdwg.mxu0
    %1475 = vmatprep.subr.bf16.mxu0 %v941
    %1476 = vmatpush1.bf16.msra.mxu0 %v940
    %1477 = vmatprep.subr.bf16.mxu0 %v945
    %1478 = vmatpush1.bf16.msra.mxu0 %v944
    %1479 = vmatprep.subr.bf16.mxu0 %v949
    %1480 = vmatpush1.bf16.msra.mxu0 %v948
    %1481 = vmatprep.subr.bf16.mxu0 %v953
    %1482 = vmatpush1.bf16.msra.mxu0 %v952
    %1483 = vmatprep.subr.bf16.mxu0 %v957
    %1484 = vmatpush1.bf16.msra.mxu0 %v956
    %1485 = vmatprep.subr.bf16.mxu0 %v961
    %1486 = vmatpush1.bf16.msra.mxu0 %v960
    %1487 = vmatprep.subr.bf16.mxu0 %v965
    %1488 = vmatpush1.bf16.msra.mxu0 %v964
    %1489 = vmatprep.subr.bf16.mxu0 %v969
    %1490 = vmatpush1.bf16.msra.mxu0 %v968
    %1491 = vmatprep.subr.bf16.mxu0 %v973
    %1492 = vmatpush1.bf16.msra.mxu0 %v972
    %1493 = vmatprep.subr.bf16.mxu0 %v977
    %1494 = vmatpush1.bf16.msra.mxu0 %v976
    %1495 = vmatprep.subr.bf16.mxu0 %v981
    %1496 = vmatpush1.bf16.msra.mxu0 %v980
    %1497 = vmatprep.subr.bf16.mxu0 %v985
    %1498 = vmatpush1.bf16.msra.mxu0 %v984
    %1499 = vmatprep.subr.bf16.mxu0 %v989
    %1500 = vmatpush1.bf16.msra.mxu0 %v988
    %1501 = vmatprep.subr.bf16.mxu0 %v993
    %1502 = vmatpush1.bf16.msra.mxu0 %v992
    %1503 = vmatprep.subr.bf16.mxu0 %v997
    %1504 = vmatpush1.bf16.msra.mxu0 %v996
    %1505 = vmatprep.subr.bf16.mxu0 %v1001
    %1506 = vmatpush1.bf16.msra.mxu0 %v1000
    %1507 = vmatprep.mubr.bf16.mxu0 %v276
    %1508 = vmatmul.mubr.bf16.gmra.mrb[0].mxu0 %v275
    %v1509 = vpop.f32.mrb[0].mxu0
    %v1510 = vadd.f32 %v1469, %v1509
    %v1511 = vpop.f32.mrb[0].mxu0
    %v1512 = vadd.f32 %v1471, %v1511
    %v1513 = vpop.f32.mrb[0].mxu0
    %v1514 = vpop.f32.mrb[0].mxu0
    %1515 = vdwg.mxu0
    %1516 = vmatprep.subr.bf16.mxu0 %v1005
    %1517 = vmatpush1.bf16.msra.mxu0 %v1004
    %1518 = vmatprep.subr.bf16.mxu0 %v1009
    %1519 = vmatpush1.bf16.msra.mxu0 %v1008
    %1520 = vmatprep.subr.bf16.mxu0 %v1013
    %1521 = vmatpush1.bf16.msra.mxu0 %v1012
    %1522 = vmatprep.subr.bf16.mxu0 %v1017
    %1523 = vmatpush1.bf16.msra.mxu0 %v1016
    %1524 = vmatprep.subr.bf16.mxu0 %v1021
    %1525 = vmatpush1.bf16.msra.mxu0 %v1020
    %1526 = vmatprep.subr.bf16.mxu0 %v1025
    %1527 = vmatpush1.bf16.msra.mxu0 %v1024
    %1528 = vmatprep.subr.bf16.mxu0 %v1029
    %1529 = vmatpush1.bf16.msra.mxu0 %v1028
    %1530 = vmatprep.subr.bf16.mxu0 %v1033
    %1531 = vmatpush1.bf16.msra.mxu0 %v1032
    %1532 = vmatprep.subr.bf16.mxu0 %v1037
    %1533 = vmatpush1.bf16.msra.mxu0 %v1036
    %1534 = vmatprep.subr.bf16.mxu0 %v1041
    %1535 = vmatpush1.bf16.msra.mxu0 %v1040
    %1536 = vmatprep.subr.bf16.mxu0 %v1045
    %1537 = vmatpush1.bf16.msra.mxu0 %v1044
    %1538 = vmatprep.subr.bf16.mxu0 %v1049
    %1539 = vmatpush1.bf16.msra.mxu0 %v1048
    %1540 = vmatprep.subr.bf16.mxu0 %v1053
    %1541 = vmatpush1.bf16.msra.mxu0 %v1052
    %1542 = vmatprep.subr.bf16.mxu0 %v1057
    %1543 = vmatpush1.bf16.msra.mxu0 %v1056
    %1544 = vmatprep.subr.bf16.mxu0 %v1061
    %1545 = vmatpush1.bf16.msra.mxu0 %v1060
    %1546 = vmatprep.subr.bf16.mxu0 %v1065
    %1547 = vmatpush1.bf16.msra.mxu0 %v1064
    %1548 = vmatprep.mubr.bf16.mxu0 %v278
    %1549 = vmatmul.mubr.bf16.gmra.mrb[0].mxu0 %v277
    %v1550 = vpop.f32.mrb[0].mxu0
    %v1551 = vadd.f32 %v1510, %v1550
    %v1552 = vpop.f32.mrb[0].mxu0
    %v1553 = vadd.f32 %v1512, %v1552
    %v1554 = vpop.f32.mrb[0].mxu0
    %v1555 = vpop.f32.mrb[0].mxu0
    %1556 = vdwg.mxu0
    %1557 = vmatprep.subr.bf16.mxu0 %v1069
    %1558 = vmatpush1.bf16.msra.mxu0 %v1068
    %1559 = vmatprep.subr.bf16.mxu0 0
    %1560 = vmatpush1.bf16.msra.mxu0 0
    %1561 = vmatprep.subr.bf16.mxu0 0
    %1562 = vmatpush1.bf16.msra.mxu0 0
    %1563 = vmatprep.subr.bf16.mxu0 0
    %1564 = vmatpush1.bf16.msra.mxu0 0
    %1565 = vmatprep.subr.bf16.mxu0 0
    %1566 = vmatpush1.bf16.msra.mxu0 0
    %1567 = vmatprep.subr.bf16.mxu0 0
    %1568 = vmatpush1.bf16.msra.mxu0 0
    %1569 = vmatprep.subr.bf16.mxu0 0
    %1570 = vmatpush1.bf16.msra.mxu0 0
    %1571 = vmatprep.subr.bf16.mxu0 0
    %1572 = vmatpush1.bf16.msra.mxu0 0
    %1573 = vmatprep.subr.bf16.mxu0 0
    %1574 = vmatpush1.bf16.msra.mxu0 0
    %1575 = vmatprep.subr.bf16.mxu0 0
    %1576 = vmatpush1.bf16.msra.mxu0 0
    %1577 = vmatprep.subr.bf16.mxu0 0
    %1578 = vmatpush1.bf16.msra.mxu0 0
    %1579 = vmatprep.subr.bf16.mxu0 0
    %1580 = vmatpush1.bf16.msra.mxu0 0
    %1581 = vmatprep.subr.bf16.mxu0 0
    %1582 = vmatpush1.bf16.msra.mxu0 0
    %1583 = vmatprep.subr.bf16.mxu0 0
    %1584 = vmatpush1.bf16.msra.mxu0 0
    %1585 = vmatprep.subr.bf16.mxu0 0
    %1586 = vmatpush1.bf16.msra.mxu0 0
    %1587 = vmatprep.subr.bf16.mxu0 0
    %1588 = vmatpush1.bf16.msra.mxu0 0
    %1589 = vmatprep.mubr.bf16.mxu0 0
    %1590 = vmatmul.mubr.bf16.gmra.mrb[0].mxu0 %v1268
    %v1591 = vpop.f32.mrb[0].mxu0
    %v1592 = vadd.f32 %v1551, %v1591
    %v1593 = vpop.f32.mrb[0].mxu0
    %v1594 = vadd.f32 %v1553, %v1593
    %v1595 = vpop.f32.mrb[0].mxu0
    %v1596 = vpop.f32.mrb[0].mxu0
    %1597 = vdwg.mxu0
    %v1598 = vmax.f32 %v1428, 0.0
    %v1599 = vmax.f32 %v1430, 0.0
    %v1600 = vmax.f32 %v1592, 0.0
    %v1601 = vmax.f32 %v1594, 0.0
    %v1602 = vpack.c.bf16 %v1598, %v1598
    %v1603 = vpack.c.bf16 %v1599, %v1599
    %v1604 = vpack.c.bf16 %v1600, %v1600
    %v1605 = vpack.c.bf16 %v1601, %v1601
    %v1606 = vld [vmem:[%s3] sm:$0xff]
    %v1607 = vld [vmem:[%s3 + $0x8] sm:$0xff]
    %v1608 = vld [vmem:[%s3 + $0x10] sm:$0xff]
    %v1609 = vld [vmem:[%s3 + $0x18] sm:$0xff]
    %v1610 = vld [vmem:[%s3 + $0x20] sm:$0xff]
    %v1611 = vld [vmem:[%s3 + $0x28] sm:$0xff]
    %v1612 = vld [vmem:[%s3 + $0x30] sm:$0xff]
    %v1613 = vld [vmem:[%s3 + $0x38] sm:$0xff]
    %v1614 = vld [vmem:[%s3 + $0x40] sm:$0xff]
    %v1615 = vld [vmem:[%s3 + $0x48] sm:$0xff]
    %v1616 = vld [vmem:[%s3 + $0x50] sm:$0xff]
    %v1617 = vld [vmem:[%s3 + $0x58] sm:$0xff]
    %v1618 = vld [vmem:[%s3 + $0x60] sm:$0xff]
    %v1619 = vld [vmem:[%s3 + $0x68] sm:$0xff]
    %v1620 = vld [vmem:[%s3 + $0x70] sm:$0xff]
    %v1621 = vld [vmem:[%s3 + $0x78] sm:$0xff]
    %v1622 = vld [vmem:[%s3 + $0x80] sm:$0xff]
    %v1623 = vld [vmem:[%s3 + $0x88] sm:$0xff]
    %v1624 = vld [vmem:[%s3 + $0x90] sm:$0xff]
    %v1625 = vld [vmem:[%s3 + $0x98] sm:$0xff]
    %v1626 = vld [vmem:[%s3 + $0xa0] sm:$0xff]
    %v1627 = vld [vmem:[%s3 + $0xa8] sm:$0xff]
    %v1628 = vld [vmem:[%s3 + $0xb0] sm:$0xff]
    %v1629 = vld [vmem:[%s3 + $0xb8] sm:$0xff]
    %v1630 = vld [vmem:[%s3 + $0xc0] sm:$0xff]
    %v1631 = vld [vmem:[%s3 + $0xc8] sm:$0xff]
    %v1632 = vld [vmem:[%s3 + $0xd0] sm:$0xff]
    %v1633 = vld [vmem:[%s3 + $0xd8] sm:$0xff]
    %v1634 = vld [vmem:[%s3 + $0xe0] sm:$0xff]
    %v1635 = vld [vmem:[%s3 + $0xe8] sm:$0xff]
    %v1636 = vld [vmem:[%s3 + $0xf0] sm:$0xff]
    %v1637 = vld [vmem:[%s3 + $0xf8] sm:$0xff]
    %v1638 = vld [vmem:[%s3 + $0x100] sm:$0xff]
    %v1639 = vld [vmem:[%s3 + $0x108] sm:$0xff]
    %v1640 = vld [vmem:[%s3 + $0x110] sm:$0xff]
    %v1641 = vld [vmem:[%s3 + $0x118] sm:$0xff]
    %v1642 = vld [vmem:[%s3 + $0x120] sm:$0xff]
    %v1643 = vld [vmem:[%s3 + $0x128] sm:$0xff]
    %v1644 = vld [vmem:[%s3 + $0x130] sm:$0xff]
    %v1645 = vld [vmem:[%s3 + $0x138] sm:$0xff]
    %v1646 = vld [vmem:[%s3 + $0x140] sm:$0xff]
    %v1647 = vld [vmem:[%s3 + $0x148] sm:$0xff]
    %v1648 = vld [vmem:[%s3 + $0x150] sm:$0xff]
    %v1649 = vld [vmem:[%s3 + $0x158] sm:$0xff]
    %v1650 = vld [vmem:[%s3 + $0x160] sm:$0xff]
    %v1651 = vld [vmem:[%s3 + $0x168] sm:$0xff]
    %v1652 = vld [vmem:[%s3 + $0x170] sm:$0xff]
    %v1653 = vld [vmem:[%s3 + $0x178] sm:$0xff]
    %v1654 = vld [vmem:[%s3 + $0x180] sm:$0xff]
    %v1655 = vld [vmem:[%s3 + $0x188] sm:$0xff]
    %v1656 = vld [vmem:[%s3 + $0x190] sm:$0xff]
    %v1657 = vld [vmem:[%s3 + $0x198] sm:$0xff]
    %v1658 = vld [vmem:[%s3 + $0x1a0] sm:$0xff]
    %v1659 = vld [vmem:[%s3 + $0x1a8] sm:$0xff]
    %v1660 = vld [vmem:[%s3 + $0x1b0] sm:$0xff]
    %v1661 = vld [vmem:[%s3 + $0x1b8] sm:$0xff]
    %v1662 = vld [vmem:[%s3 + $0x1c0] sm:$0xff]
    %v1663 = vld [vmem:[%s3 + $0x1c8] sm:$0xff]
    %v1664 = vld [vmem:[%s3 + $0x1d0] sm:$0xff]
    %v1665 = vld [vmem:[%s3 + $0x1d8] sm:$0xff]
    %v1666 = vld [vmem:[%s3 + $0x1e0] sm:$0xff]
    %v1667 = vld [vmem:[%s3 + $0x1e8] sm:$0xff]
    %v1668 = vld [vmem:[%s3 + $0x1f0] sm:$0xff]
    %v1669 = vld [vmem:[%s3 + $0x1f8] sm:$0xff]
    %v1670 = vld [vmem:[%s4] sm:$0x3]
    %v1672 = vlaneseq
    %v1673 = vshrl.u32 %v1672, 7
    %v1674 = vsub.s32 0, %v1673
    %v1675 = vrot.slane %v1670, %v1674
    %v1676 = vlaneseq
    %v1677 = vshrl.u32 %v1676, 7
    %v1678 = vsub.s32 1, %v1677
    %v1679 = vrot.slane %v1670, %v1678
    %v1746 = vunpack.c.l.b16 %v1606
    %v1747 = vunpack.c.h.b16 %v1606
    %v1748 = vunpack.c.l.b16 %v1607
    %v1749 = vunpack.c.h.b16 %v1607
    %v1750 = vunpack.c.l.b16 %v1608
    %v1751 = vunpack.c.h.b16 %v1608
    %v1752 = vunpack.c.l.b16 %v1609
    %v1753 = vunpack.c.h.b16 %v1609
    %v1754 = vunpack.c.l.b16 %v1610
    %v1755 = vunpack.c.h.b16 %v1610
    %v1756 = vunpack.c.l.b16 %v1611
    %v1757 = vunpack.c.h.b16 %v1611
    %v1758 = vunpack.c.l.b16 %v1612
    %v1759 = vunpack.c.h.b16 %v1612
    %v1760 = vunpack.c.l.b16 %v1613
    %v1761 = vunpack.c.h.b16 %v1613
    %v1762 = vunpack.c.l.b16 %v1614
    %v1763 = vunpack.c.h.b16 %v1614
    %v1764 = vunpack.c.l.b16 %v1615
    %v1765 = vunpack.c.h.b16 %v1615
    %v1766 = vunpack.c.l.b16 %v1616
    %v1767 = vunpack.c.h.b16 %v1616
    %v1768 = vunpack.c.l.b16 %v1617
    %v1769 = vunpack.c.h.b16 %v1617
    %v1770 = vunpack.c.l.b16 %v1618
    %v1771 = vunpack.c.h.b16 %v1618
    %v1772 = vunpack.c.l.b16 %v1619
    %v1773 = vunpack.c.h.b16 %v1619
    %v1774 = vunpack.c.l.b16 %v1620
    %v1775 = vunpack.c.h.b16 %v1620
    %v1776 = vunpack.c.l.b16 %v1621
    %v1777 = vunpack.c.h.b16 %v1621
    %v1778 = vunpack.c.l.b16 %v1622
    %v1779 = vunpack.c.h.b16 %v1622
    %v1780 = vunpack.c.l.b16 %v1623
    %v1781 = vunpack.c.h.b16 %v1623
    %v1782 = vunpack.c.l.b16 %v1624
    %v1783 = vunpack.c.h.b16 %v1624
    %v1784 = vunpack.c.l.b16 %v1625
    %v1785 = vunpack.c.h.b16 %v1625
    %v1786 = vunpack.c.l.b16 %v1626
    %v1787 = vunpack.c.h.b16 %v1626
    %v1788 = vunpack.c.l.b16 %v1627
    %v1789 = vunpack.c.h.b16 %v1627
    %v1790 = vunpack.c.l.b16 %v1628
    %v1791 = vunpack.c.h.b16 %v1628
    %v1792 = vunpack.c.l.b16 %v1629
    %v1793 = vunpack.c.h.b16 %v1629
    %v1794 = vunpack.c.l.b16 %v1630
    %v1795 = vunpack.c.h.b16 %v1630
    %v1796 = vunpack.c.l.b16 %v1631
    %v1797 = vunpack.c.h.b16 %v1631
    %v1798 = vunpack.c.l.b16 %v1632
    %v1799 = vunpack.c.h.b16 %v1632
    %v1800 = vunpack.c.l.b16 %v1633
    %v1801 = vunpack.c.h.b16 %v1633
    %v1802 = vunpack.c.l.b16 %v1634
    %v1803 = vunpack.c.h.b16 %v1634
    %v1804 = vunpack.c.l.b16 %v1635
    %v1805 = vunpack.c.h.b16 %v1635
    %v1806 = vunpack.c.l.b16 %v1636
    %v1807 = vunpack.c.h.b16 %v1636
    %v1808 = vunpack.c.l.b16 %v1637
    %v1809 = vunpack.c.h.b16 %v1637
    %v1810 = vunpack.c.l.b16 %v1638
    %v1811 = vunpack.c.h.b16 %v1638
    %v1812 = vunpack.c.l.b16 %v1639
    %v1813 = vunpack.c.h.b16 %v1639
    %v1814 = vunpack.c.l.b16 %v1640
    %v1815 = vunpack.c.h.b16 %v1640
    %v1816 = vunpack.c.l.b16 %v1641
    %v1817 = vunpack.c.h.b16 %v1641
    %v1818 = vunpack.c.l.b16 %v1642
    %v1819 = vunpack.c.h.b16 %v1642
    %v1820 = vunpack.c.l.b16 %v1643
    %v1821 = vunpack.c.h.b16 %v1643
    %v1822 = vunpack.c.l.b16 %v1644
    %v1823 = vunpack.c.h.b16 %v1644
    %v1824 = vunpack.c.l.b16 %v1645
    %v1825 = vunpack.c.h.b16 %v1645
    %v1826 = vunpack.c.l.b16 %v1646
    %v1827 = vunpack.c.h.b16 %v1646
    %v1828 = vunpack.c.l.b16 %v1647
    %v1829 = vunpack.c.h.b16 %v1647
    %v1830 = vunpack.c.l.b16 %v1648
    %v1831 = vunpack.c.h.b16 %v1648
    %v1832 = vunpack.c.l.b16 %v1649
    %v1833 = vunpack.c.h.b16 %v1649
    %v1834 = vunpack.c.l.b16 %v1650
    %v1835 = vunpack.c.h.b16 %v1650
    %v1836 = vunpack.c.l.b16 %v1651
    %v1837 = vunpack.c.h.b16 %v1651
    %v1838 = vunpack.c.l.b16 %v1652
    %v1839 = vunpack.c.h.b16 %v1652
    %v1840 = vunpack.c.l.b16 %v1653
    %v1841 = vunpack.c.h.b16 %v1653
    %v1842 = vunpack.c.l.b16 %v1654
    %v1843 = vunpack.c.h.b16 %v1654
    %v1844 = vunpack.c.l.b16 %v1655
    %v1845 = vunpack.c.h.b16 %v1655
    %v1846 = vunpack.c.l.b16 %v1656
    %v1847 = vunpack.c.h.b16 %v1656
    %v1848 = vunpack.c.l.b16 %v1657
    %v1849 = vunpack.c.h.b16 %v1657
    %v1850 = vunpack.c.l.b16 %v1658
    %v1851 = vunpack.c.h.b16 %v1658
    %v1852 = vunpack.c.l.b16 %v1659
    %v1853 = vunpack.c.h.b16 %v1659
    %v1854 = vunpack.c.l.b16 %v1660
    %v1855 = vunpack.c.h.b16 %v1660
    %v1856 = vunpack.c.l.b16 %v1661
    %v1857 = vunpack.c.h.b16 %v1661
    %v1858 = vunpack.c.l.b16 %v1662
    %v1859 = vunpack.c.h.b16 %v1662
    %v1860 = vunpack.c.l.b16 %v1663
    %v1861 = vunpack.c.h.b16 %v1663
    %v1862 = vunpack.c.l.b16 %v1664
    %v1863 = vunpack.c.h.b16 %v1664
    %v1864 = vunpack.c.l.b16 %v1665
    %v1865 = vunpack.c.h.b16 %v1665
    %v1866 = vunpack.c.l.b16 %v1666
    %v1867 = vunpack.c.h.b16 %v1666
    %v1868 = vunpack.c.l.b16 %v1667
    %v1869 = vunpack.c.h.b16 %v1667
    %v1870 = vunpack.c.l.b16 %v1668
    %v1871 = vunpack.c.h.b16 %v1668
    %v1872 = vunpack.c.l.b16 %v1669
    %v1873 = vunpack.c.h.b16 %v1669
    %v1874 = vpack.c.b16 %v1748, %v1746
    %v1875 = vpack.c.b16 %v1749, %v1747
    %v1876 = vpack.c.b16 %v1752, %v1750
    %v1877 = vpack.c.b16 %v1753, %v1751
    %v1878 = vpack.c.b16 %v1756, %v1754
    %v1879 = vpack.c.b16 %v1757, %v1755
    %v1880 = vpack.c.b16 %v1760, %v1758
    %v1881 = vpack.c.b16 %v1761, %v1759
    %v1882 = vpack.c.b16 %v1764, %v1762
    %v1883 = vpack.c.b16 %v1765, %v1763
    %v1884 = vpack.c.b16 %v1768, %v1766
    %v1885 = vpack.c.b16 %v1769, %v1767
    %v1886 = vpack.c.b16 %v1772, %v1770
    %v1887 = vpack.c.b16 %v1773, %v1771
    %v1888 = vpack.c.b16 %v1776, %v1774
    %v1889 = vpack.c.b16 %v1777, %v1775
    %v1890 = vpack.c.b16 %v1780, %v1778
    %v1891 = vpack.c.b16 %v1781, %v1779
    %v1892 = vpack.c.b16 %v1784, %v1782
    %v1893 = vpack.c.b16 %v1785, %v1783
    %v1894 = vpack.c.b16 %v1788, %v1786
    %v1895 = vpack.c.b16 %v1789, %v1787
    %v1896 = vpack.c.b16 %v1792, %v1790
    %v1897 = vpack.c.b16 %v1793, %v1791
    %v1898 = vpack.c.b16 %v1796, %v1794
    %v1899 = vpack.c.b16 %v1797, %v1795
    %v1900 = vpack.c.b16 %v1800, %v1798
    %v1901 = vpack.c.b16 %v1801, %v1799
    %v1902 = vpack.c.b16 %v1804, %v1802
    %v1903 = vpack.c.b16 %v1805, %v1803
    %v1904 = vpack.c.b16 %v1808, %v1806
    %v1905 = vpack.c.b16 %v1809, %v1807
    %v1906 = vpack.c.b16 %v1812, %v1810
    %v1907 = vpack.c.b16 %v1813, %v1811
    %v1908 = vpack.c.b16 %v1816, %v1814
    %v1909 = vpack.c.b16 %v1817, %v1815
    %v1910 = vpack.c.b16 %v1820, %v1818
    %v1911 = vpack.c.b16 %v1821, %v1819
    %v1912 = vpack.c.b16 %v1824, %v1822
    %v1913 = vpack.c.b16 %v1825, %v1823
    %v1914 = vpack.c.b16 %v1828, %v1826
    %v1915 = vpack.c.b16 %v1829, %v1827
    %v1916 = vpack.c.b16 %v1832, %v1830
    %v1917 = vpack.c.b16 %v1833, %v1831
    %v1918 = vpack.c.b16 %v1836, %v1834
    %v1919 = vpack.c.b16 %v1837, %v1835
    %v1920 = vpack.c.b16 %v1840, %v1838
    %v1921 = vpack.c.b16 %v1841, %v1839
    %v1922 = vpack.c.b16 %v1844, %v1842
    %v1923 = vpack.c.b16 %v1845, %v1843
    %v1924 = vpack.c.b16 %v1848, %v1846
    %v1925 = vpack.c.b16 %v1849, %v1847
    %v1926 = vpack.c.b16 %v1852, %v1850
    %v1927 = vpack.c.b16 %v1853, %v1851
    %v1928 = vpack.c.b16 %v1856, %v1854
    %v1929 = vpack.c.b16 %v1857, %v1855
    %v1930 = vpack.c.b16 %v1860, %v1858
    %v1931 = vpack.c.b16 %v1861, %v1859
    %v1932 = vpack.c.b16 %v1864, %v1862
    %v1933 = vpack.c.b16 %v1865, %v1863
    %v1934 = vpack.c.b16 %v1868, %v1866
    %v1935 = vpack.c.b16 %v1869, %v1867
    %v1936 = vpack.c.b16 %v1872, %v1870
    %v1937 = vpack.c.b16 %v1873, %v1871
    %2002 = vmatprep.subr.bf16.mxu0 %v1875
    %2003 = vmatpush1.bf16.msra.mxu0 %v1874
    %2004 = vmatprep.subr.bf16.mxu0 %v1877
    %2005 = vmatpush1.bf16.msra.mxu0 %v1876
    %2006 = vmatprep.subr.bf16.mxu0 %v1879
    %2007 = vmatpush1.bf16.msra.mxu0 %v1878
    %2008 = vmatprep.subr.bf16.mxu0 %v1881
    %2009 = vmatpush1.bf16.msra.mxu0 %v1880
    %2010 = vmatprep.subr.bf16.mxu0 %v1883
    %2011 = vmatpush1.bf16.msra.mxu0 %v1882
    %2012 = vmatprep.subr.bf16.mxu0 %v1885
    %2013 = vmatpush1.bf16.msra.mxu0 %v1884
    %2014 = vmatprep.subr.bf16.mxu0 %v1887
    %2015 = vmatpush1.bf16.msra.mxu0 %v1886
    %2016 = vmatprep.subr.bf16.mxu0 %v1889
    %2017 = vmatpush1.bf16.msra.mxu0 %v1888
    %2018 = vmatprep.subr.bf16.mxu0 %v1891
    %2019 = vmatpush1.bf16.msra.mxu0 %v1890
    %2020 = vmatprep.subr.bf16.mxu0 %v1893
    %2021 = vmatpush1.bf16.msra.mxu0 %v1892
    %2022 = vmatprep.subr.bf16.mxu0 %v1895
    %2023 = vmatpush1.bf16.msra.mxu0 %v1894
    %2024 = vmatprep.subr.bf16.mxu0 %v1897
    %2025 = vmatpush1.bf16.msra.mxu0 %v1896
    %2026 = vmatprep.subr.bf16.mxu0 %v1899
    %2027 = vmatpush1.bf16.msra.mxu0 %v1898
    %2028 = vmatprep.subr.bf16.mxu0 %v1901
    %2029 = vmatpush1.bf16.msra.mxu0 %v1900
    %2030 = vmatprep.subr.bf16.mxu0 %v1903
    %2031 = vmatpush1.bf16.msra.mxu0 %v1902
    %2032 = vmatprep.subr.bf16.mxu0 %v1905
    %2033 = vmatpush1.bf16.msra.mxu0 %v1904
    %2034 = vmatprep.mubr.bf16.mxu0 %v1603
    %2035 = vmatmul.mubr.bf16.gmra.mrb[0].mxu0 %v1602
    %v2036 = vpop.f32.mrb[0].mxu0
    %v2037 = vadd.f32 %v1675, %v2036
    %v2038 = vpop.f32.mrb[0].mxu0
    %v2039 = vadd.f32 %v1679, %v2038
    %v2040 = vpop.f32.mrb[0].mxu0
    %v2041 = vpop.f32.mrb[0].mxu0
    %2042 = vdwg.mxu0
    %2043 = vmatprep.subr.bf16.mxu0 %v1907
    %2044 = vmatpush1.bf16.msra.mxu0 %v1906
    %2045 = vmatprep.subr.bf16.mxu0 %v1909
    %2046 = vmatpush1.bf16.msra.mxu0 %v1908
    %2047 = vmatprep.subr.bf16.mxu0 %v1911
    %2048 = vmatpush1.bf16.msra.mxu0 %v1910
    %2049 = vmatprep.subr.bf16.mxu0 %v1913
    %2050 = vmatpush1.bf16.msra.mxu0 %v1912
    %2051 = vmatprep.subr.bf16.mxu0 %v1915
    %2052 = vmatpush1.bf16.msra.mxu0 %v1914
    %2053 = vmatprep.subr.bf16.mxu0 %v1917
    %2054 = vmatpush1.bf16.msra.mxu0 %v1916
    %2055 = vmatprep.subr.bf16.mxu0 %v1919
    %2056 = vmatpush1.bf16.msra.mxu0 %v1918
    %2057 = vmatprep.subr.bf16.mxu0 %v1921
    %2058 = vmatpush1.bf16.msra.mxu0 %v1920
    %2059 = vmatprep.subr.bf16.mxu0 %v1923
    %2060 = vmatpush1.bf16.msra.mxu0 %v1922
    %2061 = vmatprep.subr.bf16.mxu0 %v1925
    %2062 = vmatpush1.bf16.msra.mxu0 %v1924
    %2063 = vmatprep.subr.bf16.mxu0 %v1927
    %2064 = vmatpush1.bf16.msra.mxu0 %v1926
    %2065 = vmatprep.subr.bf16.mxu0 %v1929
    %2066 = vmatpush1.bf16.msra.mxu0 %v1928
    %2067 = vmatprep.subr.bf16.mxu0 %v1931
    %2068 = vmatpush1.bf16.msra.mxu0 %v1930
    %2069 = vmatprep.subr.bf16.mxu0 %v1933
    %2070 = vmatpush1.bf16.msra.mxu0 %v1932
    %2071 = vmatprep.subr.bf16.mxu0 %v1935
    %2072 = vmatpush1.bf16.msra.mxu0 %v1934
    %2073 = vmatprep.subr.bf16.mxu0 %v1937
    %2074 = vmatpush1.bf16.msra.mxu0 %v1936
    %2075 = vmatprep.mubr.bf16.mxu0 %v1605
    %2076 = vmatmul.mubr.bf16.gmra.mrb[0].mxu0 %v1604
    %v2077 = vpop.f32.mrb[0].mxu0
    %v2078 = vadd.f32 %v2037, %v2077
    %v2079 = vpop.f32.mrb[0].mxu0
    %v2080 = vadd.f32 %v2039, %v2079
    %v2081 = vpop.f32.mrb[0].mxu0
    %v2082 = vpop.f32.mrb[0].mxu0
    %2083 = vdwg.mxu0
    %v2084 = vmax.f32 %v2078, 0.0
    %v2085 = vmax.f32 %v2080, 0.0
    %v2086 = vpack.c.bf16 %v2084, %v2084
    %v2087 = vpack.c.bf16 %v2085, %v2085
    %v2088 = vld [vmem:[%s5] sm:$0xff]
    %v2089 = vld [vmem:[%s5 + $0x8] sm:$0xff]
    %v2090 = vld [vmem:[%s5 + $0x10] sm:$0xff]
    %v2091 = vld [vmem:[%s5 + $0x18] sm:$0xff]
    %v2092 = vld [vmem:[%s5 + $0x20] sm:$0xff]
    %v2093 = vld [vmem:[%s5 + $0x28] sm:$0xff]
    %v2094 = vld [vmem:[%s5 + $0x30] sm:$0xff]
    %v2095 = vld [vmem:[%s5 + $0x38] sm:$0xff]
    %v2096 = vld [vmem:[%s5 + $0x40] sm:$0xff]
    %v2097 = vld [vmem:[%s5 + $0x48] sm:$0xff]
    %v2098 = vld [vmem:[%s5 + $0x50] sm:$0xff]
    %v2099 = vld [vmem:[%s5 + $0x58] sm:$0xff]
    %v2100 = vld [vmem:[%s5 + $0x60] sm:$0xff]
    %v2101 = vld [vmem:[%s5 + $0x68] sm:$0xff]
    %v2102 = vld [vmem:[%s5 + $0x70] sm:$0xff]
    %v2103 = vld [vmem:[%s5 + $0x78] sm:$0xff]
    %v2104 = vld [vmem:[%s5 + $0x80] sm:$0xff]
    %v2105 = vld [vmem:[%s5 + $0x88] sm:$0xff]
    %v2106 = vld [vmem:[%s5 + $0x90] sm:$0xff]
    %v2107 = vld [vmem:[%s5 + $0x98] sm:$0xff]
    %v2108 = vld [vmem:[%s5 + $0xa0] sm:$0xff]
    %v2109 = vld [vmem:[%s5 + $0xa8] sm:$0xff]
    %v2110 = vld [vmem:[%s5 + $0xb0] sm:$0xff]
    %v2111 = vld [vmem:[%s5 + $0xb8] sm:$0xff]
    %v2112 = vld [vmem:[%s5 + $0xc0] sm:$0xff]
    %v2113 = vld [vmem:[%s5 + $0xc8] sm:$0xff]
    %v2114 = vld [vmem:[%s5 + $0xd0] sm:$0xff]
    %v2115 = vld [vmem:[%s5 + $0xd8] sm:$0xff]
    %v2116 = vld [vmem:[%s5 + $0xe0] sm:$0xff]
    %v2117 = vld [vmem:[%s5 + $0xe8] sm:$0xff]
    %v2118 = vld [vmem:[%s5 + $0xf0] sm:$0xff]
    %v2119 = vld [vmem:[%s5 + $0xf8] sm:$0xff]
    %v2120 = vld [vmem:[%s6] sm:$0x3]
    %v2122 = vlaneseq
    %v2123 = vshrl.u32 %v2122, 7
    %v2124 = vsub.s32 0, %v2123
    %v2125 = vrot.slane %v2120, %v2124
    %v2126 = vlaneseq
    %v2127 = vshrl.u32 %v2126, 7
    %v2128 = vsub.s32 1, %v2127
    %v2129 = vrot.slane %v2120, %v2128
    %v2164 = vunpack.c.l.b16 %v2088
    %v2165 = vunpack.c.h.b16 %v2088
    %v2166 = vunpack.c.l.b16 %v2089
    %v2167 = vunpack.c.h.b16 %v2089
    %v2168 = vunpack.c.l.b16 %v2090
    %v2169 = vunpack.c.h.b16 %v2090
    %v2170 = vunpack.c.l.b16 %v2091
    %v2171 = vunpack.c.h.b16 %v2091
    %v2172 = vunpack.c.l.b16 %v2092
    %v2173 = vunpack.c.h.b16 %v2092
    %v2174 = vunpack.c.l.b16 %v2093
    %v2175 = vunpack.c.h.b16 %v2093
    %v2176 = vunpack.c.l.b16 %v2094
    %v2177 = vunpack.c.h.b16 %v2094
    %v2178 = vunpack.c.l.b16 %v2095
    %v2179 = vunpack.c.h.b16 %v2095
    %v2180 = vunpack.c.l.b16 %v2096
    %v2181 = vunpack.c.h.b16 %v2096
    %v2182 = vunpack.c.l.b16 %v2097
    %v2183 = vunpack.c.h.b16 %v2097
    %v2184 = vunpack.c.l.b16 %v2098
    %v2185 = vunpack.c.h.b16 %v2098
    %v2186 = vunpack.c.l.b16 %v2099
    %v2187 = vunpack.c.h.b16 %v2099
    %v2188 = vunpack.c.l.b16 %v2100
    %v2189 = vunpack.c.h.b16 %v2100
    %v2190 = vunpack.c.l.b16 %v2101
    %v2191 = vunpack.c.h.b16 %v2101
    %v2192 = vunpack.c.l.b16 %v2102
    %v2193 = vunpack.c.h.b16 %v2102
    %v2194 = vunpack.c.l.b16 %v2103
    %v2195 = vunpack.c.h.b16 %v2103
    %v2196 = vunpack.c.l.b16 %v2104
    %v2197 = vunpack.c.h.b16 %v2104
    %v2198 = vunpack.c.l.b16 %v2105
    %v2199 = vunpack.c.h.b16 %v2105
    %v2200 = vunpack.c.l.b16 %v2106
    %v2201 = vunpack.c.h.b16 %v2106
    %v2202 = vunpack.c.l.b16 %v2107
    %v2203 = vunpack.c.h.b16 %v2107
    %v2204 = vunpack.c.l.b16 %v2108
    %v2205 = vunpack.c.h.b16 %v2108
    %v2206 = vunpack.c.l.b16 %v2109
    %v2207 = vunpack.c.h.b16 %v2109
    %v2208 = vunpack.c.l.b16 %v2110
    %v2209 = vunpack.c.h.b16 %v2110
    %v2210 = vunpack.c.l.b16 %v2111
    %v2211 = vunpack.c.h.b16 %v2111
    %v2212 = vunpack.c.l.b16 %v2112
    %v2213 = vunpack.c.h.b16 %v2112
    %v2214 = vunpack.c.l.b16 %v2113
    %v2215 = vunpack.c.h.b16 %v2113
    %v2216 = vunpack.c.l.b16 %v2114
    %v2217 = vunpack.c.h.b16 %v2114
    %v2218 = vunpack.c.l.b16 %v2115
    %v2219 = vunpack.c.h.b16 %v2115
    %v2220 = vunpack.c.l.b16 %v2116
    %v2221 = vunpack.c.h.b16 %v2116
    %v2222 = vunpack.c.l.b16 %v2117
    %v2223 = vunpack.c.h.b16 %v2117
    %v2224 = vunpack.c.l.b16 %v2118
    %v2225 = vunpack.c.h.b16 %v2118
    %v2226 = vunpack.c.l.b16 %v2119
    %v2227 = vunpack.c.h.b16 %v2119
    %v2228 = vpack.c.b16 %v2166, %v2164
    %v2229 = vpack.c.b16 %v2167, %v2165
    %v2230 = vpack.c.b16 %v2170, %v2168
    %v2231 = vpack.c.b16 %v2171, %v2169
    %v2232 = vpack.c.b16 %v2174, %v2172
    %v2233 = vpack.c.b16 %v2175, %v2173
    %v2234 = vpack.c.b16 %v2178, %v2176
    %v2235 = vpack.c.b16 %v2179, %v2177
    %v2236 = vpack.c.b16 %v2182, %v2180
    %v2237 = vpack.c.b16 %v2183, %v2181
    %v2238 = vpack.c.b16 %v2186, %v2184
    %v2239 = vpack.c.b16 %v2187, %v2185
    %v2240 = vpack.c.b16 %v2190, %v2188
    %v2241 = vpack.c.b16 %v2191, %v2189
    %v2242 = vpack.c.b16 %v2194, %v2192
    %v2243 = vpack.c.b16 %v2195, %v2193
    %v2244 = vpack.c.b16 %v2198, %v2196
    %v2245 = vpack.c.b16 %v2199, %v2197
    %v2246 = vpack.c.b16 %v2202, %v2200
    %v2247 = vpack.c.b16 %v2203, %v2201
    %v2248 = vpack.c.b16 %v2206, %v2204
    %v2249 = vpack.c.b16 %v2207, %v2205
    %v2250 = vpack.c.b16 %v2210, %v2208
    %v2251 = vpack.c.b16 %v2211, %v2209
    %v2252 = vpack.c.b16 %v2214, %v2212
    %v2253 = vpack.c.b16 %v2215, %v2213
    %v2254 = vpack.c.b16 %v2218, %v2216
    %v2255 = vpack.c.b16 %v2219, %v2217
    %v2256 = vpack.c.b16 %v2222, %v2220
    %v2257 = vpack.c.b16 %v2223, %v2221
    %v2258 = vpack.c.b16 %v2226, %v2224
    %v2259 = vpack.c.b16 %v2227, %v2225
    %2292 = vmatprep.subr.bf16.mxu0 %v2229
    %2293 = vmatpush1.bf16.msra.mxu0 %v2228
    %2294 = vmatprep.subr.bf16.mxu0 %v2231
    %2295 = vmatpush1.bf16.msra.mxu0 %v2230
    %2296 = vmatprep.subr.bf16.mxu0 %v2233
    %2297 = vmatpush1.bf16.msra.mxu0 %v2232
    %2298 = vmatprep.subr.bf16.mxu0 %v2235
    %2299 = vmatpush1.bf16.msra.mxu0 %v2234
    %2300 = vmatprep.subr.bf16.mxu0 %v2237
    %2301 = vmatpush1.bf16.msra.mxu0 %v2236
    %2302 = vmatprep.subr.bf16.mxu0 %v2239
    %2303 = vmatpush1.bf16.msra.mxu0 %v2238
    %2304 = vmatprep.subr.bf16.mxu0 %v2241
    %2305 = vmatpush1.bf16.msra.mxu0 %v2240
    %2306 = vmatprep.subr.bf16.mxu0 %v2243
    %2307 = vmatpush1.bf16.msra.mxu0 %v2242
    %2308 = vmatprep.subr.bf16.mxu0 %v2245
    %2309 = vmatpush1.bf16.msra.mxu0 %v2244
    %2310 = vmatprep.subr.bf16.mxu0 %v2247
    %2311 = vmatpush1.bf16.msra.mxu0 %v2246
    %2312 = vmatprep.subr.bf16.mxu0 %v2249
    %2313 = vmatpush1.bf16.msra.mxu0 %v2248
    %2314 = vmatprep.subr.bf16.mxu0 %v2251
    %2315 = vmatpush1.bf16.msra.mxu0 %v2250
    %2316 = vmatprep.subr.bf16.mxu0 %v2253
    %2317 = vmatpush1.bf16.msra.mxu0 %v2252
    %2318 = vmatprep.subr.bf16.mxu0 %v2255
    %2319 = vmatpush1.bf16.msra.mxu0 %v2254
    %2320 = vmatprep.subr.bf16.mxu0 %v2257
    %2321 = vmatpush1.bf16.msra.mxu0 %v2256
    %2322 = vmatprep.subr.bf16.mxu0 %v2259
    %2323 = vmatpush1.bf16.msra.mxu0 %v2258
    %2324 = vmatprep.mubr.bf16.mxu0 %v2087
    %2325 = vmatmul.mubr.bf16.gmra.mrb[0].mxu0 %v2086
    %v2326 = vpop.f32.mrb[0].mxu0
    %v2327 = vadd.f32 %v2125, %v2326
    %v2328 = vpop.f32.mrb[0].mxu0
    %v2329 = vadd.f32 %v2129, %v2328
    %v2330 = vpop.f32.mrb[0].mxu0
    %v2331 = vpop.f32.mrb[0].mxu0
    %2332 = vdwg.mxu0
    %v2333 = vmax.f32 %v2327, 0.0
    %v2334 = vmax.f32 %v2329, 0.0
    %v2335 = vpack.c.bf16 %v2333, %v2333
    %v2336 = vpack.c.bf16 %v2334, %v2334
    %v2337 = vld [vmem:[%s7] sm:$0xff]
    %v2338 = vld [vmem:[%s7 + $0x8] sm:$0xff]
    %v2339 = vld [vmem:[%s7 + $0x10] sm:$0xff]
    %v2340 = vld [vmem:[%s7 + $0x18] sm:$0xff]
    %v2341 = vld [vmem:[%s7 + $0x20] sm:$0xff]
    %v2342 = vld [vmem:[%s7 + $0x28] sm:$0xff]
    %v2343 = vld [vmem:[%s7 + $0x30] sm:$0xff]
    %v2344 = vld [vmem:[%s7 + $0x38] sm:$0xff]
    %v2345 = vld [vmem:[%s7 + $0x40] sm:$0xff]
    %v2346 = vld [vmem:[%s7 + $0x48] sm:$0xff]
    %v2347 = vld [vmem:[%s7 + $0x50] sm:$0xff]
    %v2348 = vld [vmem:[%s7 + $0x58] sm:$0xff]
    %v2349 = vld [vmem:[%s7 + $0x60] sm:$0xff]
    %v2350 = vld [vmem:[%s7 + $0x68] sm:$0xff]
    %v2351 = vld [vmem:[%s7 + $0x70] sm:$0xff]
    %v2352 = vld [vmem:[%s7 + $0x78] sm:$0xff]
    %v2353 = vld [vmem:[%s7 + $0x80] sm:$0xff]
    %v2354 = vld [vmem:[%s7 + $0x88] sm:$0xff]
    %v2355 = vld [vmem:[%s7 + $0x90] sm:$0xff]
    %v2356 = vld [vmem:[%s7 + $0x98] sm:$0xff]
    %v2357 = vld [vmem:[%s7 + $0xa0] sm:$0xff]
    %v2358 = vld [vmem:[%s7 + $0xa8] sm:$0xff]
    %v2359 = vld [vmem:[%s7 + $0xb0] sm:$0xff]
    %v2360 = vld [vmem:[%s7 + $0xb8] sm:$0xff]
    %v2361 = vld [vmem:[%s7 + $0xc0] sm:$0xff]
    %v2362 = vld [vmem:[%s7 + $0xc8] sm:$0xff]
    %v2363 = vld [vmem:[%s7 + $0xd0] sm:$0xff]
    %v2364 = vld [vmem:[%s7 + $0xd8] sm:$0xff]
    %v2365 = vld [vmem:[%s7 + $0xe0] sm:$0xff]
    %v2366 = vld [vmem:[%s7 + $0xe8] sm:$0xff]
    %v2367 = vld [vmem:[%s7 + $0xf0] sm:$0xff]
    %v2368 = vld [vmem:[%s7 + $0xf8] sm:$0xff]
    %v2369 = vld [vmem:[%s7 + $0x100] sm:$0xff]
    %v2370 = vld [vmem:[%s7 + $0x108] sm:$0xff]
    %v2371 = vld [vmem:[%s7 + $0x110] sm:$0xff]
    %v2372 = vld [vmem:[%s7 + $0x118] sm:$0xff]
    %v2373 = vld [vmem:[%s7 + $0x120] sm:$0xff]
    %v2374 = vld [vmem:[%s7 + $0x128] sm:$0xff]
    %v2375 = vld [vmem:[%s7 + $0x130] sm:$0xff]
    %v2376 = vld [vmem:[%s7 + $0x138] sm:$0xff]
    %v2377 = vld [vmem:[%s7 + $0x140] sm:$0xff]
    %v2378 = vld [vmem:[%s7 + $0x148] sm:$0xff]
    %v2379 = vld [vmem:[%s7 + $0x150] sm:$0xff]
    %v2380 = vld [vmem:[%s7 + $0x158] sm:$0xff]
    %v2381 = vld [vmem:[%s7 + $0x160] sm:$0xff]
    %v2382 = vld [vmem:[%s7 + $0x168] sm:$0xff]
    %v2383 = vld [vmem:[%s7 + $0x170] sm:$0xff]
    %v2384 = vld [vmem:[%s7 + $0x178] sm:$0xff]
    %v2385 = vld [vmem:[%s7 + $0x180] sm:$0xff]
    %v2386 = vld [vmem:[%s7 + $0x188] sm:$0xff]
    %v2387 = vld [vmem:[%s7 + $0x190] sm:$0xff]
    %v2388 = vld [vmem:[%s7 + $0x198] sm:$0xff]
    %v2389 = vld [vmem:[%s7 + $0x1a0] sm:$0xff]
    %v2390 = vld [vmem:[%s7 + $0x1a8] sm:$0xff]
    %v2391 = vld [vmem:[%s7 + $0x1b0] sm:$0xff]
    %v2392 = vld [vmem:[%s7 + $0x1b8] sm:$0xff]
    %v2393 = vld [vmem:[%s7 + $0x1c0] sm:$0xff]
    %v2394 = vld [vmem:[%s7 + $0x1c8] sm:$0xff]
    %v2395 = vld [vmem:[%s7 + $0x1d0] sm:$0xff]
    %v2396 = vld [vmem:[%s7 + $0x1d8] sm:$0xff]
    %v2397 = vld [vmem:[%s7 + $0x1e0] sm:$0xff]
    %v2398 = vld [vmem:[%s7 + $0x1e8] sm:$0xff]
    %v2399 = vld [vmem:[%s7 + $0x1f0] sm:$0xff]
    %v2400 = vld [vmem:[%s7 + $0x1f8] sm:$0xff]
    %v2401 = vld [vmem:[%s8] sm:$0xf]
    %v2403 = vlaneseq
    %v2404 = vshrl.u32 %v2403, 7
    %v2405 = vsub.s32 0, %v2404
    %v2406 = vrot.slane %v2401, %v2405
    %v2407 = vlaneseq
    %v2408 = vshrl.u32 %v2407, 7
    %v2409 = vsub.s32 1, %v2408
    %v2410 = vrot.slane %v2401, %v2409
    %v2411 = vlaneseq
    %v2412 = vshrl.u32 %v2411, 7
    %v2413 = vsub.s32 2, %v2412
    %v2414 = vrot.slane %v2401, %v2413
    %v2415 = vlaneseq
    %v2416 = vshrl.u32 %v2415, 7
    %v2417 = vsub.s32 3, %v2416
    %v2418 = vrot.slane %v2401, %v2417
    %v2487 = vunpack.c.l.b16 %v2337
    %v2488 = vunpack.c.h.b16 %v2337
    %v2489 = vunpack.c.l.b16 %v2338
    %v2490 = vunpack.c.h.b16 %v2338
    %v2491 = vunpack.c.l.b16 %v2339
    %v2492 = vunpack.c.h.b16 %v2339
    %v2493 = vunpack.c.l.b16 %v2340
    %v2494 = vunpack.c.h.b16 %v2340
    %v2495 = vunpack.c.l.b16 %v2341
    %v2496 = vunpack.c.h.b16 %v2341
    %v2497 = vunpack.c.l.b16 %v2342
    %v2498 = vunpack.c.h.b16 %v2342
    %v2499 = vunpack.c.l.b16 %v2343
    %v2500 = vunpack.c.h.b16 %v2343
    %v2501 = vunpack.c.l.b16 %v2344
    %v2502 = vunpack.c.h.b16 %v2344
    %v2503 = vunpack.c.l.b16 %v2345
    %v2504 = vunpack.c.h.b16 %v2345
    %v2505 = vunpack.c.l.b16 %v2346
    %v2506 = vunpack.c.h.b16 %v2346
    %v2507 = vunpack.c.l.b16 %v2347
    %v2508 = vunpack.c.h.b16 %v2347
    %v2509 = vunpack.c.l.b16 %v2348
    %v2510 = vunpack.c.h.b16 %v2348
    %v2511 = vunpack.c.l.b16 %v2349
    %v2512 = vunpack.c.h.b16 %v2349
    %v2513 = vunpack.c.l.b16 %v2350
    %v2514 = vunpack.c.h.b16 %v2350
    %v2515 = vunpack.c.l.b16 %v2351
    %v2516 = vunpack.c.h.b16 %v2351
    %v2517 = vunpack.c.l.b16 %v2352
    %v2518 = vunpack.c.h.b16 %v2352
    %v2519 = vunpack.c.l.b16 %v2353
    %v2520 = vunpack.c.h.b16 %v2353
    %v2521 = vunpack.c.l.b16 %v2354
    %v2522 = vunpack.c.h.b16 %v2354
    %v2523 = vunpack.c.l.b16 %v2355
    %v2524 = vunpack.c.h.b16 %v2355
    %v2525 = vunpack.c.l.b16 %v2356
    %v2526 = vunpack.c.h.b16 %v2356
    %v2527 = vunpack.c.l.b16 %v2357
    %v2528 = vunpack.c.h.b16 %v2357
    %v2529 = vunpack.c.l.b16 %v2358
    %v2530 = vunpack.c.h.b16 %v2358
    %v2531 = vunpack.c.l.b16 %v2359
    %v2532 = vunpack.c.h.b16 %v2359
    %v2533 = vunpack.c.l.b16 %v2360
    %v2534 = vunpack.c.h.b16 %v2360
    %v2535 = vunpack.c.l.b16 %v2361
    %v2536 = vunpack.c.h.b16 %v2361
    %v2537 = vunpack.c.l.b16 %v2362
    %v2538 = vunpack.c.h.b16 %v2362
    %v2539 = vunpack.c.l.b16 %v2363
    %v2540 = vunpack.c.h.b16 %v2363
    %v2541 = vunpack.c.l.b16 %v2364
    %v2542 = vunpack.c.h.b16 %v2364
    %v2543 = vunpack.c.l.b16 %v2365
    %v2544 = vunpack.c.h.b16 %v2365
    %v2545 = vunpack.c.l.b16 %v2366
    %v2546 = vunpack.c.h.b16 %v2366
    %v2547 = vunpack.c.l.b16 %v2367
    %v2548 = vunpack.c.h.b16 %v2367
    %v2549 = vunpack.c.l.b16 %v2368
    %v2550 = vunpack.c.h.b16 %v2368
    %v2551 = vunpack.c.l.b16 %v2369
    %v2552 = vunpack.c.h.b16 %v2369
    %v2553 = vunpack.c.l.b16 %v2370
    %v2554 = vunpack.c.h.b16 %v2370
    %v2555 = vunpack.c.l.b16 %v2371
    %v2556 = vunpack.c.h.b16 %v2371
    %v2557 = vunpack.c.l.b16 %v2372
    %v2558 = vunpack.c.h.b16 %v2372
    %v2559 = vunpack.c.l.b16 %v2373
    %v2560 = vunpack.c.h.b16 %v2373
    %v2561 = vunpack.c.l.b16 %v2374
    %v2562 = vunpack.c.h.b16 %v2374
    %v2563 = vunpack.c.l.b16 %v2375
    %v2564 = vunpack.c.h.b16 %v2375
    %v2565 = vunpack.c.l.b16 %v2376
    %v2566 = vunpack.c.h.b16 %v2376
    %v2567 = vunpack.c.l.b16 %v2377
    %v2568 = vunpack.c.h.b16 %v2377
    %v2569 = vunpack.c.l.b16 %v2378
    %v2570 = vunpack.c.h.b16 %v2378
    %v2571 = vunpack.c.l.b16 %v2379
    %v2572 = vunpack.c.h.b16 %v2379
    %v2573 = vunpack.c.l.b16 %v2380
    %v2574 = vunpack.c.h.b16 %v2380
    %v2575 = vunpack.c.l.b16 %v2381
    %v2576 = vunpack.c.h.b16 %v2381
    %v2577 = vunpack.c.l.b16 %v2382
    %v2578 = vunpack.c.h.b16 %v2382
    %v2579 = vunpack.c.l.b16 %v2383
    %v2580 = vunpack.c.h.b16 %v2383
    %v2581 = vunpack.c.l.b16 %v2384
    %v2582 = vunpack.c.h.b16 %v2384
    %v2583 = vunpack.c.l.b16 %v2385
    %v2584 = vunpack.c.h.b16 %v2385
    %v2585 = vunpack.c.l.b16 %v2386
    %v2586 = vunpack.c.h.b16 %v2386
    %v2587 = vunpack.c.l.b16 %v2387
    %v2588 = vunpack.c.h.b16 %v2387
    %v2589 = vunpack.c.l.b16 %v2388
    %v2590 = vunpack.c.h.b16 %v2388
    %v2591 = vunpack.c.l.b16 %v2389
    %v2592 = vunpack.c.h.b16 %v2389
    %v2593 = vunpack.c.l.b16 %v2390
    %v2594 = vunpack.c.h.b16 %v2390
    %v2595 = vunpack.c.l.b16 %v2391
    %v2596 = vunpack.c.h.b16 %v2391
    %v2597 = vunpack.c.l.b16 %v2392
    %v2598 = vunpack.c.h.b16 %v2392
    %v2599 = vunpack.c.l.b16 %v2393
    %v2600 = vunpack.c.h.b16 %v2393
    %v2601 = vunpack.c.l.b16 %v2394
    %v2602 = vunpack.c.h.b16 %v2394
    %v2603 = vunpack.c.l.b16 %v2395
    %v2604 = vunpack.c.h.b16 %v2395
    %v2605 = vunpack.c.l.b16 %v2396
    %v2606 = vunpack.c.h.b16 %v2396
    %v2607 = vunpack.c.l.b16 %v2397
    %v2608 = vunpack.c.h.b16 %v2397
    %v2609 = vunpack.c.l.b16 %v2398
    %v2610 = vunpack.c.h.b16 %v2398
    %v2611 = vunpack.c.l.b16 %v2399
    %v2612 = vunpack.c.h.b16 %v2399
    %v2613 = vunpack.c.l.b16 %v2400
    %v2614 = vunpack.c.h.b16 %v2400
    %v2615 = vpack.c.b16 %v2491, %v2487
    %v2616 = vpack.c.b16 %v2492, %v2488
    %v2617 = vpack.c.b16 %v2493, %v2489
    %v2618 = vpack.c.b16 %v2494, %v2490
    %v2619 = vpack.c.b16 %v2499, %v2495
    %v2620 = vpack.c.b16 %v2500, %v2496
    %v2621 = vpack.c.b16 %v2501, %v2497
    %v2622 = vpack.c.b16 %v2502, %v2498
    %v2623 = vpack.c.b16 %v2507, %v2503
    %v2624 = vpack.c.b16 %v2508, %v2504
    %v2625 = vpack.c.b16 %v2509, %v2505
    %v2626 = vpack.c.b16 %v2510, %v2506
    %v2627 = vpack.c.b16 %v2515, %v2511
    %v2628 = vpack.c.b16 %v2516, %v2512
    %v2629 = vpack.c.b16 %v2517, %v2513
    %v2630 = vpack.c.b16 %v2518, %v2514
    %v2631 = vpack.c.b16 %v2523, %v2519
    %v2632 = vpack.c.b16 %v2524, %v2520
    %v2633 = vpack.c.b16 %v2525, %v2521
    %v2634 = vpack.c.b16 %v2526, %v2522
    %v2635 = vpack.c.b16 %v2531, %v2527
    %v2636 = vpack.c.b16 %v2532, %v2528
    %v2637 = vpack.c.b16 %v2533, %v2529
    %v2638 = vpack.c.b16 %v2534, %v2530
    %v2639 = vpack.c.b16 %v2539, %v2535
    %v2640 = vpack.c.b16 %v2540, %v2536
    %v2641 = vpack.c.b16 %v2541, %v2537
    %v2642 = vpack.c.b16 %v2542, %v2538
    %v2643 = vpack.c.b16 %v2547, %v2543
    %v2644 = vpack.c.b16 %v2548, %v2544
    %v2645 = vpack.c.b16 %v2549, %v2545
    %v2646 = vpack.c.b16 %v2550, %v2546
    %v2647 = vpack.c.b16 %v2555, %v2551
    %v2648 = vpack.c.b16 %v2556, %v2552
    %v2649 = vpack.c.b16 %v2557, %v2553
    %v2650 = vpack.c.b16 %v2558, %v2554
    %v2651 = vpack.c.b16 %v2563, %v2559
    %v2652 = vpack.c.b16 %v2564, %v2560
    %v2653 = vpack.c.b16 %v2565, %v2561
    %v2654 = vpack.c.b16 %v2566, %v2562
    %v2655 = vpack.c.b16 %v2571, %v2567
    %v2656 = vpack.c.b16 %v2572, %v2568
    %v2657 = vpack.c.b16 %v2573, %v2569
    %v2658 = vpack.c.b16 %v2574, %v2570
    %v2659 = vpack.c.b16 %v2579, %v2575
    %v2660 = vpack.c.b16 %v2580, %v2576
    %v2661 = vpack.c.b16 %v2581, %v2577
    %v2662 = vpack.c.b16 %v2582, %v2578
    %v2663 = vpack.c.b16 %v2587, %v2583
    %v2664 = vpack.c.b16 %v2588, %v2584
    %v2665 = vpack.c.b16 %v2589, %v2585
    %v2666 = vpack.c.b16 %v2590, %v2586
    %v2667 = vpack.c.b16 %v2595, %v2591
    %v2668 = vpack.c.b16 %v2596, %v2592
    %v2669 = vpack.c.b16 %v2597, %v2593
    %v2670 = vpack.c.b16 %v2598, %v2594
    %v2671 = vpack.c.b16 %v2603, %v2599
    %v2672 = vpack.c.b16 %v2604, %v2600
    %v2673 = vpack.c.b16 %v2605, %v2601
    %v2674 = vpack.c.b16 %v2606, %v2602
    %v2675 = vpack.c.b16 %v2611, %v2607
    %v2676 = vpack.c.b16 %v2612, %v2608
    %v2677 = vpack.c.b16 %v2613, %v2609
    %v2678 = vpack.c.b16 %v2614, %v2610
    %2743 = vmatprep.subr.bf16.mxu0 %v2616
    %2744 = vmatpush1.bf16.msra.mxu0 %v2615
    %2745 = vmatprep.subr.bf16.mxu0 %v2620
    %2746 = vmatpush1.bf16.msra.mxu0 %v2619
    %2747 = vmatprep.subr.bf16.mxu0 %v2624
    %2748 = vmatpush1.bf16.msra.mxu0 %v2623
    %2749 = vmatprep.subr.bf16.mxu0 %v2628
    %2750 = vmatpush1.bf16.msra.mxu0 %v2627
    %2751 = vmatprep.subr.bf16.mxu0 %v2632
    %2752 = vmatpush1.bf16.msra.mxu0 %v2631
    %2753 = vmatprep.subr.bf16.mxu0 %v2636
    %2754 = vmatpush1.bf16.msra.mxu0 %v2635
    %2755 = vmatprep.subr.bf16.mxu0 %v2640
    %2756 = vmatpush1.bf16.msra.mxu0 %v2639
    %2757 = vmatprep.subr.bf16.mxu0 %v2644
    %2758 = vmatpush1.bf16.msra.mxu0 %v2643
    %2759 = vmatprep.subr.bf16.mxu0 %v2648
    %2760 = vmatpush1.bf16.msra.mxu0 %v2647
    %2761 = vmatprep.subr.bf16.mxu0 %v2652
    %2762 = vmatpush1.bf16.msra.mxu0 %v2651
    %2763 = vmatprep.subr.bf16.mxu0 %v2656
    %2764 = vmatpush1.bf16.msra.mxu0 %v2655
    %2765 = vmatprep.subr.bf16.mxu0 %v2660
    %2766 = vmatpush1.bf16.msra.mxu0 %v2659
    %2767 = vmatprep.subr.bf16.mxu0 %v2664
    %2768 = vmatpush1.bf16.msra.mxu0 %v2663
    %2769 = vmatprep.subr.bf16.mxu0 %v2668
    %2770 = vmatpush1.bf16.msra.mxu0 %v2667
    %2771 = vmatprep.subr.bf16.mxu0 %v2672
    %2772 = vmatpush1.bf16.msra.mxu0 %v2671
    %2773 = vmatprep.subr.bf16.mxu0 %v2676
    %2774 = vmatpush1.bf16.msra.mxu0 %v2675
    %2775 = vmatprep.mubr.bf16.mxu0 %v2336
    %2776 = vmatmul.mubr.bf16.gmra.mrb[0].mxu0 %v2335
    %v2777 = vpop.f32.mrb[0].mxu0
    %v2778 = vadd.f32 %v2406, %v2777
    %v2779 = vpop.f32.mrb[0].mxu0
    %v2780 = vadd.f32 %v2410, %v2779
    %v2781 = vpop.f32.mrb[0].mxu0
    %v2782 = vpop.f32.mrb[0].mxu0
    %2783 = vdwg.mxu0
    %2784 = vmatprep.subr.bf16.mxu0 %v2618
    %2785 = vmatpush1.bf16.msra.mxu0 %v2617
    %2786 = vmatprep.subr.bf16.mxu0 %v2622
    %2787 = vmatpush1.bf16.msra.mxu0 %v2621
    %2788 = vmatprep.subr.bf16.mxu0 %v2626
    %2789 = vmatpush1.bf16.msra.mxu0 %v2625
    %2790 = vmatprep.subr.bf16.mxu0 %v2630
    %2791 = vmatpush1.bf16.msra.mxu0 %v2629
    %2792 = vmatprep.subr.bf16.mxu0 %v2634
    %2793 = vmatpush1.bf16.msra.mxu0 %v2633
    %2794 = vmatprep.subr.bf16.mxu0 %v2638
    %2795 = vmatpush1.bf16.msra.mxu0 %v2637
    %2796 = vmatprep.subr.bf16.mxu0 %v2642
    %2797 = vmatpush1.bf16.msra.mxu0 %v2641
    %2798 = vmatprep.subr.bf16.mxu0 %v2646
    %2799 = vmatpush1.bf16.msra.mxu0 %v2645
    %2800 = vmatprep.subr.bf16.mxu0 %v2650
    %2801 = vmatpush1.bf16.msra.mxu0 %v2649
    %2802 = vmatprep.subr.bf16.mxu0 %v2654
    %2803 = vmatpush1.bf16.msra.mxu0 %v2653
    %2804 = vmatprep.subr.bf16.mxu0 %v2658
    %2805 = vmatpush1.bf16.msra.mxu0 %v2657
    %2806 = vmatprep.subr.bf16.mxu0 %v2662
    %2807 = vmatpush1.bf16.msra.mxu0 %v2661
    %2808 = vmatprep.subr.bf16.mxu0 %v2666
    %2809 = vmatpush1.bf16.msra.mxu0 %v2665
    %2810 = vmatprep.subr.bf16.mxu0 %v2670
    %2811 = vmatpush1.bf16.msra.mxu0 %v2669
    %2812 = vmatprep.subr.bf16.mxu0 %v2674
    %2813 = vmatpush1.bf16.msra.mxu0 %v2673
    %2814 = vmatprep.subr.bf16.mxu0 %v2678
    %2815 = vmatpush1.bf16.msra.mxu0 %v2677
    %2816 = vmatprep.mubr.bf16.mxu0 %v2336
    %2817 = vmatmul.mubr.bf16.gmra.mrb[0].mxu0 %v2335
    %v2818 = vpop.f32.mrb[0].mxu0
    %v2819 = vadd.f32 %v2414, %v2818
    %v2820 = vpop.f32.mrb[0].mxu0
    %v2821 = vadd.f32 %v2418, %v2820
    %v2822 = vpop.f32.mrb[0].mxu0
    %v2823 = vpop.f32.mrb[0].mxu0
    %2824 = vdwg.mxu0
    %v2825 = vmax.f32 %v2778, 0.0
    %v2826 = vmax.f32 %v2780, 0.0
    %v2827 = vmax.f32 %v2819, 0.0
    %v2828 = vmax.f32 %v2821, 0.0
    %v2829 = vpack.c.bf16 %v2825, %v2825
    %v2830 = vpack.c.bf16 %v2826, %v2826
    %v2831 = vpack.c.bf16 %v2827, %v2827
    %v2832 = vpack.c.bf16 %v2828, %v2828
    %v2833 = vld [vmem:[%s9] sm:$0xff]
    %v2834 = vld [vmem:[%s9 + $0x8] sm:$0xff]
    %v2835 = vld [vmem:[%s9 + $0x10] sm:$0xff]
    %v2836 = vld [vmem:[%s9 + $0x18] sm:$0xf]
    %v2837 = vld [vmem:[%s9 + $0x1c] sm:$0xff]
    %v2838 = vld [vmem:[%s9 + $0x24] sm:$0xff]
    %v2839 = vld [vmem:[%s9 + $0x2c] sm:$0xff]
    %v2840 = vld [vmem:[%s9 + $0x34] sm:$0xf]
    %v2841 = vld [vmem:[%s9 + $0x38] sm:$0xff]
    %v2842 = vld [vmem:[%s9 + $0x40] sm:$0xff]
    %v2843 = vld [vmem:[%s9 + $0x48] sm:$0xff]
    %v2844 = vld [vmem:[%s9 + $0x50] sm:$0xf]
    %v2845 = vld [vmem:[%s9 + $0x54] sm:$0xff]
    %v2846 = vld [vmem:[%s9 + $0x5c] sm:$0xff]
    %v2847 = vld [vmem:[%s9 + $0x64] sm:$0xff]
    %v2848 = vld [vmem:[%s9 + $0x6c] sm:$0xf]
    %v2849 = vld [vmem:[%s9 + $0x70] sm:$0xff]
    %v2850 = vld [vmem:[%s9 + $0x78] sm:$0xff]
    %v2851 = vld [vmem:[%s9 + $0x80] sm:$0xff]
    %v2852 = vld [vmem:[%s9 + $0x88] sm:$0xf]
    %v2853 = vld [vmem:[%s9 + $0x8c] sm:$0xff]
    %v2854 = vld [vmem:[%s9 + $0x94] sm:$0xff]
    %v2855 = vld [vmem:[%s9 + $0x9c] sm:$0xff]
    %v2856 = vld [vmem:[%s9 + $0xa4] sm:$0xf]
    %v2857 = vld [vmem:[%s9 + $0xa8] sm:$0xff]
    %v2858 = vld [vmem:[%s9 + $0xb0] sm:$0xff]
    %v2859 = vld [vmem:[%s9 + $0xb8] sm:$0xff]
    %v2860 = vld [vmem:[%s9 + $0xc0] sm:$0xf]
    %v2861 = vld [vmem:[%s9 + $0xc4] sm:$0xff]
    %v2862 = vld [vmem:[%s9 + $0xcc] sm:$0xff]
    %v2863 = vld [vmem:[%s9 + $0xd4] sm:$0xff]
    %v2864 = vld [vmem:[%s9 + $0xdc] sm:$0xf]
    %v2865 = vld [vmem:[%s9 + $0xe0] sm:$0xff]
    %v2866 = vld [vmem:[%s9 + $0xe8] sm:$0xff]
    %v2867 = vld [vmem:[%s9 + $0xf0] sm:$0xff]
    %v2868 = vld [vmem:[%s9 + $0xf8] sm:$0xf]
    %v2869 = vld [vmem:[%s9 + $0xfc] sm:$0xff]
    %v2870 = vld [vmem:[%s9 + $0x104] sm:$0xff]
    %v2871 = vld [vmem:[%s9 + $0x10c] sm:$0xff]
    %v2872 = vld [vmem:[%s9 + $0x114] sm:$0xf]
    %v2873 = vld [vmem:[%s9 + $0x118] sm:$0xff]
    %v2874 = vld [vmem:[%s9 + $0x120] sm:$0xff]
    %v2875 = vld [vmem:[%s9 + $0x128] sm:$0xff]
    %v2876 = vld [vmem:[%s9 + $0x130] sm:$0xf]
    %v2877 = vld [vmem:[%s9 + $0x134] sm:$0xff]
    %v2878 = vld [vmem:[%s9 + $0x13c] sm:$0xff]
    %v2879 = vld [vmem:[%s9 + $0x144] sm:$0xff]
    %v2880 = vld [vmem:[%s9 + $0x14c] sm:$0xf]
    %v2881 = vld [vmem:[%s9 + $0x150] sm:$0xff]
    %v2882 = vld [vmem:[%s9 + $0x158] sm:$0xff]
    %v2883 = vld [vmem:[%s9 + $0x160] sm:$0xff]
    %v2884 = vld [vmem:[%s9 + $0x168] sm:$0xf]
    %v2885 = vld [vmem:[%s9 + $0x16c] sm:$0xff]
    %v2886 = vld [vmem:[%s9 + $0x174] sm:$0xff]
    %v2887 = vld [vmem:[%s9 + $0x17c] sm:$0xff]
    %v2888 = vld [vmem:[%s9 + $0x184] sm:$0xf]
    %v2889 = vld [vmem:[%s9 + $0x188] sm:$0xff]
    %v2890 = vld [vmem:[%s9 + $0x190] sm:$0xff]
    %v2891 = vld [vmem:[%s9 + $0x198] sm:$0xff]
    %v2892 = vld [vmem:[%s9 + $0x1a0] sm:$0xf]
    %v2893 = vld [vmem:[%s9 + $0x1a4] sm:$0xff]
    %v2894 = vld [vmem:[%s9 + $0x1ac] sm:$0xff]
    %v2895 = vld [vmem:[%s9 + $0x1b4] sm:$0xff]
    %v2896 = vld [vmem:[%s9 + $0x1bc] sm:$0xf]
    %v2897 = vld [vmem:[%s9 + $0x1c0] sm:$0xff]
    %v2898 = vld [vmem:[%s9 + $0x1c8] sm:$0xff]
    %v2899 = vld [vmem:[%s9 + $0x1d0] sm:$0xff]
    %v2900 = vld [vmem:[%s9 + $0x1d8] sm:$0xf]
    %v2901 = vld [vmem:[%s9 + $0x1dc] sm:$0xff]
    %v2902 = vld [vmem:[%s9 + $0x1e4] sm:$0xff]
    %v2903 = vld [vmem:[%s9 + $0x1ec] sm:$0xff]
    %v2904 = vld [vmem:[%s9 + $0x1f4] sm:$0xf]
    %v2905 = vld [vmem:[%s9 + $0x1f8] sm:$0xff]
    %v2906 = vld [vmem:[%s9 + $0x200] sm:$0xff]
    %v2907 = vld [vmem:[%s9 + $0x208] sm:$0xff]
    %v2908 = vld [vmem:[%s9 + $0x210] sm:$0xf]
    %v2909 = vld [vmem:[%s9 + $0x214] sm:$0xff]
    %v2910 = vld [vmem:[%s9 + $0x21c] sm:$0xff]
    %v2911 = vld [vmem:[%s9 + $0x224] sm:$0xff]
    %v2912 = vld [vmem:[%s9 + $0x22c] sm:$0xf]
    %v2913 = vld [vmem:[%s9 + $0x230] sm:$0xff]
    %v2914 = vld [vmem:[%s9 + $0x238] sm:$0xff]
    %v2915 = vld [vmem:[%s9 + $0x240] sm:$0xff]
    %v2916 = vld [vmem:[%s9 + $0x248] sm:$0xf]
    %v2917 = vld [vmem:[%s9 + $0x24c] sm:$0xff]
    %v2918 = vld [vmem:[%s9 + $0x254] sm:$0xff]
    %v2919 = vld [vmem:[%s9 + $0x25c] sm:$0xff]
    %v2920 = vld [vmem:[%s9 + $0x264] sm:$0xf]
    %v2921 = vld [vmem:[%s9 + $0x268] sm:$0xff]
    %v2922 = vld [vmem:[%s9 + $0x270] sm:$0xff]
    %v2923 = vld [vmem:[%s9 + $0x278] sm:$0xff]
    %v2924 = vld [vmem:[%s9 + $0x280] sm:$0xf]
    %v2925 = vld [vmem:[%s9 + $0x284] sm:$0xff]
    %v2926 = vld [vmem:[%s9 + $0x28c] sm:$0xff]
    %v2927 = vld [vmem:[%s9 + $0x294] sm:$0xff]
    %v2928 = vld [vmem:[%s9 + $0x29c] sm:$0xf]
    %v2929 = vld [vmem:[%s9 + $0x2a0] sm:$0xff]
    %v2930 = vld [vmem:[%s9 + $0x2a8] sm:$0xff]
    %v2931 = vld [vmem:[%s9 + $0x2b0] sm:$0xff]
    %v2932 = vld [vmem:[%s9 + $0x2b8] sm:$0xf]
    %v2933 = vld [vmem:[%s9 + $0x2bc] sm:$0xff]
    %v2934 = vld [vmem:[%s9 + $0x2c4] sm:$0xff]
    %v2935 = vld [vmem:[%s9 + $0x2cc] sm:$0xff]
    %v2936 = vld [vmem:[%s9 + $0x2d4] sm:$0xf]
    %v2937 = vld [vmem:[%s9 + $0x2d8] sm:$0xff]
    %v2938 = vld [vmem:[%s9 + $0x2e0] sm:$0xff]
    %v2939 = vld [vmem:[%s9 + $0x2e8] sm:$0xff]
    %v2940 = vld [vmem:[%s9 + $0x2f0] sm:$0xf]
    %v2941 = vld [vmem:[%s9 + $0x2f4] sm:$0xff]
    %v2942 = vld [vmem:[%s9 + $0x2fc] sm:$0xff]
    %v2943 = vld [vmem:[%s9 + $0x304] sm:$0xff]
    %v2944 = vld [vmem:[%s9 + $0x30c] sm:$0xf]
    %v2945 = vld [vmem:[%s9 + $0x310] sm:$0xff]
    %v2946 = vld [vmem:[%s9 + $0x318] sm:$0xff]
    %v2947 = vld [vmem:[%s9 + $0x320] sm:$0xff]
    %v2948 = vld [vmem:[%s9 + $0x328] sm:$0xf]
    %v2949 = vld [vmem:[%s9 + $0x32c] sm:$0xff]
    %v2950 = vld [vmem:[%s9 + $0x334] sm:$0xff]
    %v2951 = vld [vmem:[%s9 + $0x33c] sm:$0xff]
    %v2952 = vld [vmem:[%s9 + $0x344] sm:$0xf]
    %v2953 = vld [vmem:[%s9 + $0x348] sm:$0xff]
    %v2954 = vld [vmem:[%s9 + $0x350] sm:$0xff]
    %v2955 = vld [vmem:[%s9 + $0x358] sm:$0xff]
    %v2956 = vld [vmem:[%s9 + $0x360] sm:$0xf]
    %v2957 = vld [vmem:[%s9 + $0x364] sm:$0xff]
    %v2958 = vld [vmem:[%s9 + $0x36c] sm:$0xff]
    %v2959 = vld [vmem:[%s9 + $0x374] sm:$0xff]
    %v2960 = vld [vmem:[%s9 + $0x37c] sm:$0xf]
    %v2961 = vld [vmem:[%s9 + $0x380] sm:$0xff]
    %v2962 = vld [vmem:[%s9 + $0x388] sm:$0xff]
    %v2963 = vld [vmem:[%s9 + $0x390] sm:$0xff]
    %v2964 = vld [vmem:[%s9 + $0x398] sm:$0xf]
    %v2965 = vld [vmem:[%s9 + $0x39c] sm:$0xff]
    %v2966 = vld [vmem:[%s9 + $0x3a4] sm:$0xff]
    %v2967 = vld [vmem:[%s9 + $0x3ac] sm:$0xff]
    %v2968 = vld [vmem:[%s9 + $0x3b4] sm:$0xf]
    %v2969 = vld [vmem:[%s9 + $0x3b8] sm:$0xff]
    %v2970 = vld [vmem:[%s9 + $0x3c0] sm:$0xff]
    %v2971 = vld [vmem:[%s9 + $0x3c8] sm:$0xff]
    %v2972 = vld [vmem:[%s9 + $0x3d0] sm:$0xf]
    %v2973 = vld [vmem:[%s9 + $0x3d4] sm:$0xff]
    %v2974 = vld [vmem:[%s9 + $0x3dc] sm:$0xff]
    %v2975 = vld [vmem:[%s9 + $0x3e4] sm:$0xff]
    %v2976 = vld [vmem:[%s9 + $0x3ec] sm:$0xf]
    %v2977 = vld [vmem:[%s9 + $0x3f0] sm:$0xff]
    %v2978 = vld [vmem:[%s9 + $0x3f8] sm:$0xff]
    %v2979 = vld [vmem:[%s9 + $0x400] sm:$0xff]
    %v2980 = vld [vmem:[%s9 + $0x408] sm:$0xf]
    %v2981 = vld [vmem:[%s9 + $0x40c] sm:$0xff]
    %v2982 = vld [vmem:[%s9 + $0x414] sm:$0xff]
    %v2983 = vld [vmem:[%s9 + $0x41c] sm:$0xff]
    %v2984 = vld [vmem:[%s9 + $0x424] sm:$0xf]
    %v2985 = vld [vmem:[%s9 + $0x428] sm:$0xff]
    %v2986 = vld [vmem:[%s9 + $0x430] sm:$0xff]
    %v2987 = vld [vmem:[%s9 + $0x438] sm:$0xff]
    %v2988 = vld [vmem:[%s9 + $0x440] sm:$0xf]
    %v2989 = vld [vmem:[%s9 + $0x444] sm:$0xff]
    %v2990 = vld [vmem:[%s9 + $0x44c] sm:$0xff]
    %v2991 = vld [vmem:[%s9 + $0x454] sm:$0xff]
    %v2992 = vld [vmem:[%s9 + $0x45c] sm:$0xf]
    %v2993 = vld [vmem:[%s9 + $0x460] sm:$0xff]
    %v2994 = vld [vmem:[%s9 + $0x468] sm:$0xff]
    %v2995 = vld [vmem:[%s9 + $0x470] sm:$0xff]
    %v2996 = vld [vmem:[%s9 + $0x478] sm:$0xf]
    %v2997 = vld [vmem:[%s9 + $0x47c] sm:$0xff]
    %v2998 = vld [vmem:[%s9 + $0x484] sm:$0xff]
    %v2999 = vld [vmem:[%s9 + $0x48c] sm:$0xff]
    %v3000 = vld [vmem:[%s9 + $0x494] sm:$0xf]
    %v3001 = vld [vmem:[%s9 + $0x498] sm:$0xff]
    %v3002 = vld [vmem:[%s9 + $0x4a0] sm:$0xff]
    %v3003 = vld [vmem:[%s9 + $0x4a8] sm:$0xff]
    %v3004 = vld [vmem:[%s9 + $0x4b0] sm:$0xf]
    %v3005 = vld [vmem:[%s9 + $0x4b4] sm:$0xff]
    %v3006 = vld [vmem:[%s9 + $0x4bc] sm:$0xff]
    %v3007 = vld [vmem:[%s9 + $0x4c4] sm:$0xff]
    %v3008 = vld [vmem:[%s9 + $0x4cc] sm:$0xf]
    %v3009 = vld [vmem:[%s9 + $0x4d0] sm:$0xff]
    %v3010 = vld [vmem:[%s9 + $0x4d8] sm:$0xff]
    %v3011 = vld [vmem:[%s9 + $0x4e0] sm:$0xff]
    %v3012 = vld [vmem:[%s9 + $0x4e8] sm:$0xf]
    %v3013 = vld [vmem:[%s9 + $0x4ec] sm:$0xff]
    %v3014 = vld [vmem:[%s9 + $0x4f4] sm:$0xff]
    %v3015 = vld [vmem:[%s9 + $0x4fc] sm:$0xff]
    %v3016 = vld [vmem:[%s9 + $0x504] sm:$0xf]
    %v3017 = vld [vmem:[%s9 + $0x508] sm:$0xff]
    %v3018 = vld [vmem:[%s9 + $0x510] sm:$0xff]
    %v3019 = vld [vmem:[%s9 + $0x518] sm:$0xff]
    %v3020 = vld [vmem:[%s9 + $0x520] sm:$0xf]
    %v3021 = vld [vmem:[%s9 + $0x524] sm:$0xff]
    %v3022 = vld [vmem:[%s9 + $0x52c] sm:$0xff]
    %v3023 = vld [vmem:[%s9 + $0x534] sm:$0xff]
    %v3024 = vld [vmem:[%s9 + $0x53c] sm:$0xf]
    %v3025 = vld [vmem:[%s9 + $0x540] sm:$0xff]
    %v3026 = vld [vmem:[%s9 + $0x548] sm:$0xff]
    %v3027 = vld [vmem:[%s9 + $0x550] sm:$0xff]
    %v3028 = vld [vmem:[%s9 + $0x558] sm:$0xf]
    %v3029 = vld [vmem:[%s9 + $0x55c] sm:$0xff]
    %v3030 = vld [vmem:[%s9 + $0x564] sm:$0xff]
    %v3031 = vld [vmem:[%s9 + $0x56c] sm:$0xff]
    %v3032 = vld [vmem:[%s9 + $0x574] sm:$0xf]
    %v3033 = vld [vmem:[%s9 + $0x578] sm:$0xff]
    %v3034 = vld [vmem:[%s9 + $0x580] sm:$0xff]
    %v3035 = vld [vmem:[%s9 + $0x588] sm:$0xff]
    %v3036 = vld [vmem:[%s9 + $0x590] sm:$0xf]
    %v3037 = vld [vmem:[%s9 + $0x594] sm:$0xff]
    %v3038 = vld [vmem:[%s9 + $0x59c] sm:$0xff]
    %v3039 = vld [vmem:[%s9 + $0x5a4] sm:$0xff]
    %v3040 = vld [vmem:[%s9 + $0x5ac] sm:$0xf]
    %v3041 = vld [vmem:[%s9 + $0x5b0] sm:$0xff]
    %v3042 = vld [vmem:[%s9 + $0x5b8] sm:$0xff]
    %v3043 = vld [vmem:[%s9 + $0x5c0] sm:$0xff]
    %v3044 = vld [vmem:[%s9 + $0x5c8] sm:$0xf]
    %v3045 = vld [vmem:[%s9 + $0x5cc] sm:$0xff]
    %v3046 = vld [vmem:[%s9 + $0x5d4] sm:$0xff]
    %v3047 = vld [vmem:[%s9 + $0x5dc] sm:$0xff]
    %v3048 = vld [vmem:[%s9 + $0x5e4] sm:$0xf]
    %v3049 = vld [vmem:[%s9 + $0x5e8] sm:$0xff]
    %v3050 = vld [vmem:[%s9 + $0x5f0] sm:$0xff]
    %v3051 = vld [vmem:[%s9 + $0x5f8] sm:$0xff]
    %v3052 = vld [vmem:[%s9 + $0x600] sm:$0xf]
    %v3053 = vld [vmem:[%s9 + $0x604] sm:$0xff]
    %v3054 = vld [vmem:[%s9 + $0x60c] sm:$0xff]
    %v3055 = vld [vmem:[%s9 + $0x614] sm:$0xff]
    %v3056 = vld [vmem:[%s9 + $0x61c] sm:$0xf]
    %v3057 = vld [vmem:[%s9 + $0x620] sm:$0xff]
    %v3058 = vld [vmem:[%s9 + $0x628] sm:$0xff]
    %v3059 = vld [vmem:[%s9 + $0x630] sm:$0xff]
    %v3060 = vld [vmem:[%s9 + $0x638] sm:$0xf]
    %v3061 = vld [vmem:[%s9 + $0x63c] sm:$0xff]
    %v3062 = vld [vmem:[%s9 + $0x644] sm:$0xff]
    %v3063 = vld [vmem:[%s9 + $0x64c] sm:$0xff]
    %v3064 = vld [vmem:[%s9 + $0x654] sm:$0xf]
    %v3065 = vld [vmem:[%s9 + $0x658] sm:$0xff]
    %v3066 = vld [vmem:[%s9 + $0x660] sm:$0xff]
    %v3067 = vld [vmem:[%s9 + $0x668] sm:$0xff]
    %v3068 = vld [vmem:[%s9 + $0x670] sm:$0xf]
    %v3069 = vld [vmem:[%s9 + $0x674] sm:$0xff]
    %v3070 = vld [vmem:[%s9 + $0x67c] sm:$0xff]
    %v3071 = vld [vmem:[%s9 + $0x684] sm:$0xff]
    %v3072 = vld [vmem:[%s9 + $0x68c] sm:$0xf]
    %v3073 = vld [vmem:[%s9 + $0x690] sm:$0xff]
    %v3074 = vld [vmem:[%s9 + $0x698] sm:$0xff]
    %v3075 = vld [vmem:[%s9 + $0x6a0] sm:$0xff]
    %v3076 = vld [vmem:[%s9 + $0x6a8] sm:$0xf]
    %v3077 = vld [vmem:[%s9 + $0x6ac] sm:$0xff]
    %v3078 = vld [vmem:[%s9 + $0x6b4] sm:$0xff]
    %v3079 = vld [vmem:[%s9 + $0x6bc] sm:$0xff]
    %v3080 = vld [vmem:[%s9 + $0x6c4] sm:$0xf]
    %v3081 = vld [vmem:[%s9 + $0x6c8] sm:$0xff]
    %v3082 = vld [vmem:[%s9 + $0x6d0] sm:$0xff]
    %v3083 = vld [vmem:[%s9 + $0x6d8] sm:$0xff]
    %v3084 = vld [vmem:[%s9 + $0x6e0] sm:$0xf]
    %v3085 = vld [vmem:[%s9 + $0x6e4] sm:$0xff]
    %v3086 = vld [vmem:[%s9 + $0x6ec] sm:$0xff]
    %v3087 = vld [vmem:[%s9 + $0x6f4] sm:$0xff]
    %v3088 = vld [vmem:[%s9 + $0x6fc] sm:$0xf]
    %v3089 = vld [vmem:[%s10] sm:$0x7f]
    %v3091 = vlaneseq
    %v3092 = vshrl.u32 %v3091, 7
    %v3093 = vsub.s32 0, %v3092
    %v3094 = vrot.slane %v3089, %v3093
    %v3095 = vlaneseq
    %v3096 = vshrl.u32 %v3095, 7
    %v3097 = vsub.s32 1, %v3096
    %v3098 = vrot.slane %v3089, %v3097
    %v3099 = vlaneseq
    %v3100 = vshrl.u32 %v3099, 7
    %v3101 = vsub.s32 2, %v3100
    %v3102 = vrot.slane %v3089, %v3101
    %v3103 = vlaneseq
    %v3104 = vshrl.u32 %v3103, 7
    %v3105 = vsub.s32 3, %v3104
    %v3106 = vrot.slane %v3089, %v3105
    %v3107 = vlaneseq
    %v3108 = vshrl.u32 %v3107, 7
    %v3109 = vsub.s32 4, %v3108
    %v3110 = vrot.slane %v3089, %v3109
    %v3111 = vlaneseq
    %v3112 = vshrl.u32 %v3111, 7
    %v3113 = vsub.s32 5, %v3112
    %v3114 = vrot.slane %v3089, %v3113
    %v3115 = vlaneseq
    %v3116 = vshrl.u32 %v3115, 7
    %v3117 = vsub.s32 6, %v3116
    %v3118 = vrot.slane %v3089, %v3117
    %v3382 = vunpack.c.l.b16 %v2833
    %v3383 = vunpack.c.h.b16 %v2833
    %v3384 = vunpack.c.l.b16 %v2834
    %v3385 = vunpack.c.h.b16 %v2834
    %v3386 = vunpack.c.l.b16 %v2835
    %v3387 = vunpack.c.h.b16 %v2835
    %v3388 = vunpack.c.l.b16 %v2836
    %v3389 = vunpack.c.l.b16 %v2837
    %v3390 = vunpack.c.h.b16 %v2837
    %v3391 = vunpack.c.l.b16 %v2838
    %v3392 = vunpack.c.h.b16 %v2838
    %v3393 = vunpack.c.l.b16 %v2839
    %v3394 = vunpack.c.h.b16 %v2839
    %v3395 = vunpack.c.l.b16 %v2840
    %v3396 = vunpack.c.l.b16 %v2841
    %v3397 = vunpack.c.h.b16 %v2841
    %v3398 = vunpack.c.l.b16 %v2842
    %v3399 = vunpack.c.h.b16 %v2842
    %v3400 = vunpack.c.l.b16 %v2843
    %v3401 = vunpack.c.h.b16 %v2843
    %v3402 = vunpack.c.l.b16 %v2844
    %v3403 = vunpack.c.l.b16 %v2845
    %v3404 = vunpack.c.h.b16 %v2845
    %v3405 = vunpack.c.l.b16 %v2846
    %v3406 = vunpack.c.h.b16 %v2846
    %v3407 = vunpack.c.l.b16 %v2847
    %v3408 = vunpack.c.h.b16 %v2847
    %v3409 = vunpack.c.l.b16 %v2848
    %v3410 = vunpack.c.l.b16 %v2849
    %v3411 = vunpack.c.h.b16 %v2849
    %v3412 = vunpack.c.l.b16 %v2850
    %v3413 = vunpack.c.h.b16 %v2850
    %v3414 = vunpack.c.l.b16 %v2851
    %v3415 = vunpack.c.h.b16 %v2851
    %v3416 = vunpack.c.l.b16 %v2852
    %v3417 = vunpack.c.l.b16 %v2853
    %v3418 = vunpack.c.h.b16 %v2853
    %v3419 = vunpack.c.l.b16 %v2854
    %v3420 = vunpack.c.h.b16 %v2854
    %v3421 = vunpack.c.l.b16 %v2855
    %v3422 = vunpack.c.h.b16 %v2855
    %v3423 = vunpack.c.l.b16 %v2856
    %v3424 = vunpack.c.l.b16 %v2857
    %v3425 = vunpack.c.h.b16 %v2857
    %v3426 = vunpack.c.l.b16 %v2858
    %v3427 = vunpack.c.h.b16 %v2858
    %v3428 = vunpack.c.l.b16 %v2859
    %v3429 = vunpack.c.h.b16 %v2859
    %v3430 = vunpack.c.l.b16 %v2860
    %v3431 = vunpack.c.l.b16 %v2861
    %v3432 = vunpack.c.h.b16 %v2861
    %v3433 = vunpack.c.l.b16 %v2862
    %v3434 = vunpack.c.h.b16 %v2862
    %v3435 = vunpack.c.l.b16 %v2863
    %v3436 = vunpack.c.h.b16 %v2863
    %v3437 = vunpack.c.l.b16 %v2864
    %v3438 = vunpack.c.l.b16 %v2865
    %v3439 = vunpack.c.h.b16 %v2865
    %v3440 = vunpack.c.l.b16 %v2866
    %v3441 = vunpack.c.h.b16 %v2866
    %v3442 = vunpack.c.l.b16 %v2867
    %v3443 = vunpack.c.h.b16 %v2867
    %v3444 = vunpack.c.l.b16 %v2868
    %v3445 = vunpack.c.l.b16 %v2869
    %v3446 = vunpack.c.h.b16 %v2869
    %v3447 = vunpack.c.l.b16 %v2870
    %v3448 = vunpack.c.h.b16 %v2870
    %v3449 = vunpack.c.l.b16 %v2871
    %v3450 = vunpack.c.h.b16 %v2871
    %v3451 = vunpack.c.l.b16 %v2872
    %v3452 = vunpack.c.l.b16 %v2873
    %v3453 = vunpack.c.h.b16 %v2873
    %v3454 = vunpack.c.l.b16 %v2874
    %v3455 = vunpack.c.h.b16 %v2874
    %v3456 = vunpack.c.l.b16 %v2875
    %v3457 = vunpack.c.h.b16 %v2875
    %v3458 = vunpack.c.l.b16 %v2876
    %v3459 = vunpack.c.l.b16 %v2877
    %v3460 = vunpack.c.h.b16 %v2877
    %v3461 = vunpack.c.l.b16 %v2878
    %v3462 = vunpack.c.h.b16 %v2878
    %v3463 = vunpack.c.l.b16 %v2879
    %v3464 = vunpack.c.h.b16 %v2879
    %v3465 = vunpack.c.l.b16 %v2880
    %v3466 = vunpack.c.l.b16 %v2881
    %v3467 = vunpack.c.h.b16 %v2881
    %v3468 = vunpack.c.l.b16 %v2882
    %v3469 = vunpack.c.h.b16 %v2882
    %v3470 = vunpack.c.l.b16 %v2883
    %v3471 = vunpack.c.h.b16 %v2883
    %v3472 = vunpack.c.l.b16 %v2884
    %v3473 = vunpack.c.l.b16 %v2885
    %v3474 = vunpack.c.h.b16 %v2885
    %v3475 = vunpack.c.l.b16 %v2886
    %v3476 = vunpack.c.h.b16 %v2886
    %v3477 = vunpack.c.l.b16 %v2887
    %v3478 = vunpack.c.h.b16 %v2887
    %v3479 = vunpack.c.l.b16 %v2888
    %v3480 = vunpack.c.l.b16 %v2889
    %v3481 = vunpack.c.h.b16 %v2889
    %v3482 = vunpack.c.l.b16 %v2890
    %v3483 = vunpack.c.h.b16 %v2890
    %v3484 = vunpack.c.l.b16 %v2891
    %v3485 = vunpack.c.h.b16 %v2891
    %v3486 = vunpack.c.l.b16 %v2892
    %v3487 = vunpack.c.l.b16 %v2893
    %v3488 = vunpack.c.h.b16 %v2893
    %v3489 = vunpack.c.l.b16 %v2894
    %v3490 = vunpack.c.h.b16 %v2894
    %v3491 = vunpack.c.l.b16 %v2895
    %v3492 = vunpack.c.h.b16 %v2895
    %v3493 = vunpack.c.l.b16 %v2896
    %v3494 = vunpack.c.l.b16 %v2897
    %v3495 = vunpack.c.h.b16 %v2897
    %v3496 = vunpack.c.l.b16 %v2898
    %v3497 = vunpack.c.h.b16 %v2898
    %v3498 = vunpack.c.l.b16 %v2899
    %v3499 = vunpack.c.h.b16 %v2899
    %v3500 = vunpack.c.l.b16 %v2900
    %v3501 = vunpack.c.l.b16 %v2901
    %v3502 = vunpack.c.h.b16 %v2901
    %v3503 = vunpack.c.l.b16 %v2902
    %v3504 = vunpack.c.h.b16 %v2902
    %v3505 = vunpack.c.l.b16 %v2903
    %v3506 = vunpack.c.h.b16 %v2903
    %v3507 = vunpack.c.l.b16 %v2904
    %v3508 = vunpack.c.l.b16 %v2905
    %v3509 = vunpack.c.h.b16 %v2905
    %v3510 = vunpack.c.l.b16 %v2906
    %v3511 = vunpack.c.h.b16 %v2906
    %v3512 = vunpack.c.l.b16 %v2907
    %v3513 = vunpack.c.h.b16 %v2907
    %v3514 = vunpack.c.l.b16 %v2908
    %v3515 = vunpack.c.l.b16 %v2909
    %v3516 = vunpack.c.h.b16 %v2909
    %v3517 = vunpack.c.l.b16 %v2910
    %v3518 = vunpack.c.h.b16 %v2910
    %v3519 = vunpack.c.l.b16 %v2911
    %v3520 = vunpack.c.h.b16 %v2911
    %v3521 = vunpack.c.l.b16 %v2912
    %v3522 = vunpack.c.l.b16 %v2913
    %v3523 = vunpack.c.h.b16 %v2913
    %v3524 = vunpack.c.l.b16 %v2914
    %v3525 = vunpack.c.h.b16 %v2914
    %v3526 = vunpack.c.l.b16 %v2915
    %v3527 = vunpack.c.h.b16 %v2915
    %v3528 = vunpack.c.l.b16 %v2916
    %v3529 = vunpack.c.l.b16 %v2917
    %v3530 = vunpack.c.h.b16 %v2917
    %v3531 = vunpack.c.l.b16 %v2918
    %v3532 = vunpack.c.h.b16 %v2918
    %v3533 = vunpack.c.l.b16 %v2919
    %v3534 = vunpack.c.h.b16 %v2919
    %v3535 = vunpack.c.l.b16 %v2920
    %v3536 = vunpack.c.l.b16 %v2921
    %v3537 = vunpack.c.h.b16 %v2921
    %v3538 = vunpack.c.l.b16 %v2922
    %v3539 = vunpack.c.h.b16 %v2922
    %v3540 = vunpack.c.l.b16 %v2923
    %v3541 = vunpack.c.h.b16 %v2923
    %v3542 = vunpack.c.l.b16 %v2924
    %v3543 = vunpack.c.l.b16 %v2925
    %v3544 = vunpack.c.h.b16 %v2925
    %v3545 = vunpack.c.l.b16 %v2926
    %v3546 = vunpack.c.h.b16 %v2926
    %v3547 = vunpack.c.l.b16 %v2927
    %v3548 = vunpack.c.h.b16 %v2927
    %v3549 = vunpack.c.l.b16 %v2928
    %v3550 = vunpack.c.l.b16 %v2929
    %v3551 = vunpack.c.h.b16 %v2929
    %v3552 = vunpack.c.l.b16 %v2930
    %v3553 = vunpack.c.h.b16 %v2930
    %v3554 = vunpack.c.l.b16 %v2931
    %v3555 = vunpack.c.h.b16 %v2931
    %v3556 = vunpack.c.l.b16 %v2932
    %v3557 = vunpack.c.l.b16 %v2933
    %v3558 = vunpack.c.h.b16 %v2933
    %v3559 = vunpack.c.l.b16 %v2934
    %v3560 = vunpack.c.h.b16 %v2934
    %v3561 = vunpack.c.l.b16 %v2935
    %v3562 = vunpack.c.h.b16 %v2935
    %v3563 = vunpack.c.l.b16 %v2936
    %v3564 = vunpack.c.l.b16 %v2937
    %v3565 = vunpack.c.h.b16 %v2937
    %v3566 = vunpack.c.l.b16 %v2938
    %v3567 = vunpack.c.h.b16 %v2938
    %v3568 = vunpack.c.l.b16 %v2939
    %v3569 = vunpack.c.h.b16 %v2939
    %v3570 = vunpack.c.l.b16 %v2940
    %v3571 = vunpack.c.l.b16 %v2941
    %v3572 = vunpack.c.h.b16 %v2941
    %v3573 = vunpack.c.l.b16 %v2942
    %v3574 = vunpack.c.h.b16 %v2942
    %v3575 = vunpack.c.l.b16 %v2943
    %v3576 = vunpack.c.h.b16 %v2943
    %v3577 = vunpack.c.l.b16 %v2944
    %v3578 = vunpack.c.l.b16 %v2945
    %v3579 = vunpack.c.h.b16 %v2945
    %v3580 = vunpack.c.l.b16 %v2946
    %v3581 = vunpack.c.h.b16 %v2946
    %v3582 = vunpack.c.l.b16 %v2947
    %v3583 = vunpack.c.h.b16 %v2947
    %v3584 = vunpack.c.l.b16 %v2948
    %v3585 = vunpack.c.l.b16 %v2949
    %v3586 = vunpack.c.h.b16 %v2949
    %v3587 = vunpack.c.l.b16 %v2950
    %v3588 = vunpack.c.h.b16 %v2950
    %v3589 = vunpack.c.l.b16 %v2951
    %v3590 = vunpack.c.h.b16 %v2951
    %v3591 = vunpack.c.l.b16 %v2952
    %v3592 = vunpack.c.l.b16 %v2953
    %v3593 = vunpack.c.h.b16 %v2953
    %v3594 = vunpack.c.l.b16 %v2954
    %v3595 = vunpack.c.h.b16 %v2954
    %v3596 = vunpack.c.l.b16 %v2955
    %v3597 = vunpack.c.h.b16 %v2955
    %v3598 = vunpack.c.l.b16 %v2956
    %v3599 = vunpack.c.l.b16 %v2957
    %v3600 = vunpack.c.h.b16 %v2957
    %v3601 = vunpack.c.l.b16 %v2958
    %v3602 = vunpack.c.h.b16 %v2958
    %v3603 = vunpack.c.l.b16 %v2959
    %v3604 = vunpack.c.h.b16 %v2959
    %v3605 = vunpack.c.l.b16 %v2960
    %v3606 = vunpack.c.l.b16 %v2961
    %v3607 = vunpack.c.h.b16 %v2961
    %v3608 = vunpack.c.l.b16 %v2962
    %v3609 = vunpack.c.h.b16 %v2962
    %v3610 = vunpack.c.l.b16 %v2963
    %v3611 = vunpack.c.h.b16 %v2963
    %v3612 = vunpack.c.l.b16 %v2964
    %v3613 = vunpack.c.l.b16 %v2965
    %v3614 = vunpack.c.h.b16 %v2965
    %v3615 = vunpack.c.l.b16 %v2966
    %v3616 = vunpack.c.h.b16 %v2966
    %v3617 = vunpack.c.l.b16 %v2967
    %v3618 = vunpack.c.h.b16 %v2967
    %v3619 = vunpack.c.l.b16 %v2968
    %v3620 = vunpack.c.l.b16 %v2969
    %v3621 = vunpack.c.h.b16 %v2969
    %v3622 = vunpack.c.l.b16 %v2970
    %v3623 = vunpack.c.h.b16 %v2970
    %v3624 = vunpack.c.l.b16 %v2971
    %v3625 = vunpack.c.h.b16 %v2971
    %v3626 = vunpack.c.l.b16 %v2972
    %v3627 = vunpack.c.l.b16 %v2973
    %v3628 = vunpack.c.h.b16 %v2973
    %v3629 = vunpack.c.l.b16 %v2974
    %v3630 = vunpack.c.h.b16 %v2974
    %v3631 = vunpack.c.l.b16 %v2975
    %v3632 = vunpack.c.h.b16 %v2975
    %v3633 = vunpack.c.l.b16 %v2976
    %v3634 = vunpack.c.l.b16 %v2977
    %v3635 = vunpack.c.h.b16 %v2977
    %v3636 = vunpack.c.l.b16 %v2978
    %v3637 = vunpack.c.h.b16 %v2978
    %v3638 = vunpack.c.l.b16 %v2979
    %v3639 = vunpack.c.h.b16 %v2979
    %v3640 = vunpack.c.l.b16 %v2980
    %v3641 = vunpack.c.l.b16 %v2981
    %v3642 = vunpack.c.h.b16 %v2981
    %v3643 = vunpack.c.l.b16 %v2982
    %v3644 = vunpack.c.h.b16 %v2982
    %v3645 = vunpack.c.l.b16 %v2983
    %v3646 = vunpack.c.h.b16 %v2983
    %v3647 = vunpack.c.l.b16 %v2984
    %v3648 = vunpack.c.l.b16 %v2985
    %v3649 = vunpack.c.h.b16 %v2985
    %v3650 = vunpack.c.l.b16 %v2986
    %v3651 = vunpack.c.h.b16 %v2986
    %v3652 = vunpack.c.l.b16 %v2987
    %v3653 = vunpack.c.h.b16 %v2987
    %v3654 = vunpack.c.l.b16 %v2988
    %v3655 = vunpack.c.l.b16 %v2989
    %v3656 = vunpack.c.h.b16 %v2989
    %v3657 = vunpack.c.l.b16 %v2990
    %v3658 = vunpack.c.h.b16 %v2990
    %v3659 = vunpack.c.l.b16 %v2991
    %v3660 = vunpack.c.h.b16 %v2991
    %v3661 = vunpack.c.l.b16 %v2992
    %v3662 = vunpack.c.l.b16 %v2993
    %v3663 = vunpack.c.h.b16 %v2993
    %v3664 = vunpack.c.l.b16 %v2994
    %v3665 = vunpack.c.h.b16 %v2994
    %v3666 = vunpack.c.l.b16 %v2995
    %v3667 = vunpack.c.h.b16 %v2995
    %v3668 = vunpack.c.l.b16 %v2996
    %v3669 = vunpack.c.l.b16 %v2997
    %v3670 = vunpack.c.h.b16 %v2997
    %v3671 = vunpack.c.l.b16 %v2998
    %v3672 = vunpack.c.h.b16 %v2998
    %v3673 = vunpack.c.l.b16 %v2999
    %v3674 = vunpack.c.h.b16 %v2999
    %v3675 = vunpack.c.l.b16 %v3000
    %v3676 = vunpack.c.l.b16 %v3001
    %v3677 = vunpack.c.h.b16 %v3001
    %v3678 = vunpack.c.l.b16 %v3002
    %v3679 = vunpack.c.h.b16 %v3002
    %v3680 = vunpack.c.l.b16 %v3003
    %v3681 = vunpack.c.h.b16 %v3003
    %v3682 = vunpack.c.l.b16 %v3004
    %v3683 = vunpack.c.l.b16 %v3005
    %v3684 = vunpack.c.h.b16 %v3005
    %v3685 = vunpack.c.l.b16 %v3006
    %v3686 = vunpack.c.h.b16 %v3006
    %v3687 = vunpack.c.l.b16 %v3007
    %v3688 = vunpack.c.h.b16 %v3007
    %v3689 = vunpack.c.l.b16 %v3008
    %v3690 = vunpack.c.l.b16 %v3009
    %v3691 = vunpack.c.h.b16 %v3009
    %v3692 = vunpack.c.l.b16 %v3010
    %v3693 = vunpack.c.h.b16 %v3010
    %v3694 = vunpack.c.l.b16 %v3011
    %v3695 = vunpack.c.h.b16 %v3011
    %v3696 = vunpack.c.l.b16 %v3012
    %v3697 = vunpack.c.l.b16 %v3013
    %v3698 = vunpack.c.h.b16 %v3013
    %v3699 = vunpack.c.l.b16 %v3014
    %v3700 = vunpack.c.h.b16 %v3014
    %v3701 = vunpack.c.l.b16 %v3015
    %v3702 = vunpack.c.h.b16 %v3015
    %v3703 = vunpack.c.l.b16 %v3016
    %v3704 = vunpack.c.l.b16 %v3017
    %v3705 = vunpack.c.h.b16 %v3017
    %v3706 = vunpack.c.l.b16 %v3018
    %v3707 = vunpack.c.h.b16 %v3018
    %v3708 = vunpack.c.l.b16 %v3019
    %v3709 = vunpack.c.h.b16 %v3019
    %v3710 = vunpack.c.l.b16 %v3020
    %v3711 = vunpack.c.l.b16 %v3021
    %v3712 = vunpack.c.h.b16 %v3021
    %v3713 = vunpack.c.l.b16 %v3022
    %v3714 = vunpack.c.h.b16 %v3022
    %v3715 = vunpack.c.l.b16 %v3023
    %v3716 = vunpack.c.h.b16 %v3023
    %v3717 = vunpack.c.l.b16 %v3024
    %v3718 = vunpack.c.l.b16 %v3025
    %v3719 = vunpack.c.h.b16 %v3025
    %v3720 = vunpack.c.l.b16 %v3026
    %v3721 = vunpack.c.h.b16 %v3026
    %v3722 = vunpack.c.l.b16 %v3027
    %v3723 = vunpack.c.h.b16 %v3027
    %v3724 = vunpack.c.l.b16 %v3028
    %v3725 = vunpack.c.l.b16 %v3029
    %v3726 = vunpack.c.h.b16 %v3029
    %v3727 = vunpack.c.l.b16 %v3030
    %v3728 = vunpack.c.h.b16 %v3030
    %v3729 = vunpack.c.l.b16 %v3031
    %v3730 = vunpack.c.h.b16 %v3031
    %v3731 = vunpack.c.l.b16 %v3032
    %v3732 = vunpack.c.l.b16 %v3033
    %v3733 = vunpack.c.h.b16 %v3033
    %v3734 = vunpack.c.l.b16 %v3034
    %v3735 = vunpack.c.h.b16 %v3034
    %v3736 = vunpack.c.l.b16 %v3035
    %v3737 = vunpack.c.h.b16 %v3035
    %v3738 = vunpack.c.l.b16 %v3036
    %v3739 = vunpack.c.l.b16 %v3037
    %v3740 = vunpack.c.h.b16 %v3037
    %v3741 = vunpack.c.l.b16 %v3038
    %v3742 = vunpack.c.h.b16 %v3038
    %v3743 = vunpack.c.l.b16 %v3039
    %v3744 = vunpack.c.h.b16 %v3039
    %v3745 = vunpack.c.l.b16 %v3040
    %v3746 = vunpack.c.l.b16 %v3041
    %v3747 = vunpack.c.h.b16 %v3041
    %v3748 = vunpack.c.l.b16 %v3042
    %v3749 = vunpack.c.h.b16 %v3042
    %v3750 = vunpack.c.l.b16 %v3043
    %v3751 = vunpack.c.h.b16 %v3043
    %v3752 = vunpack.c.l.b16 %v3044
    %v3753 = vunpack.c.l.b16 %v3045
    %v3754 = vunpack.c.h.b16 %v3045
    %v3755 = vunpack.c.l.b16 %v3046
    %v3756 = vunpack.c.h.b16 %v3046
    %v3757 = vunpack.c.l.b16 %v3047
    %v3758 = vunpack.c.h.b16 %v3047
    %v3759 = vunpack.c.l.b16 %v3048
    %v3760 = vunpack.c.l.b16 %v3049
    %v3761 = vunpack.c.h.b16 %v3049
    %v3762 = vunpack.c.l.b16 %v3050
    %v3763 = vunpack.c.h.b16 %v3050
    %v3764 = vunpack.c.l.b16 %v3051
    %v3765 = vunpack.c.h.b16 %v3051
    %v3766 = vunpack.c.l.b16 %v3052
    %v3767 = vunpack.c.l.b16 %v3053
    %v3768 = vunpack.c.h.b16 %v3053
    %v3769 = vunpack.c.l.b16 %v3054
    %v3770 = vunpack.c.h.b16 %v3054
    %v3771 = vunpack.c.l.b16 %v3055
    %v3772 = vunpack.c.h.b16 %v3055
    %v3773 = vunpack.c.l.b16 %v3056
    %v3774 = vunpack.c.l.b16 %v3057
    %v3775 = vunpack.c.h.b16 %v3057
    %v3776 = vunpack.c.l.b16 %v3058
    %v3777 = vunpack.c.h.b16 %v3058
    %v3778 = vunpack.c.l.b16 %v3059
    %v3779 = vunpack.c.h.b16 %v3059
    %v3780 = vunpack.c.l.b16 %v3060
    %v3781 = vunpack.c.l.b16 %v3061
    %v3782 = vunpack.c.h.b16 %v3061
    %v3783 = vunpack.c.l.b16 %v3062
    %v3784 = vunpack.c.h.b16 %v3062
    %v3785 = vunpack.c.l.b16 %v3063
    %v3786 = vunpack.c.h.b16 %v3063
    %v3787 = vunpack.c.l.b16 %v3064
    %v3788 = vunpack.c.l.b16 %v3065
    %v3789 = vunpack.c.h.b16 %v3065
    %v3790 = vunpack.c.l.b16 %v3066
    %v3791 = vunpack.c.h.b16 %v3066
    %v3792 = vunpack.c.l.b16 %v3067
    %v3793 = vunpack.c.h.b16 %v3067
    %v3794 = vunpack.c.l.b16 %v3068
    %v3795 = vunpack.c.l.b16 %v3069
    %v3796 = vunpack.c.h.b16 %v3069
    %v3797 = vunpack.c.l.b16 %v3070
    %v3798 = vunpack.c.h.b16 %v3070
    %v3799 = vunpack.c.l.b16 %v3071
    %v3800 = vunpack.c.h.b16 %v3071
    %v3801 = vunpack.c.l.b16 %v3072
    %v3802 = vunpack.c.l.b16 %v3073
    %v3803 = vunpack.c.h.b16 %v3073
    %v3804 = vunpack.c.l.b16 %v3074
    %v3805 = vunpack.c.h.b16 %v3074
    %v3806 = vunpack.c.l.b16 %v3075
    %v3807 = vunpack.c.h.b16 %v3075
    %v3808 = vunpack.c.l.b16 %v3076
    %v3809 = vunpack.c.l.b16 %v3077
    %v3810 = vunpack.c.h.b16 %v3077
    %v3811 = vunpack.c.l.b16 %v3078
    %v3812 = vunpack.c.h.b16 %v3078
    %v3813 = vunpack.c.l.b16 %v3079
    %v3814 = vunpack.c.h.b16 %v3079
    %v3815 = vunpack.c.l.b16 %v3080
    %v3816 = vunpack.c.l.b16 %v3081
    %v3817 = vunpack.c.h.b16 %v3081
    %v3818 = vunpack.c.l.b16 %v3082
    %v3819 = vunpack.c.h.b16 %v3082
    %v3820 = vunpack.c.l.b16 %v3083
    %v3821 = vunpack.c.h.b16 %v3083
    %v3822 = vunpack.c.l.b16 %v3084
    %v3823 = vunpack.c.l.b16 %v3085
    %v3824 = vunpack.c.h.b16 %v3085
    %v3825 = vunpack.c.l.b16 %v3086
    %v3826 = vunpack.c.h.b16 %v3086
    %v3827 = vunpack.c.l.b16 %v3087
    %v3828 = vunpack.c.h.b16 %v3087
    %v3829 = vunpack.c.l.b16 %v3088
    %v3830 = vpack.c.b16 %v3389, %v3382
    %v3831 = vpack.c.b16 %v3390, %v3383
    %v3832 = vpack.c.b16 %v3391, %v3384
    %v3833 = vpack.c.b16 %v3392, %v3385
    %v3834 = vpack.c.b16 %v3393, %v3386
    %v3835 = vpack.c.b16 %v3394, %v3387
    %v3836 = vpack.c.b16 %v3395, %v3388
    %v3837 = vpack.c.b16 %v3403, %v3396
    %v3838 = vpack.c.b16 %v3404, %v3397
    %v3839 = vpack.c.b16 %v3405, %v3398
    %v3840 = vpack.c.b16 %v3406, %v3399
    %v3841 = vpack.c.b16 %v3407, %v3400
    %v3842 = vpack.c.b16 %v3408, %v3401
    %v3843 = vpack.c.b16 %v3409, %v3402
    %v3844 = vpack.c.b16 %v3417, %v3410
    %v3845 = vpack.c.b16 %v3418, %v3411
    %v3846 = vpack.c.b16 %v3419, %v3412
    %v3847 = vpack.c.b16 %v3420, %v3413
    %v3848 = vpack.c.b16 %v3421, %v3414
    %v3849 = vpack.c.b16 %v3422, %v3415
    %v3850 = vpack.c.b16 %v3423, %v3416
    %v3851 = vpack.c.b16 %v3431, %v3424
    %v3852 = vpack.c.b16 %v3432, %v3425
    %v3853 = vpack.c.b16 %v3433, %v3426
    %v3854 = vpack.c.b16 %v3434, %v3427
    %v3855 = vpack.c.b16 %v3435, %v3428
    %v3856 = vpack.c.b16 %v3436, %v3429
    %v3857 = vpack.c.b16 %v3437, %v3430
    %v3858 = vpack.c.b16 %v3445, %v3438
    %v3859 = vpack.c.b16 %v3446, %v3439
    %v3860 = vpack.c.b16 %v3447, %v3440
    %v3861 = vpack.c.b16 %v3448, %v3441
    %v3862 = vpack.c.b16 %v3449, %v3442
    %v3863 = vpack.c.b16 %v3450, %v3443
    %v3864 = vpack.c.b16 %v3451, %v3444
    %v3865 = vpack.c.b16 %v3459, %v3452
    %v3866 = vpack.c.b16 %v3460, %v3453
    %v3867 = vpack.c.b16 %v3461, %v3454
    %v3868 = vpack.c.b16 %v3462, %v3455
    %v3869 = vpack.c.b16 %v3463, %v3456
    %v3870 = vpack.c.b16 %v3464, %v3457
    %v3871 = vpack.c.b16 %v3465, %v3458
    %v3872 = vpack.c.b16 %v3473, %v3466
    %v3873 = vpack.c.b16 %v3474, %v3467
    %v3874 = vpack.c.b16 %v3475, %v3468
    %v3875 = vpack.c.b16 %v3476, %v3469
    %v3876 = vpack.c.b16 %v3477, %v3470
    %v3877 = vpack.c.b16 %v3478, %v3471
    %v3878 = vpack.c.b16 %v3479, %v3472
    %v3879 = vpack.c.b16 %v3487, %v3480
    %v3880 = vpack.c.b16 %v3488, %v3481
    %v3881 = vpack.c.b16 %v3489, %v3482
    %v3882 = vpack.c.b16 %v3490, %v3483
    %v3883 = vpack.c.b16 %v3491, %v3484
    %v3884 = vpack.c.b16 %v3492, %v3485
    %v3885 = vpack.c.b16 %v3493, %v3486
    %v3886 = vpack.c.b16 %v3501, %v3494
    %v3887 = vpack.c.b16 %v3502, %v3495
    %v3888 = vpack.c.b16 %v3503, %v3496
    %v3889 = vpack.c.b16 %v3504, %v3497
    %v3890 = vpack.c.b16 %v3505, %v3498
    %v3891 = vpack.c.b16 %v3506, %v3499
    %v3892 = vpack.c.b16 %v3507, %v3500
    %v3893 = vpack.c.b16 %v3515, %v3508
    %v3894 = vpack.c.b16 %v3516, %v3509
    %v3895 = vpack.c.b16 %v3517, %v3510
    %v3896 = vpack.c.b16 %v3518, %v3511
    %v3897 = vpack.c.b16 %v3519, %v3512
    %v3898 = vpack.c.b16 %v3520, %v3513
    %v3899 = vpack.c.b16 %v3521, %v3514
    %v3900 = vpack.c.b16 %v3529, %v3522
    %v3901 = vpack.c.b16 %v3530, %v3523
    %v3902 = vpack.c.b16 %v3531, %v3524
    %v3903 = vpack.c.b16 %v3532, %v3525
    %v3904 = vpack.c.b16 %v3533, %v3526
    %v3905 = vpack.c.b16 %v3534, %v3527
    %v3906 = vpack.c.b16 %v3535, %v3528
    %v3907 = vpack.c.b16 %v3543, %v3536
    %v3908 = vpack.c.b16 %v3544, %v3537
    %v3909 = vpack.c.b16 %v3545, %v3538
    %v3910 = vpack.c.b16 %v3546, %v3539
    %v3911 = vpack.c.b16 %v3547, %v3540
    %v3912 = vpack.c.b16 %v3548, %v3541
    %v3913 = vpack.c.b16 %v3549, %v3542
    %v3914 = vpack.c.b16 %v3557, %v3550
    %v3915 = vpack.c.b16 %v3558, %v3551
    %v3916 = vpack.c.b16 %v3559, %v3552
    %v3917 = vpack.c.b16 %v3560, %v3553
    %v3918 = vpack.c.b16 %v3561, %v3554
    %v3919 = vpack.c.b16 %v3562, %v3555
    %v3920 = vpack.c.b16 %v3563, %v3556
    %v3921 = vpack.c.b16 %v3571, %v3564
    %v3922 = vpack.c.b16 %v3572, %v3565
    %v3923 = vpack.c.b16 %v3573, %v3566
    %v3924 = vpack.c.b16 %v3574, %v3567
    %v3925 = vpack.c.b16 %v3575, %v3568
    %v3926 = vpack.c.b16 %v3576, %v3569
    %v3927 = vpack.c.b16 %v3577, %v3570
    %v3928 = vpack.c.b16 %v3585, %v3578
    %v3929 = vpack.c.b16 %v3586, %v3579
    %v3930 = vpack.c.b16 %v3587, %v3580
    %v3931 = vpack.c.b16 %v3588, %v3581
    %v3932 = vpack.c.b16 %v3589, %v3582
    %v3933 = vpack.c.b16 %v3590, %v3583
    %v3934 = vpack.c.b16 %v3591, %v3584
    %v3935 = vpack.c.b16 %v3599, %v3592
    %v3936 = vpack.c.b16 %v3600, %v3593
    %v3937 = vpack.c.b16 %v3601, %v3594
    %v3938 = vpack.c.b16 %v3602, %v3595
    %v3939 = vpack.c.b16 %v3603, %v3596
    %v3940 = vpack.c.b16 %v3604, %v3597
    %v3941 = vpack.c.b16 %v3605, %v3598
    %v3942 = vpack.c.b16 %v3613, %v3606
    %v3943 = vpack.c.b16 %v3614, %v3607
    %v3944 = vpack.c.b16 %v3615, %v3608
    %v3945 = vpack.c.b16 %v3616, %v3609
    %v3946 = vpack.c.b16 %v3617, %v3610
    %v3947 = vpack.c.b16 %v3618, %v3611
    %v3948 = vpack.c.b16 %v3619, %v3612
    %v3949 = vpack.c.b16 %v3627, %v3620
    %v3950 = vpack.c.b16 %v3628, %v3621
    %v3951 = vpack.c.b16 %v3629, %v3622
    %v3952 = vpack.c.b16 %v3630, %v3623
    %v3953 = vpack.c.b16 %v3631, %v3624
    %v3954 = vpack.c.b16 %v3632, %v3625
    %v3955 = vpack.c.b16 %v3633, %v3626
    %v3956 = vpack.c.b16 %v3641, %v3634
    %v3957 = vpack.c.b16 %v3642, %v3635
    %v3958 = vpack.c.b16 %v3643, %v3636
    %v3959 = vpack.c.b16 %v3644, %v3637
    %v3960 = vpack.c.b16 %v3645, %v3638
    %v3961 = vpack.c.b16 %v3646, %v3639
    %v3962 = vpack.c.b16 %v3647, %v3640
    %v3963 = vpack.c.b16 %v3655, %v3648
    %v3964 = vpack.c.b16 %v3656, %v3649
    %v3965 = vpack.c.b16 %v3657, %v3650
    %v3966 = vpack.c.b16 %v3658, %v3651
    %v3967 = vpack.c.b16 %v3659, %v3652
    %v3968 = vpack.c.b16 %v3660, %v3653
    %v3969 = vpack.c.b16 %v3661, %v3654
    %v3970 = vpack.c.b16 %v3669, %v3662
    %v3971 = vpack.c.b16 %v3670, %v3663
    %v3972 = vpack.c.b16 %v3671, %v3664
    %v3973 = vpack.c.b16 %v3672, %v3665
    %v3974 = vpack.c.b16 %v3673, %v3666
    %v3975 = vpack.c.b16 %v3674, %v3667
    %v3976 = vpack.c.b16 %v3675, %v3668
    %v3977 = vpack.c.b16 %v3683, %v3676
    %v3978 = vpack.c.b16 %v3684, %v3677
    %v3979 = vpack.c.b16 %v3685, %v3678
    %v3980 = vpack.c.b16 %v3686, %v3679
    %v3981 = vpack.c.b16 %v3687, %v3680
    %v3982 = vpack.c.b16 %v3688, %v3681
    %v3983 = vpack.c.b16 %v3689, %v3682
    %v3984 = vpack.c.b16 %v3697, %v3690
    %v3985 = vpack.c.b16 %v3698, %v3691
    %v3986 = vpack.c.b16 %v3699, %v3692
    %v3987 = vpack.c.b16 %v3700, %v3693
    %v3988 = vpack.c.b16 %v3701, %v3694
    %v3989 = vpack.c.b16 %v3702, %v3695
    %v3990 = vpack.c.b16 %v3703, %v3696
    %v3991 = vpack.c.b16 %v3711, %v3704
    %v3992 = vpack.c.b16 %v3712, %v3705
    %v3993 = vpack.c.b16 %v3713, %v3706
    %v3994 = vpack.c.b16 %v3714, %v3707
    %v3995 = vpack.c.b16 %v3715, %v3708
    %v3996 = vpack.c.b16 %v3716, %v3709
    %v3997 = vpack.c.b16 %v3717, %v3710
    %v3998 = vpack.c.b16 %v3725, %v3718
    %v3999 = vpack.c.b16 %v3726, %v3719
    %v4000 = vpack.c.b16 %v3727, %v3720
    %v4001 = vpack.c.b16 %v3728, %v3721
    %v4002 = vpack.c.b16 %v3729, %v3722
    %v4003 = vpack.c.b16 %v3730, %v3723
    %v4004 = vpack.c.b16 %v3731, %v3724
    %v4005 = vpack.c.b16 %v3739, %v3732
    %v4006 = vpack.c.b16 %v3740, %v3733
    %v4007 = vpack.c.b16 %v3741, %v3734
    %v4008 = vpack.c.b16 %v3742, %v3735
    %v4009 = vpack.c.b16 %v3743, %v3736
    %v4010 = vpack.c.b16 %v3744, %v3737
    %v4011 = vpack.c.b16 %v3745, %v3738
    %v4012 = vpack.c.b16 %v3753, %v3746
    %v4013 = vpack.c.b16 %v3754, %v3747
    %v4014 = vpack.c.b16 %v3755, %v3748
    %v4015 = vpack.c.b16 %v3756, %v3749
    %v4016 = vpack.c.b16 %v3757, %v3750
    %v4017 = vpack.c.b16 %v3758, %v3751
    %v4018 = vpack.c.b16 %v3759, %v3752
    %v4019 = vpack.c.b16 %v3767, %v3760
    %v4020 = vpack.c.b16 %v3768, %v3761
    %v4021 = vpack.c.b16 %v3769, %v3762
    %v4022 = vpack.c.b16 %v3770, %v3763
    %v4023 = vpack.c.b16 %v3771, %v3764
    %v4024 = vpack.c.b16 %v3772, %v3765
    %v4025 = vpack.c.b16 %v3773, %v3766
    %v4026 = vpack.c.b16 %v3781, %v3774
    %v4027 = vpack.c.b16 %v3782, %v3775
    %v4028 = vpack.c.b16 %v3783, %v3776
    %v4029 = vpack.c.b16 %v3784, %v3777
    %v4030 = vpack.c.b16 %v3785, %v3778
    %v4031 = vpack.c.b16 %v3786, %v3779
    %v4032 = vpack.c.b16 %v3787, %v3780
    %v4033 = vpack.c.b16 %v3795, %v3788
    %v4034 = vpack.c.b16 %v3796, %v3789
    %v4035 = vpack.c.b16 %v3797, %v3790
    %v4036 = vpack.c.b16 %v3798, %v3791
    %v4037 = vpack.c.b16 %v3799, %v3792
    %v4038 = vpack.c.b16 %v3800, %v3793
    %v4039 = vpack.c.b16 %v3801, %v3794
    %v4040 = vpack.c.b16 %v3809, %v3802
    %v4041 = vpack.c.b16 %v3810, %v3803
    %v4042 = vpack.c.b16 %v3811, %v3804
    %v4043 = vpack.c.b16 %v3812, %v3805
    %v4044 = vpack.c.b16 %v3813, %v3806
    %v4045 = vpack.c.b16 %v3814, %v3807
    %v4046 = vpack.c.b16 %v3815, %v3808
    %v4047 = vpack.c.b16 %v3823, %v3816
    %v4048 = vpack.c.b16 %v3824, %v3817
    %v4049 = vpack.c.b16 %v3825, %v3818
    %v4050 = vpack.c.b16 %v3826, %v3819
    %v4051 = vpack.c.b16 %v3827, %v3820
    %v4052 = vpack.c.b16 %v3828, %v3821
    %v4053 = vpack.c.b16 %v3829, %v3822
    %4278 = vmatprep.subr.bf16.mxu0 %v3831
    %4279 = vmatpush1.bf16.msra.mxu0 %v3830
    %4280 = vmatprep.subr.bf16.mxu0 %v3838
    %4281 = vmatpush1.bf16.msra.mxu0 %v3837
    %4282 = vmatprep.subr.bf16.mxu0 %v3845
    %4283 = vmatpush1.bf16.msra.mxu0 %v3844
    %4284 = vmatprep.subr.bf16.mxu0 %v3852
    %4285 = vmatpush1.bf16.msra.mxu0 %v3851
    %4286 = vmatprep.subr.bf16.mxu0 %v3859
    %4287 = vmatpush1.bf16.msra.mxu0 %v3858
    %4288 = vmatprep.subr.bf16.mxu0 %v3866
    %4289 = vmatpush1.bf16.msra.mxu0 %v3865
    %4290 = vmatprep.subr.bf16.mxu0 %v3873
    %4291 = vmatpush1.bf16.msra.mxu0 %v3872
    %4292 = vmatprep.subr.bf16.mxu0 %v3880
    %4293 = vmatpush1.bf16.msra.mxu0 %v3879
    %4294 = vmatprep.subr.bf16.mxu0 %v3887
    %4295 = vmatpush1.bf16.msra.mxu0 %v3886
    %4296 = vmatprep.subr.bf16.mxu0 %v3894
    %4297 = vmatpush1.bf16.msra.mxu0 %v3893
    %4298 = vmatprep.subr.bf16.mxu0 %v3901
    %4299 = vmatpush1.bf16.msra.mxu0 %v3900
    %4300 = vmatprep.subr.bf16.mxu0 %v3908
    %4301 = vmatpush1.bf16.msra.mxu0 %v3907
    %4302 = vmatprep.subr.bf16.mxu0 %v3915
    %4303 = vmatpush1.bf16.msra.mxu0 %v3914
    %4304 = vmatprep.subr.bf16.mxu0 %v3922
    %4305 = vmatpush1.bf16.msra.mxu0 %v3921
    %4306 = vmatprep.subr.bf16.mxu0 %v3929
    %4307 = vmatpush1.bf16.msra.mxu0 %v3928
    %4308 = vmatprep.subr.bf16.mxu0 %v3936
    %4309 = vmatpush1.bf16.msra.mxu0 %v3935
    %4310 = vmatprep.mubr.bf16.mxu0 %v2830
    %4311 = vmatmul.mubr.bf16.gmra.mrb[0].mxu0 %v2829
    %v4312 = vpop.f32.mrb[0].mxu0
    %v4313 = vadd.f32 %v3094, %v4312
    %v4314 = vpop.f32.mrb[0].mxu0
    %v4315 = vadd.f32 %v3098, %v4314
    %v4316 = vpop.f32.mrb[0].mxu0
    %v4317 = vpop.f32.mrb[0].mxu0
    %4318 = vdwg.mxu0
    %4319 = vmatprep.subr.bf16.mxu0 %v3943
    %4320 = vmatpush1.bf16.msra.mxu0 %v3942
    %4321 = vmatprep.subr.bf16.mxu0 %v3950
    %4322 = vmatpush1.bf16.msra.mxu0 %v3949
    %4323 = vmatprep.subr.bf16.mxu0 %v3957
    %4324 = vmatpush1.bf16.msra.mxu0 %v3956
    %4325 = vmatprep.subr.bf16.mxu0 %v3964
    %4326 = vmatpush1.bf16.msra.mxu0 %v3963
    %4327 = vmatprep.subr.bf16.mxu0 %v3971
    %4328 = vmatpush1.bf16.msra.mxu0 %v3970
    %4329 = vmatprep.subr.bf16.mxu0 %v3978
    %4330 = vmatpush1.bf16.msra.mxu0 %v3977
    %4331 = vmatprep.subr.bf16.mxu0 %v3985
    %4332 = vmatpush1.bf16.msra.mxu0 %v3984
    %4333 = vmatprep.subr.bf16.mxu0 %v3992
    %4334 = vmatpush1.bf16.msra.mxu0 %v3991
    %4335 = vmatprep.subr.bf16.mxu0 %v3999
    %4336 = vmatpush1.bf16.msra.mxu0 %v3998
    %4337 = vmatprep.subr.bf16.mxu0 %v4006
    %4338 = vmatpush1.bf16.msra.mxu0 %v4005
    %4339 = vmatprep.subr.bf16.mxu0 %v4013
    %4340 = vmatpush1.bf16.msra.mxu0 %v4012
    %4341 = vmatprep.subr.bf16.mxu0 %v4020
    %4342 = vmatpush1.bf16.msra.mxu0 %v4019
    %4343 = vmatprep.subr.bf16.mxu0 %v4027
    %4344 = vmatpush1.bf16.msra.mxu0 %v4026
    %4345 = vmatprep.subr.bf16.mxu0 %v4034
    %4346 = vmatpush1.bf16.msra.mxu0 %v4033
    %4347 = vmatprep.subr.bf16.mxu0 %v4041
    %4348 = vmatpush1.bf16.msra.mxu0 %v4040
    %4349 = vmatprep.subr.bf16.mxu0 %v4048
    %4350 = vmatpush1.bf16.msra.mxu0 %v4047
    %4351 = vmatprep.mubr.bf16.mxu0 %v2832
    %4352 = vmatmul.mubr.bf16.gmra.mrb[0].mxu0 %v2831
    %v4353 = vpop.f32.mrb[0].mxu0
    %v4354 = vadd.f32 %v4313, %v4353
    %v4355 = vpop.f32.mrb[0].mxu0
    %v4356 = vadd.f32 %v4315, %v4355
    %v4357 = vpop.f32.mrb[0].mxu0
    %v4358 = vpop.f32.mrb[0].mxu0
    %4359 = vdwg.mxu0
    %4360 = vmatprep.subr.bf16.mxu0 %v3833
    %4361 = vmatpush1.bf16.msra.mxu0 %v3832
    %4362 = vmatprep.subr.bf16.mxu0 %v3840
    %4363 = vmatpush1.bf16.msra.mxu0 %v3839
    %4364 = vmatprep.subr.bf16.mxu0 %v3847
    %4365 = vmatpush1.bf16.msra.mxu0 %v3846
    %4366 = vmatprep.subr.bf16.mxu0 %v3854
    %4367 = vmatpush1.bf16.msra.mxu0 %v3853
    %4368 = vmatprep.subr.bf16.mxu0 %v3861
    %4369 = vmatpush1.bf16.msra.mxu0 %v3860
    %4370 = vmatprep.subr.bf16.mxu0 %v3868
    %4371 = vmatpush1.bf16.msra.mxu0 %v3867
    %4372 = vmatprep.subr.bf16.mxu0 %v3875
    %4373 = vmatpush1.bf16.msra.mxu0 %v3874
    %4374 = vmatprep.subr.bf16.mxu0 %v3882
    %4375 = vmatpush1.bf16.msra.mxu0 %v3881
    %4376 = vmatprep.subr.bf16.mxu0 %v3889
    %4377 = vmatpush1.bf16.msra.mxu0 %v3888
    %4378 = vmatprep.subr.bf16.mxu0 %v3896
    %4379 = vmatpush1.bf16.msra.mxu0 %v3895
    %4380 = vmatprep.subr.bf16.mxu0 %v3903
    %4381 = vmatpush1.bf16.msra.mxu0 %v3902
    %4382 = vmatprep.subr.bf16.mxu0 %v3910
    %4383 = vmatpush1.bf16.msra.mxu0 %v3909
    %4384 = vmatprep.subr.bf16.mxu0 %v3917
    %4385 = vmatpush1.bf16.msra.mxu0 %v3916
    %4386 = vmatprep.subr.bf16.mxu0 %v3924
    %4387 = vmatpush1.bf16.msra.mxu0 %v3923
    %4388 = vmatprep.subr.bf16.mxu0 %v3931
    %4389 = vmatpush1.bf16.msra.mxu0 %v3930
    %4390 = vmatprep.subr.bf16.mxu0 %v3938
    %4391 = vmatpush1.bf16.msra.mxu0 %v3937
    %4392 = vmatprep.mubr.bf16.mxu0 %v2830
    %4393 = vmatmul.mubr.bf16.gmra.mrb[0].mxu0 %v2829
    %v4394 = vpop.f32.mrb[0].mxu0
    %v4395 = vadd.f32 %v3102, %v4394
    %v4396 = vpop.f32.mrb[0].mxu0
    %v4397 = vadd.f32 %v3106, %v4396
    %v4398 = vpop.f32.mrb[0].mxu0
    %v4399 = vpop.f32.mrb[0].mxu0
    %4400 = vdwg.mxu0
    %4401 = vmatprep.subr.bf16.mxu0 %v3945
    %4402 = vmatpush1.bf16.msra.mxu0 %v3944
    %4403 = vmatprep.subr.bf16.mxu0 %v3952
    %4404 = vmatpush1.bf16.msra.mxu0 %v3951
    %4405 = vmatprep.subr.bf16.mxu0 %v3959
    %4406 = vmatpush1.bf16.msra.mxu0 %v3958
    %4407 = vmatprep.subr.bf16.mxu0 %v3966
    %4408 = vmatpush1.bf16.msra.mxu0 %v3965
    %4409 = vmatprep.subr.bf16.mxu0 %v3973
    %4410 = vmatpush1.bf16.msra.mxu0 %v3972
    %4411 = vmatprep.subr.bf16.mxu0 %v3980
    %4412 = vmatpush1.bf16.msra.mxu0 %v3979
    %4413 = vmatprep.subr.bf16.mxu0 %v3987
    %4414 = vmatpush1.bf16.msra.mxu0 %v3986
    %4415 = vmatprep.subr.bf16.mxu0 %v3994
    %4416 = vmatpush1.bf16.msra.mxu0 %v3993
    %4417 = vmatprep.subr.bf16.mxu0 %v4001
    %4418 = vmatpush1.bf16.msra.mxu0 %v4000
    %4419 = vmatprep.subr.bf16.mxu0 %v4008
    %4420 = vmatpush1.bf16.msra.mxu0 %v4007
    %4421 = vmatprep.subr.bf16.mxu0 %v4015
    %4422 = vmatpush1.bf16.msra.mxu0 %v4014
    %4423 = vmatprep.subr.bf16.mxu0 %v4022
    %4424 = vmatpush1.bf16.msra.mxu0 %v4021
    %4425 = vmatprep.subr.bf16.mxu0 %v4029
    %4426 = vmatpush1.bf16.msra.mxu0 %v4028
    %4427 = vmatprep.subr.bf16.mxu0 %v4036
    %4428 = vmatpush1.bf16.msra.mxu0 %v4035
    %4429 = vmatprep.subr.bf16.mxu0 %v4043
    %4430 = vmatpush1.bf16.msra.mxu0 %v4042
    %4431 = vmatprep.subr.bf16.mxu0 %v4050
    %4432 = vmatpush1.bf16.msra.mxu0 %v4049
    %4433 = vmatprep.mubr.bf16.mxu0 %v2832
    %4434 = vmatmul.mubr.bf16.gmra.mrb[0].mxu0 %v2831
    %v4435 = vpop.f32.mrb[0].mxu0
    %v4436 = vadd.f32 %v4395, %v4435
    %v4437 = vpop.f32.mrb[0].mxu0
    %v4438 = vadd.f32 %v4397, %v4437
    %v4439 = vpop.f32.mrb[0].mxu0
    %v4440 = vpop.f32.mrb[0].mxu0
    %4441 = vdwg.mxu0
    %4442 = vmatprep.subr.bf16.mxu0 %v3835
    %4443 = vmatpush1.bf16.msra.mxu0 %v3834
    %4444 = vmatprep.subr.bf16.mxu0 %v3842
    %4445 = vmatpush1.bf16.msra.mxu0 %v3841
    %4446 = vmatprep.subr.bf16.mxu0 %v3849
    %4447 = vmatpush1.bf16.msra.mxu0 %v3848
    %4448 = vmatprep.subr.bf16.mxu0 %v3856
    %4449 = vmatpush1.bf16.msra.mxu0 %v3855
    %4450 = vmatprep.subr.bf16.mxu0 %v3863
    %4451 = vmatpush1.bf16.msra.mxu0 %v3862
    %4452 = vmatprep.subr.bf16.mxu0 %v3870
    %4453 = vmatpush1.bf16.msra.mxu0 %v3869
    %4454 = vmatprep.subr.bf16.mxu0 %v3877
    %4455 = vmatpush1.bf16.msra.mxu0 %v3876
    %4456 = vmatprep.subr.bf16.mxu0 %v3884
    %4457 = vmatpush1.bf16.msra.mxu0 %v3883
    %4458 = vmatprep.subr.bf16.mxu0 %v3891
    %4459 = vmatpush1.bf16.msra.mxu0 %v3890
    %4460 = vmatprep.subr.bf16.mxu0 %v3898
    %4461 = vmatpush1.bf16.msra.mxu0 %v3897
    %4462 = vmatprep.subr.bf16.mxu0 %v3905
    %4463 = vmatpush1.bf16.msra.mxu0 %v3904
    %4464 = vmatprep.subr.bf16.mxu0 %v3912
    %4465 = vmatpush1.bf16.msra.mxu0 %v3911
    %4466 = vmatprep.subr.bf16.mxu0 %v3919
    %4467 = vmatpush1.bf16.msra.mxu0 %v3918
    %4468 = vmatprep.subr.bf16.mxu0 %v3926
    %4469 = vmatpush1.bf16.msra.mxu0 %v3925
    %4470 = vmatprep.subr.bf16.mxu0 %v3933
    %4471 = vmatpush1.bf16.msra.mxu0 %v3932
    %4472 = vmatprep.subr.bf16.mxu0 %v3940
    %4473 = vmatpush1.bf16.msra.mxu0 %v3939
    %4474 = vmatprep.mubr.bf16.mxu0 %v2830
    %4475 = vmatmul.mubr.bf16.gmra.mrb[0].mxu0 %v2829
    %v4476 = vpop.f32.mrb[0].mxu0
    %v4477 = vadd.f32 %v3110, %v4476
    %v4478 = vpop.f32.mrb[0].mxu0
    %v4479 = vadd.f32 %v3114, %v4478
    %v4480 = vpop.f32.mrb[0].mxu0
    %v4481 = vpop.f32.mrb[0].mxu0
    %4482 = vdwg.mxu0
    %4483 = vmatprep.subr.bf16.mxu0 %v3947
    %4484 = vmatpush1.bf16.msra.mxu0 %v3946
    %4485 = vmatprep.subr.bf16.mxu0 %v3954
    %4486 = vmatpush1.bf16.msra.mxu0 %v3953
    %4487 = vmatprep.subr.bf16.mxu0 %v3961
    %4488 = vmatpush1.bf16.msra.mxu0 %v3960
    %4489 = vmatprep.subr.bf16.mxu0 %v3968
    %4490 = vmatpush1.bf16.msra.mxu0 %v3967
    %4491 = vmatprep.subr.bf16.mxu0 %v3975
    %4492 = vmatpush1.bf16.msra.mxu0 %v3974
    %4493 = vmatprep.subr.bf16.mxu0 %v3982
    %4494 = vmatpush1.bf16.msra.mxu0 %v3981
    %4495 = vmatprep.subr.bf16.mxu0 %v3989
    %4496 = vmatpush1.bf16.msra.mxu0 %v3988
    %4497 = vmatprep.subr.bf16.mxu0 %v3996
    %4498 = vmatpush1.bf16.msra.mxu0 %v3995
    %4499 = vmatprep.subr.bf16.mxu0 %v4003
    %4500 = vmatpush1.bf16.msra.mxu0 %v4002
    %4501 = vmatprep.subr.bf16.mxu0 %v4010
    %4502 = vmatpush1.bf16.msra.mxu0 %v4009
    %4503 = vmatprep.subr.bf16.mxu0 %v4017
    %4504 = vmatpush1.bf16.msra.mxu0 %v4016
    %4505 = vmatprep.subr.bf16.mxu0 %v4024
    %4506 = vmatpush1.bf16.msra.mxu0 %v4023
    %4507 = vmatprep.subr.bf16.mxu0 %v4031
    %4508 = vmatpush1.bf16.msra.mxu0 %v4030
    %4509 = vmatprep.subr.bf16.mxu0 %v4038
    %4510 = vmatpush1.bf16.msra.mxu0 %v4037
    %4511 = vmatprep.subr.bf16.mxu0 %v4045
    %4512 = vmatpush1.bf16.msra.mxu0 %v4044
    %4513 = vmatprep.subr.bf16.mxu0 %v4052
    %4514 = vmatpush1.bf16.msra.mxu0 %v4051
    %4515 = vmatprep.mubr.bf16.mxu0 %v2832
    %4516 = vmatmul.mubr.bf16.gmra.mrb[0].mxu0 %v2831
    %v4517 = vpop.f32.mrb[0].mxu0
    %v4518 = vadd.f32 %v4477, %v4517
    %v4519 = vpop.f32.mrb[0].mxu0
    %v4520 = vadd.f32 %v4479, %v4519
    %v4521 = vpop.f32.mrb[0].mxu0
    %v4522 = vpop.f32.mrb[0].mxu0
    %4523 = vdwg.mxu0
    %4524 = vmatprep.subr.bf16.mxu0 0
    %4525 = vmatpush1.bf16.msra.mxu0 %v3836
    %4526 = vmatprep.subr.bf16.mxu0 0
    %4527 = vmatpush1.bf16.msra.mxu0 %v3843
    %4528 = vmatprep.subr.bf16.mxu0 0
    %4529 = vmatpush1.bf16.msra.mxu0 %v3850
    %4530 = vmatprep.subr.bf16.mxu0 0
    %4531 = vmatpush1.bf16.msra.mxu0 %v3857
    %4532 = vmatprep.subr.bf16.mxu0 0
    %4533 = vmatpush1.bf16.msra.mxu0 %v3864
    %4534 = vmatprep.subr.bf16.mxu0 0
    %4535 = vmatpush1.bf16.msra.mxu0 %v3871
    %4536 = vmatprep.subr.bf16.mxu0 0
    %4537 = vmatpush1.bf16.msra.mxu0 %v3878
    %4538 = vmatprep.subr.bf16.mxu0 0
    %4539 = vmatpush1.bf16.msra.mxu0 %v3885
    %4540 = vmatprep.subr.bf16.mxu0 0
    %4541 = vmatpush1.bf16.msra.mxu0 %v3892
    %4542 = vmatprep.subr.bf16.mxu0 0
    %4543 = vmatpush1.bf16.msra.mxu0 %v3899
    %4544 = vmatprep.subr.bf16.mxu0 0
    %4545 = vmatpush1.bf16.msra.mxu0 %v3906
    %4546 = vmatprep.subr.bf16.mxu0 0
    %4547 = vmatpush1.bf16.msra.mxu0 %v3913
    %4548 = vmatprep.subr.bf16.mxu0 0
    %4549 = vmatpush1.bf16.msra.mxu0 %v3920
    %4550 = vmatprep.subr.bf16.mxu0 0
    %4551 = vmatpush1.bf16.msra.mxu0 %v3927
    %4552 = vmatprep.subr.bf16.mxu0 0
    %4553 = vmatpush1.bf16.msra.mxu0 %v3934
    %4554 = vmatprep.subr.bf16.mxu0 0
    %4555 = vmatpush1.bf16.msra.mxu0 %v3941
    %4556 = vmatprep.mubr.bf16.mxu0 %v2830
    %4557 = vmatmul.mubr.bf16.gmra.mrb[0].mxu0 %v2829
    %v4558 = vpop.f32.mrb[0].mxu0
    %v4559 = vadd.f32 %v3118, %v4558
    %v4560 = vpop.f32.mrb[0].mxu0
    %v4561 = vpop.f32.mrb[0].mxu0
    %v4562 = vpop.f32.mrb[0].mxu0
    %4563 = vdwg.mxu0
    %4564 = vmatprep.subr.bf16.mxu0 0
    %4565 = vmatpush1.bf16.msra.mxu0 %v3948
    %4566 = vmatprep.subr.bf16.mxu0 0
    %4567 = vmatpush1.bf16.msra.mxu0 %v3955
    %4568 = vmatprep.subr.bf16.mxu0 0
    %4569 = vmatpush1.bf16.msra.mxu0 %v3962
    %4570 = vmatprep.subr.bf16.mxu0 0
    %4571 = vmatpush1.bf16.msra.mxu0 %v3969
    %4572 = vmatprep.subr.bf16.mxu0 0
    %4573 = vmatpush1.bf16.msra.mxu0 %v3976
    %4574 = vmatprep.subr.bf16.mxu0 0
    %4575 = vmatpush1.bf16.msra.mxu0 %v3983
    %4576 = vmatprep.subr.bf16.mxu0 0
    %4577 = vmatpush1.bf16.msra.mxu0 %v3990
    %4578 = vmatprep.subr.bf16.mxu0 0
    %4579 = vmatpush1.bf16.msra.mxu0 %v3997
    %4580 = vmatprep.subr.bf16.mxu0 0
    %4581 = vmatpush1.bf16.msra.mxu0 %v4004
    %4582 = vmatprep.subr.bf16.mxu0 0
    %4583 = vmatpush1.bf16.msra.mxu0 %v4011
    %4584 = vmatprep.subr.bf16.mxu0 0
    %4585 = vmatpush1.bf16.msra.mxu0 %v4018
    %4586 = vmatprep.subr.bf16.mxu0 0
    %4587 = vmatpush1.bf16.msra.mxu0 %v4025
    %4588 = vmatprep.subr.bf16.mxu0 0
    %4589 = vmatpush1.bf16.msra.mxu0 %v4032
    %4590 = vmatprep.subr.bf16.mxu0 0
    %4591 = vmatpush1.bf16.msra.mxu0 %v4039
    %4592 = vmatprep.subr.bf16.mxu0 0
    %4593 = vmatpush1.bf16.msra.mxu0 %v4046
    %4594 = vmatprep.subr.bf16.mxu0 0
    %4595 = vmatpush1.bf16.msra.mxu0 %v4053
    %4596 = vmatprep.mubr.bf16.mxu0 %v2832
    %4597 = vmatmul.mubr.bf16.gmra.mrb[0].mxu0 %v2831
    %v4598 = vpop.f32.mrb[0].mxu0
    %v4599 = vadd.f32 %v4559, %v4598
    %v4600 = vpop.f32.mrb[0].mxu0
    %v4601 = vpop.f32.mrb[0].mxu0
    %v4602 = vpop.f32.mrb[0].mxu0
    %4603 = vdwg.mxu0
    %v4604 = vxor.u32 %v4354, 2147483648
    %v4605 = vxor.u32 %v4356, 2147483648
    %v4606 = vxor.u32 %v4436, 2147483648
    %v4607 = vxor.u32 %v4438, 2147483648
    %v4608 = vxor.u32 %v4518, 2147483648
    %v4609 = vxor.u32 %v4520, 2147483648
    %v4610 = vxor.u32 %v4599, 2147483648
    %v4611 = vmul.f32 %v4604, 1.442695
    %v4612 = vpow.pop %v4611
    %v4613 = vmul.f32 %v4605, 1.442695
    %v4614 = vpow.pop %v4613
    %v4615 = vmul.f32 %v4606, 1.442695
    %v4616 = vpow.pop %v4615
    %v4617 = vmul.f32 %v4607, 1.442695
    %v4618 = vpow.pop %v4617
    %v4619 = vmul.f32 %v4608, 1.442695
    %v4620 = vpow.pop %v4619
    %v4621 = vmul.f32 %v4609, 1.442695
    %v4622 = vpow.pop %v4621
    %v4623 = vmul.f32 %v4610, 1.442695
    %v4624 = vpow.pop %v4623
    %v4625 = vadd.f32 %v4612, 1.0
    %v4626 = vadd.f32 %v4614, 1.0
    %v4627 = vadd.f32 %v4616, 1.0
    %v4628 = vadd.f32 %v4618, 1.0
    %v4629 = vadd.f32 %v4620, 1.0
    %v4630 = vadd.f32 %v4622, 1.0
    %v4631 = vadd.f32 %v4624, 1.0
    %v4632 = vrcp.pop %v4625
    %v4633 = vmul.f32 1.0, %v4632
    %v4634 = vrcp.pop %v4626
    %v4635 = vmul.f32 1.0, %v4634
    %v4636 = vrcp.pop %v4627
    %v4637 = vmul.f32 1.0, %v4636
    %v4638 = vrcp.pop %v4628
    %v4639 = vmul.f32 1.0, %v4638
    %v4640 = vrcp.pop %v4629
    %v4641 = vmul.f32 1.0, %v4640
    %v4642 = vrcp.pop %v4630
    %v4643 = vmul.f32 1.0, %v4642
    %v4644 = vrcp.pop %v4631
    %v4645 = vmul.f32 1.0, %v4644
    %v4646 = vpack.c.bf16 %v4633, %v4633
    %v4647 = vpack.c.bf16 %v4635, %v4635
    %v4648 = vpack.c.bf16 %v4637, %v4637
    %v4649 = vpack.c.bf16 %v4639, %v4639
    %v4650 = vpack.c.bf16 %v4641, %v4641
    %v4651 = vpack.c.bf16 %v4643, %v4643
    %v4652 = vpack.c.bf16 %v4645, %v4645
    %v4660 = vunpack.c.l.b16 %v4646
    %v4661 = vunpack.c.l.b16 %v4647
    %v4662 = vunpack.c.l.b16 %v4648
    %v4663 = vunpack.c.l.b16 %v4649
    %v4664 = vunpack.c.l.b16 %v4650
    %v4665 = vunpack.c.l.b16 %v4651
    %v4666 = vunpack.c.l.b16 %v4652
    %v4667 = vpack.c.b16 %v4661, %v4660
    %v4668 = vpack.c.b16 %v4663, %v4662
    %v4669 = vpack.c.b16 %v4665, %v4664
    %v4670 = vpack.c.b16 %v4666, %v4666
    %4675 = vst [vmem:[#allocation2] sm:$0xff] %v4667
    %4676 = vst [vmem:[#allocation2 + $0x8] sm:$0xff] %v4668
    %4677 = vst [vmem:[#allocation2 + $0x10] sm:$0xff] %v4669
    %vm4678 = vcmask 125952
    %4679 = vst.msk [vmem:[#allocation2 + $0x18] sm:$0xf] %vm4678, %v4670
    // Predicated region
    $region46: #{tpu_custom_call.1} parent=1 // pred_check
      _
    $region47: #{tpu_custom_call.1} parent=1 // pred_check_branch
      %4681 = sbr.rel (0) target = $region49
    $region48: #{tpu_custom_call.1} parent=1 // pred_region
      %s4683 = ssub.s32 448, 448
      %4684 = vsyncadd [#allocation3], %s4683
      %s4686 = sshll.u32 [#allocation2], 4
      %s4687 = int_to_ptr.vmem [resolvable:$true] %s4686
      %4689 = dma.vmem_to_hbm [thread:$0]  %s4687, 448, %s11, [#allocation3]
    $region49: #{tpu_custom_call.1} parent=1 // pred_fallthru
      _
    // Predicated region
    $region50: #{tpu_custom_call.1} parent=1 // pred_check
      _
    $region51: #{tpu_custom_call.1} parent=1 // pred_check_branch
      %4691 = sbr.rel (0) target = $region53
    $region52: #{tpu_custom_call.1} parent=1 // pred_region
      %4692 = dma.done [#allocation3], 448
    $region53: #{tpu_custom_call.1} parent=1 // pred_fallthru
      _
    %4693 = vsyncpa [#allocation3], 1

</llo_original>
